<compile_context>
chip_gen: v7x
topology: tpu7x:2x2x1
jax: 0.10.0
libtpu: 0.0.40
codegen_flags: <defaults>
</compile_context>

<pallas_src>
import functools

import jax
import jax.numpy as jnp
from jax import lax
from jax.experimental import pallas as pl
from jax.experimental.pallas import tpu as pltpu

LANE = 128                                  # TPU lane width; pad output channels to this
_TAPS3 = tuple((kh, kw) for kh in range(3) for kw in range(3))
_VMEM_LIMIT = 32 * 1024 * 1024              # explicit, safe on v5e/v6e/v7x


def _round_up(x, m):
    return (x + m - 1) // m * m


# ---------------------------------------------------------------------------
# Kernel A: bn1+relu prologue -> conv1 (3x3, stride, pad 1) -> bn2(*)+relu epilogue
#           (*) bn2 scale is already folded into the conv1 weight columns.
# ---------------------------------------------------------------------------

def _make_conv1_kernel(s, Hc, Wc, Cin, Ho, Wo, Cp):
    def kernel(xph_ref, s1_ref, b1_ref, w1_ref, sh2_ref, o_ref, apad_ref):
        sc1 = s1_ref[...].reshape(1, 1, Cin)
        sh1 = b1_ref[...].reshape(1, 1, Cin)

        # --- prologue: bn1 + relu written into a zero-padded VMEM scratch.
        # apad stacks, per (row, col) stride-phase, the spatially zero-padded
        # activation; every conv tap below is then a unit-stride static slice.
        apad_ref[...] = jnp.zeros(apad_ref.shape, apad_ref.dtype)
        for p in range(s):
            for q in range(s):
                ph_src = ((p + 1) % s) * s + ((q + 1) % s)
                x_src = xph_ref[0, ph_src * Hc:(ph_src + 1) * Hc, :, :]   # (Hc, Wc, Cin)
                act = jnp.maximum(x_src * sc1 + sh1, 0.0)
                rb = (p * s + q) * (Hc + 2)
                r0 = 1 if p == 0 else 0
                c0 = 1 if q == 0 else 0
                apad_ref[rb + r0:rb + r0 + Hc, c0:c0 + Wc, :] = act.astype(apad_ref.dtype)

        # --- implicit GEMM: 9 taps, bf16 MXU operands, f32 accumulation.
        acc = jnp.zeros((Ho * Wo, Cp), jnp.float32)
        for t, (kh, kw) in enumerate(_TAPS3):
            rb = ((kh % s) * s + (kw % s)) * (Hc + 2)
            tap = apad_ref[rb + kh // s:rb + kh // s + Ho, kw // s:kw // s + Wo, :]
            acc = acc + jnp.dot(tap.reshape(Ho * Wo, Cin), w1_ref[t],
                                preferred_element_type=jnp.float32)

        # --- epilogue: bn2 (scale folded into w1) + relu2, lane-dense bf16 store.
        out = jnp.maximum(acc + sh2_ref[...], 0.0)
        o_ref[...] = out.reshape(1, Ho, Wo, Cp).astype(o_ref.dtype)

    return kernel


def conv1_bn_relu_fused(xph, s1, b1, w1f, sh2, stride, Hc, Wc, Ho, Wo, Cp):
    N = xph.shape[0]
    Cin = xph.shape[-1]
    kernel = _make_conv1_kernel(stride, Hc, Wc, Cin, Ho, Wo, Cp)
    return pl.pallas_call(
        kernel,
        out_shape=jax.ShapeDtypeStruct((N, Ho, Wo, Cp), jnp.bfloat16),
        grid=(N,),
        in_specs=[
            pl.BlockSpec((1, stride * stride * Hc, Wc, Cin), lambda n: (n, 0, 0, 0)),
            pl.BlockSpec((1, Cin), lambda n: (0, 0)),
            pl.BlockSpec((1, Cin), lambda n: (0, 0)),
            pl.BlockSpec((9, Cin, Cp), lambda n: (0, 0, 0)),
            pl.BlockSpec((1, Cp), lambda n: (0, 0)),
        ],
        out_specs=pl.BlockSpec((1, Ho, Wo, Cp), lambda n: (n, 0, 0, 0)),
        scratch_shapes=[pltpu.VMEM((stride * stride * (Hc + 2), Wc + 2, Cin),
                                   jnp.bfloat16)],
        compiler_params=pltpu.CompilerParams(
            dimension_semantics=("parallel",),
            vmem_limit_bytes=_VMEM_LIMIT),
    )(xph, s1.reshape(1, Cin), b1.reshape(1, Cin), w1f, sh2)


# ---------------------------------------------------------------------------
# Kernel B: conv2 (3x3, stride 1, pad 1) + fused residual
#           (identity add when Cin==Cout, else the 1x1 strided shortcut conv
#            on relu(bn1(x)) is computed in-kernel as one more dot).
# ---------------------------------------------------------------------------

def _make_conv2_kernel(equal, Ho, Wo, Cin, Cp):
    def kernel(*refs):
        if equal:
            b_ref, w2_ref, xres_ref, o_ref, bpad_ref = refs
        else:
            b_ref, w2_ref, x00_ref, s1_ref, b1_ref, wsc_ref, o_ref, bpad_ref = refs

        # zero-padded conv1 output in VMEM (zero pad is exact: post-relu values)
        bpad_ref[...] = jnp.zeros(bpad_ref.shape, bpad_ref.dtype)
        bpad_ref[1:Ho + 1, 1:Wo + 1, :] = b_ref[0]

        acc = jnp.zeros((Ho * Wo, Cp), jnp.float32)
        for t, (kh, kw) in enumerate(_TAPS3):
            tap = bpad_ref[kh:kh + Ho, kw:kw + Wo, :]
            acc = acc + jnp.dot(tap.reshape(Ho * Wo, Cp), w2_ref[t],
                                preferred_element_type=jnp.float32)

        if equal:
            # identity shortcut: exact f32 add of (channel-padded) x
            acc = acc + xres_ref[0].reshape(Ho * Wo, Cp)
        else:
            # fused 1x1 strided shortcut on relu(bn1(x)); x00 == x[:, ::s, ::s, :]
            a_sc = jnp.maximum(
                x00_ref[0] * s1_ref[...].reshape(1, 1, Cin)
                + b1_ref[...].reshape(1, 1, Cin), 0.0)
            acc = acc + jnp.dot(a_sc.reshape(Ho * Wo, Cin).astype(jnp.bfloat16),
                                wsc_ref[...], preferred_element_type=jnp.float32)

        o_ref[...] = acc.reshape(1, Ho, Wo, Cp).astype(o_ref.dtype)

    return kernel


def conv2_residual_fused(b_act, w2p, residual_args, equal, Ho, Wo, Cp):
    N = b_act.shape[0]
    in_specs = [
        pl.BlockSpec((1, Ho, Wo, Cp), lambda n: (n, 0, 0, 0)),
        pl.BlockSpec((9, Cp, Cp), lambda n: (0, 0, 0)),
    ]
    if equal:
        (x_res,) = residual_args
        cin = 0
        in_specs.append(pl.BlockSpec((1, Ho, Wo, Cp), lambda n: (n, 0, 0, 0)))
        args = [b_act, w2p, x_res]
    else:
        x00, s1, b1, wscp = residual_args
        cin = x00.shape[-1]
        in_specs += [
            pl.BlockSpec((1, Ho, Wo, cin), lambda n: (n, 0, 0, 0)),
            pl.BlockSpec((1, cin), lambda n: (0, 0)),
            pl.BlockSpec((1, cin), lambda n: (0, 0)),
            pl.BlockSpec((cin, Cp), lambda n: (0, 0)),
        ]
        args = [b_act, w2p, x00, s1.reshape(1, cin), b1.reshape(1, cin), wscp]

    kernel = _make_conv2_kernel(equal, Ho, Wo, cin, Cp)
    return pl.pallas_call(
        kernel,
        out_shape=jax.ShapeDtypeStruct((N, Ho, Wo, Cp), jnp.float32),
        grid=(N,),
        in_specs=in_specs,
        out_specs=pl.BlockSpec((1, Ho, Wo, Cp), lambda n: (n, 0, 0, 0)),
        scratch_shapes=[pltpu.VMEM((Ho + 2, Wo + 2, Cp), jnp.bfloat16)],
        compiler_params=pltpu.CompilerParams(
            dimension_semantics=("parallel",),
            vmem_limit_bytes=_VMEM_LIMIT),
    )(*args)


# ---------------------------------------------------------------------------
# Forward (Pallas) + plain-JAX glue (parameter folding / tiny layout transforms)
# ---------------------------------------------------------------------------

def basic_block_forward(x_nhwc, params, stride):
    """Pallas implementation of BasicBlock.forward (inference / eval semantics)."""
    N, H, W, Cin = x_nhwc.shape
    Cout = params["w1"].shape[-1]
    equal = (Cin == Cout)
    if equal:
        # identity shortcut is only well-formed at stride 1 (as used in WideResNet)
        assert stride == 1, "equal in/out channels requires stride == 1"
    assert H % stride == 0 and W % stride == 0

    Cp = _round_up(Cout, LANE)              # lane-dense output channel count
    Hc, Wc = H // stride, W // stride
    Ho = (H + 2 - 3) // stride + 1
    Wo = (W + 2 - 3) // stride + 1
    assert (Ho, Wo) == (Hc, Wc)

    s1, b1 = params["bn1_scale"], params["bn1_shift"]
    s2, b2 = params["bn2_scale"], params["bn2_shift"]

    # ---- parameter folding / channel padding (tiny, parameter-side only) ----
    w1f = params["w1"] * s2[None, None, None, :]            # fold bn2 scale into conv1
    w1f = jnp.pad(w1f, ((0, 0), (0, 0), (0, 0), (0, Cp - Cout)))
    w1f = w1f.reshape(9, Cin, Cp).astype(jnp.bfloat16)
    sh2 = jnp.pad(b2, (0, Cp - Cout)).reshape(1, Cp).astype(jnp.float32)
    w2p = jnp.pad(params["w2"], ((0, 0), (0, 0), (0, Cp - Cout), (0, Cp - Cout)))
    w2p = w2p.reshape(9, Cp, Cp).astype(jnp.bfloat16)

    # ---- stride>1: cheap space-to-depth phase split of the raw input so that all
    #      in-kernel conv taps are unit-stride slices; stride==1 is a pure no-op.
    if stride == 1:
        xph = x_nhwc
    else:
        xph = jnp.concatenate(
            [x_nhwc[:, p::stride, q::stride, :]
             for p in range(stride) for q in range(stride)], axis=1)

    # Kernel A: bn1+relu -> conv1 -> bn2+relu (channel-padded, bf16 intermediate)
    b_act = conv1_bn_relu_fused(xph, s1, b1, w1f, sh2, stride, Hc, Wc, Ho, Wo, Cp)

    # Kernel B: conv2 + fused residual
    if equal:
        x_res = jnp.pad(x_nhwc, ((0, 0), (0, 0), (0, 0), (0, Cp - Cin)))
        out_p = conv2_residual_fused(b_act, w2p, (x_res,), True, Ho, Wo, Cp)
    else:
        wscp = jnp.pad(params["wsc"], ((0, 0), (0, 0), (0, 0), (0, Cp - Cout)))
        wscp = wscp.reshape(Cin, Cp).astype(jnp.bfloat16)
        x00 = x_nhwc[:, ::stride, ::stride, :]
        out_p = conv2_residual_fused(b_act, w2p, (x00, s1, b1, wscp), False, Ho, Wo, Cp)

    return out_p[..., :Cout]                # drop the lane-padding channels


# ---------------------------------------------------------------------------
# Pure-JAX reference (correctness check) and deterministic parameters
# ---------------------------------------------------------------------------

def reference_forward(x_nhwc, params, stride):
    def conv(x, w, s, pad):
        return lax.conv_general_dilated(
            x, w, (s, s), [(pad, pad), (pad, pad)],
            dimension_numbers=("NHWC", "HWIO", "NHWC"))

    def bnrelu(x, sc, sh):
        return jnp.maximum(x * sc + sh, 0.0)

    Cin = x_nhwc.shape[-1]
    Cout = params["w1"].shape[-1]
    equal = Cin == Cout
    a = bnrelu(x_nhwc, params["bn1_scale"], params["bn1_shift"])
    c1 = conv(a, params["w1"], stride, 1)
    b = bnrelu(c1, params["bn2_scale"], params["bn2_shift"])
    c2 = conv(b, params["w2"], 1, 1)
    short = x_nhwc if equal else conv(a, params["wsc"], stride, 0)
    return short + c2


def init_params(key, cin, cout):
    ks = jax.random.split(key, 8)

    def bn(kg, kb, km, kv, c):
        gamma = 1.0 + 0.1 * jax.random.normal(kg, (c,), jnp.float32)
        beta = 0.1 * jax.random.normal(kb, (c,), jnp.float32)
        mean = 0.1 * jax.random.normal(km, (c,), jnp.float32)
        var = jnp.abs(jax.random.normal(kv, (c,), jnp.float32)) + 0.5
        scale = gamma / jnp.sqrt(var + 1e-5)
        shift = beta - mean * scale
        return scale, shift

    s1, b1 = bn(ks[0], ks[1], ks[2], ks[3], cin)
    s2, b2 = bn(ks[4], ks[5], ks[6], ks[7], cout)
    kw = jax.random.split(jax.random.fold_in(key, 1), 3)
    params = dict(
        bn1_scale=s1, bn1_shift=b1, bn2_scale=s2, bn2_shift=b2,
        w1=0.1 * jax.random.normal(kw[0], (3, 3, cin, cout), jnp.float32),   # HWIO
        w2=0.1 * jax.random.normal(kw[1], (3, 3, cout, cout), jnp.float32),  # HWIO
    )
    if cin != cout:
        params["wsc"] = 0.1 * jax.random.normal(kw[2], (1, 1, cin, cout), jnp.float32)
    return params


if __name__ == "__main__":
    key = jax.random.PRNGKey(0)
    N, H, W = 2, 16, 16

    # Two configs: (in!=out, strided -> convShortcut path) and (in==out -> identity path)
    for (cin, cout, stride) in [(4, 8, 2), (4, 4, 1)]:
        cfg_key = jax.random.fold_in(key, cin * 100 + cout * 10 + stride)
        kx, kp = jax.random.split(cfg_key)
        x_nchw = jax.random.normal(kx, (N, cin, H, W), jnp.float32)  # PyTorch NCHW layout
        x_nhwc = jnp.transpose(x_nchw, (0, 2, 3, 1))                 # kernel NHWC layout
        params = init_params(kp, cin, cout)

        fwd = jax.jit(functools.partial(basic_block_forward, stride=stride))
        out = fwd(x_nhwc, params)
        jax.block_until_ready(out)

        ref = reference_forward(x_nhwc, params, stride)
        assert out.shape == ref.shape, (out.shape, ref.shape)
        # bf16 MXU operands + f32 accumulation -> loose, combined rel/abs tolerance.
        err = float(jnp.max(jnp.abs(out - ref) / (1.0 + jnp.abs(ref))))
        if err > 5e-2:
            raise AssertionError(f"mismatch for cfg {(cin, cout, stride)}: norm err {err}")

    print("KERNEL_OK")
</pallas_src>

<mosaic_0001>
module attributes {stable_mosaic.version = 11 : i64} {
  func.func @kernel(%arg0: i32, %arg1: memref<1x32x8x4xf32, #tpu.memory_space<vmem>>, %arg2: memref<1x4xf32, #tpu.memory_space<vmem>>, %arg3: memref<1x4xf32, #tpu.memory_space<vmem>>, %arg4: memref<9x4x128xbf16, #tpu.memory_space<vmem>>, %arg5: memref<1x128xf32, #tpu.memory_space<vmem>>, %arg6: memref<1x8x8x128xbf16, #tpu.memory_space<vmem>>, %arg7: memref<40x10x4xbf16, #tpu.memory_space<vmem>>) attributes {dimension_semantics = [#tpu.dimension_semantics<parallel>], iteration_bounds = array<i64: 2>, scalar_prefetch = 0 : i64, scratch_operands = 1 : i64, tpu.core_type = #tpu.core_type<tc>, window_params = [{transform_indices = @transform_0, window_bounds = array<i64: 1, 32, 8, 4>}, {pipeline_mode = #tpu.pipeline_mode<synchronous>, transform_indices = @transform_1, window_bounds = array<i64: 1, 4>}, {pipeline_mode = #tpu.pipeline_mode<synchronous>, transform_indices = @transform_2, window_bounds = array<i64: 1, 4>}, {pipeline_mode = #tpu.pipeline_mode<synchronous>, transform_indices = @transform_3, window_bounds = array<i64: 9, 4, 128>}, {pipeline_mode = #tpu.pipeline_mode<synchronous>, transform_indices = @transform_4, window_bounds = array<i64: 1, 128>}, {transform_indices = @transform_5, window_bounds = array<i64: 1, 8, 8, 128>}]} {
    %c0 = arith.constant 0 : index
    %c0_0 = arith.constant 0 : index
    %0 = vector.load %arg2[%c0, %c0_0] : memref<1x4xf32, #tpu.memory_space<vmem>>, vector<1x4xf32>
    %1 = vector.shape_cast %0 : vector<1x4xf32> to vector<1x1x4xf32>
    %c0_1 = arith.constant 0 : index
    %c0_2 = arith.constant 0 : index
    %2 = vector.load %arg3[%c0_1, %c0_2] : memref<1x4xf32, #tpu.memory_space<vmem>>, vector<1x4xf32>
    %3 = vector.shape_cast %2 : vector<1x4xf32> to vector<1x1x4xf32>
    %cst = arith.constant 0.000000e+00 : bf16
    %4 = vector.broadcast %cst : bf16 to vector<40x10x4xbf16>
    %c0_3 = arith.constant 0 : index
    %c0_4 = arith.constant 0 : index
    %c0_5 = arith.constant 0 : index
    %5 = vector.load %arg7[%c0_3, %c0_4, %c0_5] : memref<40x10x4xbf16, #tpu.memory_space<vmem>>, vector<40x10x4xbf16>
    tpu.vector_store %arg7[%c0_3, %c0_4, %c0_5], %4 {strides = array<i32>} : memref<40x10x4xbf16, #tpu.memory_space<vmem>>, vector<40x10x4xbf16>,
    %c0_6 = arith.constant 0 : index
    %c24 = arith.constant 24 : index
    %c0_7 = arith.constant 0 : index
    %c0_8 = arith.constant 0 : index
    %6 = vector.load %arg1[%c0_6, %c24, %c0_7, %c0_8] : memref<1x32x8x4xf32, #tpu.memory_space<vmem>>, vector<1x8x8x4xf32>
    %7 = vector.shape_cast %6 : vector<1x8x8x4xf32> to vector<8x8x4xf32>
    %8 = vector.broadcast %1 : vector<1x1x4xf32> to vector<8x8x4xf32>
    %9 = arith.mulf %7, %8 : vector<8x8x4xf32>
    %10 = vector.broadcast %3 : vector<1x1x4xf32> to vector<8x8x4xf32>
    %11 = arith.addf %9, %10 : vector<8x8x4xf32>
    %cst_9 = arith.constant 0.000000e+00 : f32
    %12 = vector.broadcast %cst_9 : f32 to vector<8x8x4xf32>
    %13 = arith.maximumf %11, %12 : vector<8x8x4xf32>
    %14 = arith.truncf %13 : vector<8x8x4xf32> to vector<8x8x4xbf16>
    %c1 = arith.constant 1 : index
    %c1_10 = arith.constant 1 : index
    %c0_11 = arith.constant 0 : index
    %15 = vector.load %arg7[%c1, %c1_10, %c0_11] : memref<40x10x4xbf16, #tpu.memory_space<vmem>>, vector<8x8x4xbf16>
    tpu.vector_store %arg7[%c1, %c1_10, %c0_11], %14 {strides = array<i32>} : memref<40x10x4xbf16, #tpu.memory_space<vmem>>, vector<8x8x4xbf16>,
    %c0_12 = arith.constant 0 : index
    %c16 = arith.constant 16 : index
    %c0_13 = arith.constant 0 : index
    %c0_14 = arith.constant 0 : index
    %16 = vector.load %arg1[%c0_12, %c16, %c0_13, %c0_14] : memref<1x32x8x4xf32, #tpu.memory_space<vmem>>, vector<1x8x8x4xf32>
    %17 = vector.shape_cast %16 : vector<1x8x8x4xf32> to vector<8x8x4xf32>
    %18 = vector.broadcast %1 : vector<1x1x4xf32> to vector<8x8x4xf32>
    %19 = arith.mulf %17, %18 : vector<8x8x4xf32>
    %20 = vector.broadcast %3 : vector<1x1x4xf32> to vector<8x8x4xf32>
    %21 = arith.addf %19, %20 : vector<8x8x4xf32>
    %cst_15 = arith.constant 0.000000e+00 : f32
    %22 = vector.broadcast %cst_15 : f32 to vector<8x8x4xf32>
    %23 = arith.maximumf %21, %22 : vector<8x8x4xf32>
    %24 = arith.truncf %23 : vector<8x8x4xf32> to vector<8x8x4xbf16>
    %c11 = arith.constant 11 : index
    %c0_16 = arith.constant 0 : index
    %c0_17 = arith.constant 0 : index
    %25 = vector.load %arg7[%c11, %c0_16, %c0_17] : memref<40x10x4xbf16, #tpu.memory_space<vmem>>, vector<8x8x4xbf16>
    tpu.vector_store %arg7[%c11, %c0_16, %c0_17], %24 {strides = array<i32>} : memref<40x10x4xbf16, #tpu.memory_space<vmem>>, vector<8x8x4xbf16>,
    %c0_18 = arith.constant 0 : index
    %c8 = arith.constant 8 : index
    %c0_19 = arith.constant 0 : index
    %c0_20 = arith.constant 0 : index
    %26 = vector.load %arg1[%c0_18, %c8, %c0_19, %c0_20] : memref<1x32x8x4xf32, #tpu.memory_space<vmem>>, vector<1x8x8x4xf32>
    %27 = vector.shape_cast %26 : vector<1x8x8x4xf32> to vector<8x8x4xf32>
    %28 = vector.broadcast %1 : vector<1x1x4xf32> to vector<8x8x4xf32>
    %29 = arith.mulf %27, %28 : vector<8x8x4xf32>
    %30 = vector.broadcast %3 : vector<1x1x4xf32> to vector<8x8x4xf32>
    %31 = arith.addf %29, %30 : vector<8x8x4xf32>
    %cst_21 = arith.constant 0.000000e+00 : f32
    %32 = vector.broadcast %cst_21 : f32 to vector<8x8x4xf32>
    %33 = arith.maximumf %31, %32 : vector<8x8x4xf32>
    %34 = arith.truncf %33 : vector<8x8x4xf32> to vector<8x8x4xbf16>
    %c20 = arith.constant 20 : index
    %c1_22 = arith.constant 1 : index
    %c0_23 = arith.constant 0 : index
    %35 = vector.load %arg7[%c20, %c1_22, %c0_23] : memref<40x10x4xbf16, #tpu.memory_space<vmem>>, vector<8x8x4xbf16>
    tpu.vector_store %arg7[%c20, %c1_22, %c0_23], %34 {strides = array<i32>} : memref<40x10x4xbf16, #tpu.memory_space<vmem>>, vector<8x8x4xbf16>,
    %c0_24 = arith.constant 0 : index
    %c0_25 = arith.constant 0 : index
    %c0_26 = arith.constant 0 : index
    %c0_27 = arith.constant 0 : index
    %36 = vector.load %arg1[%c0_24, %c0_25, %c0_26, %c0_27] : memref<1x32x8x4xf32, #tpu.memory_space<vmem>>, vector<1x8x8x4xf32>
    %37 = vector.shape_cast %36 : vector<1x8x8x4xf32> to vector<8x8x4xf32>
    %38 = vector.broadcast %1 : vector<1x1x4xf32> to vector<8x8x4xf32>
    %39 = arith.mulf %37, %38 : vector<8x8x4xf32>
    %40 = vector.broadcast %3 : vector<1x1x4xf32> to vector<8x8x4xf32>
    %41 = arith.addf %39, %40 : vector<8x8x4xf32>
    %cst_28 = arith.constant 0.000000e+00 : f32
    %42 = vector.broadcast %cst_28 : f32 to vector<8x8x4xf32>
    %43 = arith.maximumf %41, %42 : vector<8x8x4xf32>
    %44 = arith.truncf %43 : vector<8x8x4xf32> to vector<8x8x4xbf16>
    %c30 = arith.constant 30 : index
    %c0_29 = arith.constant 0 : index
    %c0_30 = arith.constant 0 : index
    %45 = vector.load %arg7[%c30, %c0_29, %c0_30] : memref<40x10x4xbf16, #tpu.memory_space<vmem>>, vector<8x8x4xbf16>
    tpu.vector_store %arg7[%c30, %c0_29, %c0_30], %44 {strides = array<i32>} : memref<40x10x4xbf16, #tpu.memory_space<vmem>>, vector<8x8x4xbf16>,
    %cst_31 = arith.constant 0.000000e+00 : f32
    %46 = vector.broadcast %cst_31 : f32 to vector<64x128xf32>
    %c0_32 = arith.constant 0 : index
    %c0_33 = arith.constant 0 : index
    %c0_34 = arith.constant 0 : index
    %47 = vector.load %arg7[%c0_32, %c0_33, %c0_34] : memref<40x10x4xbf16, #tpu.memory_space<vmem>>, vector<8x8x4xbf16>
    %48 = vector.shape_cast %47 : vector<8x8x4xbf16> to vector<64x4xbf16>
    %c0_35 = arith.constant 0 : index
    %c0_36 = arith.constant 0 : index
    %c0_37 = arith.constant 0 : index
    %49 = vector.load %arg4[%c0_35, %c0_36, %c0_37] : memref<9x4x128xbf16, #tpu.memory_space<vmem>>, vector<1x4x128xbf16>
    %50 = vector.shape_cast %49 : vector<1x4x128xbf16> to vector<4x128xbf16>
    %cst_38 = arith.constant dense<0.000000e+00> : vector<64x128xf32>
    %51 = tpu.matmul %48, %50, %cst_38 {dimension_numbers = #tpu.dot_dimension_numbers<[1], [0], [0], [1], [0, 0, 1, 1], [], []>} : vector<64x4xbf16>, vector<4x128xbf16>, vector<64x128xf32> -> vector<64x128xf32>
    %52 = arith.addf %46, %51 : vector<64x128xf32>
    %c10 = arith.constant 10 : index
    %c0_39 = arith.constant 0 : index
    %c0_40 = arith.constant 0 : index
    %53 = vector.load %arg7[%c10, %c0_39, %c0_40] : memref<40x10x4xbf16, #tpu.memory_space<vmem>>, vector<8x8x4xbf16>
    %54 = vector.shape_cast %53 : vector<8x8x4xbf16> to vector<64x4xbf16>
    %c1_41 = arith.constant 1 : index
    %c0_42 = arith.constant 0 : index
    %c0_43 = arith.constant 0 : index
    %55 = vector.load %arg4[%c1_41, %c0_42, %c0_43] : memref<9x4x128xbf16, #tpu.memory_space<vmem>>, vector<1x4x128xbf16>
    %56 = vector.shape_cast %55 : vector<1x4x128xbf16> to vector<4x128xbf16>
    %cst_44 = arith.constant dense<0.000000e+00> : vector<64x128xf32>
    %57 = tpu.matmul %54, %56, %cst_44 {dimension_numbers = #tpu.dot_dimension_numbers<[1], [0], [0], [1], [0, 0, 1, 1], [], []>} : vector<64x4xbf16>, vector<4x128xbf16>, vector<64x128xf32> -> vector<64x128xf32>
    %58 = arith.addf %52, %57 : vector<64x128xf32>
    %c0_45 = arith.constant 0 : index
    %c1_46 = arith.constant 1 : index
    %c0_47 = arith.constant 0 : index
    %59 = vector.load %arg7[%c0_45, %c1_46, %c0_47] : memref<40x10x4xbf16, #tpu.memory_space<vmem>>, vector<8x8x4xbf16>
    %60 = vector.shape_cast %59 : vector<8x8x4xbf16> to vector<64x4xbf16>
    %c2 = arith.constant 2 : index
    %c0_48 = arith.constant 0 : index
    %c0_49 = arith.constant 0 : index
    %61 = vector.load %arg4[%c2, %c0_48, %c0_49] : memref<9x4x128xbf16, #tpu.memory_space<vmem>>, vector<1x4x128xbf16>
    %62 = vector.shape_cast %61 : vector<1x4x128xbf16> to vector<4x128xbf16>
    %cst_50 = arith.constant dense<0.000000e+00> : vector<64x128xf32>
    %63 = tpu.matmul %60, %62, %cst_50 {dimension_numbers = #tpu.dot_dimension_numbers<[1], [0], [0], [1], [0, 0, 1, 1], [], []>} : vector<64x4xbf16>, vector<4x128xbf16>, vector<64x128xf32> -> vector<64x128xf32>
    %64 = arith.addf %58, %63 : vector<64x128xf32>
    %c20_51 = arith.constant 20 : index
    %c0_52 = arith.constant 0 : index
    %c0_53 = arith.constant 0 : index
    %65 = vector.load %arg7[%c20_51, %c0_52, %c0_53] : memref<40x10x4xbf16, #tpu.memory_space<vmem>>, vector<8x8x4xbf16>
    %66 = vector.shape_cast %65 : vector<8x8x4xbf16> to vector<64x4xbf16>
    %c3 = arith.constant 3 : index
    %c0_54 = arith.constant 0 : index
    %c0_55 = arith.constant 0 : index
    %67 = vector.load %arg4[%c3, %c0_54, %c0_55] : memref<9x4x128xbf16, #tpu.memory_space<vmem>>, vector<1x4x128xbf16>
    %68 = vector.shape_cast %67 : vector<1x4x128xbf16> to vector<4x128xbf16>
    %cst_56 = arith.constant dense<0.000000e+00> : vector<64x128xf32>
    %69 = tpu.matmul %66, %68, %cst_56 {dimension_numbers = #tpu.dot_dimension_numbers<[1], [0], [0], [1], [0, 0, 1, 1], [], []>} : vector<64x4xbf16>, vector<4x128xbf16>, vector<64x128xf32> -> vector<64x128xf32>
    %70 = arith.addf %64, %69 : vector<64x128xf32>
    %c30_57 = arith.constant 30 : index
    %c0_58 = arith.constant 0 : index
    %c0_59 = arith.constant 0 : index
    %71 = vector.load %arg7[%c30_57, %c0_58, %c0_59] : memref<40x10x4xbf16, #tpu.memory_space<vmem>>, vector<8x8x4xbf16>
    %72 = vector.shape_cast %71 : vector<8x8x4xbf16> to vector<64x4xbf16>
    %c4 = arith.constant 4 : index
    %c0_60 = arith.constant 0 : index
    %c0_61 = arith.constant 0 : index
    %73 = vector.load %arg4[%c4, %c0_60, %c0_61] : memref<9x4x128xbf16, #tpu.memory_space<vmem>>, vector<1x4x128xbf16>
    %74 = vector.shape_cast %73 : vector<1x4x128xbf16> to vector<4x128xbf16>
    %cst_62 = arith.constant dense<0.000000e+00> : vector<64x128xf32>
    %75 = tpu.matmul %72, %74, %cst_62 {dimension_numbers = #tpu.dot_dimension_numbers<[1], [0], [0], [1], [0, 0, 1, 1], [], []>} : vector<64x4xbf16>, vector<4x128xbf16>, vector<64x128xf32> -> vector<64x128xf32>
    %76 = arith.addf %70, %75 : vector<64x128xf32>
    %c20_63 = arith.constant 20 : index
    %c1_64 = arith.constant 1 : index
    %c0_65 = arith.constant 0 : index
    %77 = vector.load %arg7[%c20_63, %c1_64, %c0_65] : memref<40x10x4xbf16, #tpu.memory_space<vmem>>, vector<8x8x4xbf16>
    %78 = vector.shape_cast %77 : vector<8x8x4xbf16> to vector<64x4xbf16>
    %c5 = arith.constant 5 : index
    %c0_66 = arith.constant 0 : index
    %c0_67 = arith.constant 0 : index
    %79 = vector.load %arg4[%c5, %c0_66, %c0_67] : memref<9x4x128xbf16, #tpu.memory_space<vmem>>, vector<1x4x128xbf16>
    %80 = vector.shape_cast %79 : vector<1x4x128xbf16> to vector<4x128xbf16>
    %cst_68 = arith.constant dense<0.000000e+00> : vector<64x128xf32>
    %81 = tpu.matmul %78, %80, %cst_68 {dimension_numbers = #tpu.dot_dimension_numbers<[1], [0], [0], [1], [0, 0, 1, 1], [], []>} : vector<64x4xbf16>, vector<4x128xbf16>, vector<64x128xf32> -> vector<64x128xf32>
    %82 = arith.addf %76, %81 : vector<64x128xf32>
    %c1_69 = arith.constant 1 : index
    %c0_70 = arith.constant 0 : index
    %c0_71 = arith.constant 0 : index
    %83 = vector.load %arg7[%c1_69, %c0_70, %c0_71] : memref<40x10x4xbf16, #tpu.memory_space<vmem>>, vector<8x8x4xbf16>
    %84 = vector.shape_cast %83 : vector<8x8x4xbf16> to vector<64x4xbf16>
    %c6 = arith.constant 6 : index
    %c0_72 = arith.constant 0 : index
    %c0_73 = arith.constant 0 : index
    %85 = vector.load %arg4[%c6, %c0_72, %c0_73] : memref<9x4x128xbf16, #tpu.memory_space<vmem>>, vector<1x4x128xbf16>
    %86 = vector.shape_cast %85 : vector<1x4x128xbf16> to vector<4x128xbf16>
    %cst_74 = arith.constant dense<0.000000e+00> : vector<64x128xf32>
    %87 = tpu.matmul %84, %86, %cst_74 {dimension_numbers = #tpu.dot_dimension_numbers<[1], [0], [0], [1], [0, 0, 1, 1], [], []>} : vector<64x4xbf16>, vector<4x128xbf16>, vector<64x128xf32> -> vector<64x128xf32>
    %88 = arith.addf %82, %87 : vector<64x128xf32>
    %c11_75 = arith.constant 11 : index
    %c0_76 = arith.constant 0 : index
    %c0_77 = arith.constant 0 : index
    %89 = vector.load %arg7[%c11_75, %c0_76, %c0_77] : memref<40x10x4xbf16, #tpu.memory_space<vmem>>, vector<8x8x4xbf16>
    %90 = vector.shape_cast %89 : vector<8x8x4xbf16> to vector<64x4xbf16>
    %c7 = arith.constant 7 : index
    %c0_78 = arith.constant 0 : index
    %c0_79 = arith.constant 0 : index
    %91 = vector.load %arg4[%c7, %c0_78, %c0_79] : memref<9x4x128xbf16, #tpu.memory_space<vmem>>, vector<1x4x128xbf16>
    %92 = vector.shape_cast %91 : vector<1x4x128xbf16> to vector<4x128xbf16>
    %cst_80 = arith.constant dense<0.000000e+00> : vector<64x128xf32>
    %93 = tpu.matmul %90, %92, %cst_80 {dimension_numbers = #tpu.dot_dimension_numbers<[1], [0], [0], [1], [0, 0, 1, 1], [], []>} : vector<64x4xbf16>, vector<4x128xbf16>, vector<64x128xf32> -> vector<64x128xf32>
    %94 = arith.addf %88, %93 : vector<64x128xf32>
    %c1_81 = arith.constant 1 : index
    %c1_82 = arith.constant 1 : index
    %c0_83 = arith.constant 0 : index
    %95 = vector.load %arg7[%c1_81, %c1_82, %c0_83] : memref<40x10x4xbf16, #tpu.memory_space<vmem>>, vector<8x8x4xbf16>
    %96 = vector.shape_cast %95 : vector<8x8x4xbf16> to vector<64x4xbf16>
    %c8_84 = arith.constant 8 : index
    %c0_85 = arith.constant 0 : index
    %c0_86 = arith.constant 0 : index
    %97 = vector.load %arg4[%c8_84, %c0_85, %c0_86] : memref<9x4x128xbf16, #tpu.memory_space<vmem>>, vector<1x4x128xbf16>
    %98 = vector.shape_cast %97 : vector<1x4x128xbf16> to vector<4x128xbf16>
    %cst_87 = arith.constant dense<0.000000e+00> : vector<64x128xf32>
    %99 = tpu.matmul %96, %98, %cst_87 {dimension_numbers = #tpu.dot_dimension_numbers<[1], [0], [0], [1], [0, 0, 1, 1], [], []>} : vector<64x4xbf16>, vector<4x128xbf16>, vector<64x128xf32> -> vector<64x128xf32>
    %100 = arith.addf %94, %99 : vector<64x128xf32>
    %c0_88 = arith.constant 0 : index
    %c0_89 = arith.constant 0 : index
    %101 = vector.load %arg5[%c0_88, %c0_89] : memref<1x128xf32, #tpu.memory_space<vmem>>, vector<1x128xf32>
    %102 = vector.broadcast %101 : vector<1x128xf32> to vector<64x128xf32>
    %103 = arith.addf %100, %102 : vector<64x128xf32>
    %cst_90 = arith.constant 0.000000e+00 : f32
    %104 = vector.broadcast %cst_90 : f32 to vector<64x128xf32>
    %105 = arith.maximumf %103, %104 : vector<64x128xf32>
    %106 = vector.shape_cast %105 : vector<64x128xf32> to vector<1x8x8x128xf32>
    %107 = arith.truncf %106 : vector<1x8x8x128xf32> to vector<1x8x8x128xbf16>
    %c0_91 = arith.constant 0 : index
    %c0_92 = arith.constant 0 : index
    %c0_93 = arith.constant 0 : index
    %c0_94 = arith.constant 0 : index
    %108 = vector.load %arg6[%c0_91, %c0_92, %c0_93, %c0_94] : memref<1x8x8x128xbf16, #tpu.memory_space<vmem>>, vector<1x8x8x128xbf16>
    tpu.vector_store %arg6[%c0_91, %c0_92, %c0_93, %c0_94], %107 {strides = array<i32>} : memref<1x8x8x128xbf16, #tpu.memory_space<vmem>>, vector<1x8x8x128xbf16>,
    return
  }
  func.func @transform_0(%arg0: i32) -> (i32, i32, i32, i32) {
    %c0_i32 = arith.constant 0 : i32
    %c0_i32_0 = arith.constant 0 : i32
    %c0_i32_1 = arith.constant 0 : i32
    %c0_i32_2 = arith.constant 0 : i32
    return %arg0, %c0_i32, %c0_i32_0, %c0_i32_1 : i32, i32, i32, i32
  }
  func.func @transform_1(%arg0: i32) -> (i32, i32) {
    %c0_i32 = arith.constant 0 : i32
    %c0_i32_0 = arith.constant 0 : i32
    %c0_i32_1 = arith.constant 0 : i32
    return %c0_i32, %c0_i32_0 : i32, i32
  }
  func.func @transform_2(%arg0: i32) -> (i32, i32) {
    %c0_i32 = arith.constant 0 : i32
    %c0_i32_0 = arith.constant 0 : i32
    %c0_i32_1 = arith.constant 0 : i32
    return %c0_i32, %c0_i32_0 : i32, i32
  }
  func.func @transform_3(%arg0: i32) -> (i32, i32, i32) {
    %c0_i32 = arith.constant 0 : i32
    %c0_i32_0 = arith.constant 0 : i32
    %c0_i32_1 = arith.constant 0 : i32
    %c0_i32_2 = arith.constant 0 : i32
    return %c0_i32, %c0_i32_0, %c0_i32_1 : i32, i32, i32
  }
  func.func @transform_4(%arg0: i32) -> (i32, i32) {
    %c0_i32 = arith.constant 0 : i32
    %c0_i32_0 = arith.constant 0 : i32
    %c0_i32_1 = arith.constant 0 : i32
    return %c0_i32, %c0_i32_0 : i32, i32
  }
  func.func @transform_5(%arg0: i32) -> (i32, i32, i32, i32) {
    %c0_i32 = arith.constant 0 : i32
    %c0_i32_0 = arith.constant 0 : i32
    %c0_i32_1 = arith.constant 0 : i32
    %c0_i32_2 = arith.constant 0 : i32
    return %arg0, %c0_i32, %c0_i32_0, %c0_i32_1 : i32, i32, i32, i32
  }
}

module attributes {stable_mosaic.version = 11 : i64} {
  func.func @kernel(%arg0: i32, %arg1: memref<1x8x8x128xbf16, #tpu.memory_space<vmem>>, %arg2: memref<9x128x128xbf16, #tpu.memory_space<vmem>>, %arg3: memref<1x8x8x4xf32, #tpu.memory_space<vmem>>, %arg4: memref<1x4xf32, #tpu.memory_space<vmem>>, %arg5: memref<1x4xf32, #tpu.memory_space<vmem>>, %arg6: memref<4x128xbf16, #tpu.memory_space<vmem>>, %arg7: memref<1x8x8x128xf32, #tpu.memory_space<vmem>>, %arg8: memref<10x10x128xbf16, #tpu.memory_space<vmem>>) attributes {dimension_semantics = [#tpu.dimension_semantics<parallel>], iteration_bounds = array<i64: 2>, scalar_prefetch = 0 : i64, scratch_operands = 1 : i64, tpu.core_type = #tpu.core_type<tc>, window_params = [{transform_indices = @transform_0, window_bounds = array<i64: 1, 8, 8, 128>}, {pipeline_mode = #tpu.pipeline_mode<synchronous>, transform_indices = @transform_1, window_bounds = array<i64: 9, 128, 128>}, {transform_indices = @transform_2, window_bounds = array<i64: 1, 8, 8, 4>}, {pipeline_mode = #tpu.pipeline_mode<synchronous>, transform_indices = @transform_3, window_bounds = array<i64: 1, 4>}, {pipeline_mode = #tpu.pipeline_mode<synchronous>, transform_indices = @transform_4, window_bounds = array<i64: 1, 4>}, {pipeline_mode = #tpu.pipeline_mode<synchronous>, transform_indices = @transform_5, window_bounds = array<i64: 4, 128>}, {transform_indices = @transform_6, window_bounds = array<i64: 1, 8, 8, 128>}]} {
    %cst = arith.constant 0.000000e+00 : bf16
    %0 = vector.broadcast %cst : bf16 to vector<10x10x128xbf16>
    %c0 = arith.constant 0 : index
    %c0_0 = arith.constant 0 : index
    %c0_1 = arith.constant 0 : index
    %1 = vector.load %arg8[%c0, %c0_0, %c0_1] : memref<10x10x128xbf16, #tpu.memory_space<vmem>>, vector<10x10x128xbf16>
    tpu.vector_store %arg8[%c0, %c0_0, %c0_1], %0 {strides = array<i32>} : memref<10x10x128xbf16, #tpu.memory_space<vmem>>, vector<10x10x128xbf16>,
    %c0_2 = arith.constant 0 : index
    %c0_3 = arith.constant 0 : index
    %c0_4 = arith.constant 0 : index
    %c0_5 = arith.constant 0 : index
    %2 = vector.load %arg1[%c0_2, %c0_3, %c0_4, %c0_5] : memref<1x8x8x128xbf16, #tpu.memory_space<vmem>>, vector<1x8x8x128xbf16>
    %3 = vector.shape_cast %2 : vector<1x8x8x128xbf16> to vector<8x8x128xbf16>
    %c1 = arith.constant 1 : index
    %c1_6 = arith.constant 1 : index
    %c0_7 = arith.constant 0 : index
    %4 = vector.load %arg8[%c1, %c1_6, %c0_7] : memref<10x10x128xbf16, #tpu.memory_space<vmem>>, vector<8x8x128xbf16>
    tpu.vector_store %arg8[%c1, %c1_6, %c0_7], %3 {strides = array<i32>} : memref<10x10x128xbf16, #tpu.memory_space<vmem>>, vector<8x8x128xbf16>,
    %cst_8 = arith.constant 0.000000e+00 : f32
    %5 = vector.broadcast %cst_8 : f32 to vector<64x128xf32>
    %c0_9 = arith.constant 0 : index
    %c0_10 = arith.constant 0 : index
    %c0_11 = arith.constant 0 : index
    %6 = vector.load %arg8[%c0_9, %c0_10, %c0_11] : memref<10x10x128xbf16, #tpu.memory_space<vmem>>, vector<8x8x128xbf16>
    %7 = vector.shape_cast %6 : vector<8x8x128xbf16> to vector<64x128xbf16>
    %c0_12 = arith.constant 0 : index
    %c0_13 = arith.constant 0 : index
    %c0_14 = arith.constant 0 : index
    %8 = vector.load %arg2[%c0_12, %c0_13, %c0_14] : memref<9x128x128xbf16, #tpu.memory_space<vmem>>, vector<1x128x128xbf16>
    %9 = vector.shape_cast %8 : vector<1x128x128xbf16> to vector<128x128xbf16>
    %cst_15 = arith.constant dense<0.000000e+00> : vector<64x128xf32>
    %10 = tpu.matmul %7, %9, %cst_15 {dimension_numbers = #tpu.dot_dimension_numbers<[1], [0], [0], [1], [0, 0, 1, 1], [], []>} : vector<64x128xbf16>, vector<128x128xbf16>, vector<64x128xf32> -> vector<64x128xf32>
    %11 = arith.addf %5, %10 : vector<64x128xf32>
    %c0_16 = arith.constant 0 : index
    %c1_17 = arith.constant 1 : index
    %c0_18 = arith.constant 0 : index
    %12 = vector.load %arg8[%c0_16, %c1_17, %c0_18] : memref<10x10x128xbf16, #tpu.memory_space<vmem>>, vector<8x8x128xbf16>
    %13 = vector.shape_cast %12 : vector<8x8x128xbf16> to vector<64x128xbf16>
    %c1_19 = arith.constant 1 : index
    %c0_20 = arith.constant 0 : index
    %c0_21 = arith.constant 0 : index
    %14 = vector.load %arg2[%c1_19, %c0_20, %c0_21] : memref<9x128x128xbf16, #tpu.memory_space<vmem>>, vector<1x128x128xbf16>
    %15 = vector.shape_cast %14 : vector<1x128x128xbf16> to vector<128x128xbf16>
    %cst_22 = arith.constant dense<0.000000e+00> : vector<64x128xf32>
    %16 = tpu.matmul %13, %15, %cst_22 {dimension_numbers = #tpu.dot_dimension_numbers<[1], [0], [0], [1], [0, 0, 1, 1], [], []>} : vector<64x128xbf16>, vector<128x128xbf16>, vector<64x128xf32> -> vector<64x128xf32>
    %17 = arith.addf %11, %16 : vector<64x128xf32>
    %c0_23 = arith.constant 0 : index
    %c2 = arith.constant 2 : index
    %c0_24 = arith.constant 0 : index
    %18 = vector.load %arg8[%c0_23, %c2, %c0_24] : memref<10x10x128xbf16, #tpu.memory_space<vmem>>, vector<8x8x128xbf16>
    %19 = vector.shape_cast %18 : vector<8x8x128xbf16> to vector<64x128xbf16>
    %c2_25 = arith.constant 2 : index
    %c0_26 = arith.constant 0 : index
    %c0_27 = arith.constant 0 : index
    %20 = vector.load %arg2[%c2_25, %c0_26, %c0_27] : memref<9x128x128xbf16, #tpu.memory_space<vmem>>, vector<1x128x128xbf16>
    %21 = vector.shape_cast %20 : vector<1x128x128xbf16> to vector<128x128xbf16>
    %cst_28 = arith.constant dense<0.000000e+00> : vector<64x128xf32>
    %22 = tpu.matmul %19, %21, %cst_28 {dimension_numbers = #tpu.dot_dimension_numbers<[1], [0], [0], [1], [0, 0, 1, 1], [], []>} : vector<64x128xbf16>, vector<128x128xbf16>, vector<64x128xf32> -> vector<64x128xf32>
    %23 = arith.addf %17, %22 : vector<64x128xf32>
    %c1_29 = arith.constant 1 : index
    %c0_30 = arith.constant 0 : index
    %c0_31 = arith.constant 0 : index
    %24 = vector.load %arg8[%c1_29, %c0_30, %c0_31] : memref<10x10x128xbf16, #tpu.memory_space<vmem>>, vector<8x8x128xbf16>
    %25 = vector.shape_cast %24 : vector<8x8x128xbf16> to vector<64x128xbf16>
    %c3 = arith.constant 3 : index
    %c0_32 = arith.constant 0 : index
    %c0_33 = arith.constant 0 : index
    %26 = vector.load %arg2[%c3, %c0_32, %c0_33] : memref<9x128x128xbf16, #tpu.memory_space<vmem>>, vector<1x128x128xbf16>
    %27 = vector.shape_cast %26 : vector<1x128x128xbf16> to vector<128x128xbf16>
    %cst_34 = arith.constant dense<0.000000e+00> : vector<64x128xf32>
    %28 = tpu.matmul %25, %27, %cst_34 {dimension_numbers = #tpu.dot_dimension_numbers<[1], [0], [0], [1], [0, 0, 1, 1], [], []>} : vector<64x128xbf16>, vector<128x128xbf16>, vector<64x128xf32> -> vector<64x128xf32>
    %29 = arith.addf %23, %28 : vector<64x128xf32>
    %c1_35 = arith.constant 1 : index
    %c1_36 = arith.constant 1 : index
    %c0_37 = arith.constant 0 : index
    %30 = vector.load %arg8[%c1_35, %c1_36, %c0_37] : memref<10x10x128xbf16, #tpu.memory_space<vmem>>, vector<8x8x128xbf16>
    %31 = vector.shape_cast %30 : vector<8x8x128xbf16> to vector<64x128xbf16>
    %c4 = arith.constant 4 : index
    %c0_38 = arith.constant 0 : index
    %c0_39 = arith.constant 0 : index
    %32 = vector.load %arg2[%c4, %c0_38, %c0_39] : memref<9x128x128xbf16, #tpu.memory_space<vmem>>, vector<1x128x128xbf16>
    %33 = vector.shape_cast %32 : vector<1x128x128xbf16> to vector<128x128xbf16>
    %cst_40 = arith.constant dense<0.000000e+00> : vector<64x128xf32>
    %34 = tpu.matmul %31, %33, %cst_40 {dimension_numbers = #tpu.dot_dimension_numbers<[1], [0], [0], [1], [0, 0, 1, 1], [], []>} : vector<64x128xbf16>, vector<128x128xbf16>, vector<64x128xf32> -> vector<64x128xf32>
    %35 = arith.addf %29, %34 : vector<64x128xf32>
    %c1_41 = arith.constant 1 : index
    %c2_42 = arith.constant 2 : index
    %c0_43 = arith.constant 0 : index
    %36 = vector.load %arg8[%c1_41, %c2_42, %c0_43] : memref<10x10x128xbf16, #tpu.memory_space<vmem>>, vector<8x8x128xbf16>
    %37 = vector.shape_cast %36 : vector<8x8x128xbf16> to vector<64x128xbf16>
    %c5 = arith.constant 5 : index
    %c0_44 = arith.constant 0 : index
    %c0_45 = arith.constant 0 : index
    %38 = vector.load %arg2[%c5, %c0_44, %c0_45] : memref<9x128x128xbf16, #tpu.memory_space<vmem>>, vector<1x128x128xbf16>
    %39 = vector.shape_cast %38 : vector<1x128x128xbf16> to vector<128x128xbf16>
    %cst_46 = arith.constant dense<0.000000e+00> : vector<64x128xf32>
    %40 = tpu.matmul %37, %39, %cst_46 {dimension_numbers = #tpu.dot_dimension_numbers<[1], [0], [0], [1], [0, 0, 1, 1], [], []>} : vector<64x128xbf16>, vector<128x128xbf16>, vector<64x128xf32> -> vector<64x128xf32>
    %41 = arith.addf %35, %40 : vector<64x128xf32>
    %c2_47 = arith.constant 2 : index
    %c0_48 = arith.constant 0 : index
    %c0_49 = arith.constant 0 : index
    %42 = vector.load %arg8[%c2_47, %c0_48, %c0_49] : memref<10x10x128xbf16, #tpu.memory_space<vmem>>, vector<8x8x128xbf16>
    %43 = vector.shape_cast %42 : vector<8x8x128xbf16> to vector<64x128xbf16>
    %c6 = arith.constant 6 : index
    %c0_50 = arith.constant 0 : index
    %c0_51 = arith.constant 0 : index
    %44 = vector.load %arg2[%c6, %c0_50, %c0_51] : memref<9x128x128xbf16, #tpu.memory_space<vmem>>, vector<1x128x128xbf16>
    %45 = vector.shape_cast %44 : vector<1x128x128xbf16> to vector<128x128xbf16>
    %cst_52 = arith.constant dense<0.000000e+00> : vector<64x128xf32>
    %46 = tpu.matmul %43, %45, %cst_52 {dimension_numbers = #tpu.dot_dimension_numbers<[1], [0], [0], [1], [0, 0, 1, 1], [], []>} : vector<64x128xbf16>, vector<128x128xbf16>, vector<64x128xf32> -> vector<64x128xf32>
    %47 = arith.addf %41, %46 : vector<64x128xf32>
    %c2_53 = arith.constant 2 : index
    %c1_54 = arith.constant 1 : index
    %c0_55 = arith.constant 0 : index
    %48 = vector.load %arg8[%c2_53, %c1_54, %c0_55] : memref<10x10x128xbf16, #tpu.memory_space<vmem>>, vector<8x8x128xbf16>
    %49 = vector.shape_cast %48 : vector<8x8x128xbf16> to vector<64x128xbf16>
    %c7 = arith.constant 7 : index
    %c0_56 = arith.constant 0 : index
    %c0_57 = arith.constant 0 : index
    %50 = vector.load %arg2[%c7, %c0_56, %c0_57] : memref<9x128x128xbf16, #tpu.memory_space<vmem>>, vector<1x128x128xbf16>
    %51 = vector.shape_cast %50 : vector<1x128x128xbf16> to vector<128x128xbf16>
    %cst_58 = arith.constant dense<0.000000e+00> : vector<64x128xf32>
    %52 = tpu.matmul %49, %51, %cst_58 {dimension_numbers = #tpu.dot_dimension_numbers<[1], [0], [0], [1], [0, 0, 1, 1], [], []>} : vector<64x128xbf16>, vector<128x128xbf16>, vector<64x128xf32> -> vector<64x128xf32>
    %53 = arith.addf %47, %52 : vector<64x128xf32>
    %c2_59 = arith.constant 2 : index
    %c2_60 = arith.constant 2 : index
    %c0_61 = arith.constant 0 : index
    %54 = vector.load %arg8[%c2_59, %c2_60, %c0_61] : memref<10x10x128xbf16, #tpu.memory_space<vmem>>, vector<8x8x128xbf16>
    %55 = vector.shape_cast %54 : vector<8x8x128xbf16> to vector<64x128xbf16>
    %c8 = arith.constant 8 : index
    %c0_62 = arith.constant 0 : index
    %c0_63 = arith.constant 0 : index
    %56 = vector.load %arg2[%c8, %c0_62, %c0_63] : memref<9x128x128xbf16, #tpu.memory_space<vmem>>, vector<1x128x128xbf16>
    %57 = vector.shape_cast %56 : vector<1x128x128xbf16> to vector<128x128xbf16>
    %cst_64 = arith.constant dense<0.000000e+00> : vector<64x128xf32>
    %58 = tpu.matmul %55, %57, %cst_64 {dimension_numbers = #tpu.dot_dimension_numbers<[1], [0], [0], [1], [0, 0, 1, 1], [], []>} : vector<64x128xbf16>, vector<128x128xbf16>, vector<64x128xf32> -> vector<64x128xf32>
    %59 = arith.addf %53, %58 : vector<64x128xf32>
    %c0_65 = arith.constant 0 : index
    %c0_66 = arith.constant 0 : index
    %c0_67 = arith.constant 0 : index
    %c0_68 = arith.constant 0 : index
    %60 = vector.load %arg3[%c0_65, %c0_66, %c0_67, %c0_68] : memref<1x8x8x4xf32, #tpu.memory_space<vmem>>, vector<1x8x8x4xf32>
    %61 = vector.shape_cast %60 : vector<1x8x8x4xf32> to vector<8x8x4xf32>
    %c0_69 = arith.constant 0 : index
    %c0_70 = arith.constant 0 : index
    %62 = vector.load %arg4[%c0_69, %c0_70] : memref<1x4xf32, #tpu.memory_space<vmem>>, vector<1x4xf32>
    %63 = vector.shape_cast %62 : vector<1x4xf32> to vector<1x1x4xf32>
    %64 = vector.broadcast %63 : vector<1x1x4xf32> to vector<8x8x4xf32>
    %65 = arith.mulf %61, %64 : vector<8x8x4xf32>
    %c0_71 = arith.constant 0 : index
    %c0_72 = arith.constant 0 : index
    %66 = vector.load %arg5[%c0_71, %c0_72] : memref<1x4xf32, #tpu.memory_space<vmem>>, vector<1x4xf32>
    %67 = vector.shape_cast %66 : vector<1x4xf32> to vector<1x1x4xf32>
    %68 = vector.broadcast %67 : vector<1x1x4xf32> to vector<8x8x4xf32>
    %69 = arith.addf %65, %68 : vector<8x8x4xf32>
    %cst_73 = arith.constant 0.000000e+00 : f32
    %70 = vector.broadcast %cst_73 : f32 to vector<8x8x4xf32>
    %71 = arith.maximumf %69, %70 : vector<8x8x4xf32>
    %72 = vector.shape_cast %71 : vector<8x8x4xf32> to vector<64x4xf32>
    %73 = arith.truncf %72 : vector<64x4xf32> to vector<64x4xbf16>
    %c0_74 = arith.constant 0 : index
    %c0_75 = arith.constant 0 : index
    %74 = vector.load %arg6[%c0_74, %c0_75] : memref<4x128xbf16, #tpu.memory_space<vmem>>, vector<4x128xbf16>
    %cst_76 = arith.constant dense<0.000000e+00> : vector<64x128xf32>
    %75 = tpu.matmul %73, %74, %cst_76 {dimension_numbers = #tpu.dot_dimension_numbers<[1], [0], [0], [1], [0, 0, 1, 1], [], []>} : vector<64x4xbf16>, vector<4x128xbf16>, vector<64x128xf32> -> vector<64x128xf32>
    %76 = arith.addf %59, %75 : vector<64x128xf32>
    %77 = vector.shape_cast %76 : vector<64x128xf32> to vector<1x8x8x128xf32>
    %c0_77 = arith.constant 0 : index
    %c0_78 = arith.constant 0 : index
    %c0_79 = arith.constant 0 : index
    %c0_80 = arith.constant 0 : index
    %78 = vector.load %arg7[%c0_77, %c0_78, %c0_79, %c0_80] : memref<1x8x8x128xf32, #tpu.memory_space<vmem>>, vector<1x8x8x128xf32>
    tpu.vector_store %arg7[%c0_77, %c0_78, %c0_79, %c0_80], %77 {strides = array<i32>} : memref<1x8x8x128xf32, #tpu.memory_space<vmem>>, vector<1x8x8x128xf32>,
    return
  }
  func.func @transform_0(%arg0: i32) -> (i32, i32, i32, i32) {
    %c0_i32 = arith.constant 0 : i32
    %c0_i32_0 = arith.constant 0 : i32
    %c0_i32_1 = arith.constant 0 : i32
    %c0_i32_2 = arith.constant 0 : i32
    return %arg0, %c0_i32, %c0_i32_0, %c0_i32_1 : i32, i32, i32, i32
  }
  func.func @transform_1(%arg0: i32) -> (i32, i32, i32) {
    %c0_i32 = arith.constant 0 : i32
    %c0_i32_0 = arith.constant 0 : i32
    %c0_i32_1 = arith.constant 0 : i32
    %c0_i32_2 = arith.constant 0 : i32
    return %c0_i32, %c0_i32_0, %c0_i32_1 : i32, i32, i32
  }
  func.func @transform_2(%arg0: i32) -> (i32, i32, i32, i32) {
    %c0_i32 = arith.constant 0 : i32
    %c0_i32_0 = arith.constant 0 : i32
    %c0_i32_1 = arith.constant 0 : i32
    %c0_i32_2 = arith.constant 0 : i32
    return %arg0, %c0_i32, %c0_i32_0, %c0_i32_1 : i32, i32, i32, i32
  }
  func.func @transform_3(%arg0: i32) -> (i32, i32) {
    %c0_i32 = arith.constant 0 : i32
    %c0_i32_0 = arith.constant 0 : i32
    %c0_i32_1 = arith.constant 0 : i32
    return %c0_i32, %c0_i32_0 : i32, i32
  }
  func.func @transform_4(%arg0: i32) -> (i32, i32) {
    %c0_i32 = arith.constant 0 : i32
    %c0_i32_0 = arith.constant 0 : i32
    %c0_i32_1 = arith.constant 0 : i32
    return %c0_i32, %c0_i32_0 : i32, i32
  }
  func.func @transform_5(%arg0: i32) -> (i32, i32) {
    %c0_i32 = arith.constant 0 : i32
    %c0_i32_0 = arith.constant 0 : i32
    %c0_i32_1 = arith.constant 0 : i32
    return %c0_i32, %c0_i32_0 : i32, i32
  }
  func.func @transform_6(%arg0: i32) -> (i32, i32, i32, i32) {
    %c0_i32 = arith.constant 0 : i32
    %c0_i32_0 = arith.constant 0 : i32
    %c0_i32_1 = arith.constant 0 : i32
    %c0_i32_2 = arith.constant 0 : i32
    return %arg0, %c0_i32, %c0_i32_0, %c0_i32_1 : i32, i32, i32, i32
  }
}

</mosaic_0001>

<llo_original>
// kernel: basic_block_forward.2
$region0: #{basic_block_forward.2}
  #allocation0 [shape = 'u32[]', space=smem, size = 0x4, offset = 0x4, fixed_abs, tag = 'smem constant byte address 0x4 - core index']
  #allocation1 [shape = 'u32[144,128]{1,0:T(1,128)}', space=vmem, size = 0x12000, scoped, tag = 'internal scratch']
  #allocation2 [shape = 'bf16[40,10,4]{2,1,0:T(8,128)(2,1)}', space=vmem, size = 0x28000, scoped, tag = 'scratch operand']
  %s0 = inlined_call_operand.vmem [shape: f32[2,32,8,4], index: 0, kind: input, shape index: {}]
  %s1 = inlined_call_operand.vmem [shape: f32[1,4], index: 1, kind: input, shape index: {}]
  %s2 = inlined_call_operand.vmem [shape: f32[1,4], index: 2, kind: input, shape index: {}]
  %s3 = inlined_call_operand.vmem [shape: bf16[9,4,128], index: 3, kind: input, shape index: {}]
  %s4 = inlined_call_operand.vmem [shape: f32[1,128], index: 4, kind: input, shape index: {}]
  %s5 = inlined_call_operand.vmem [shape: bf16[2,8,8,128], index: 5, kind: output, shape index: {}]
  %s6 = sld [smem:[#allocation0]]
  $region53: #{basic_block_forward.2} parent=0
    _
  %s8 = ssub.s32 1, %s6
  %s9 = scalar_select 0, %s8, %s6
  loop: start=0, step=1, limit=4
  $region2: #{basic_block_forward.2} parent=0 // loop_pre_header
    _
  $region3: #{basic_block_forward.2} parent=0 // loop_header
    %s11 = sphi 0, %s15
    %p12 = scmp.ge.s32.totalorder %s11, 4
    %s21 = sphi 0, %s23
    %s24 = sphi 0, %s21
    %s25 = sphi 0, %s24
    %s41 = sphi 0, %s25
    %s45 = sphi 0, %s45
    %s47 = sphi 0, %s45
    %s48 = sphi 0, %s47
    %s62 = sphi 0, %s48
    %s66 = sphi 0, %s66
    %s68 = sphi 0, %s66
    %s69 = sphi 0, %s68
    %s83 = sphi 0, %s69
    %s87 = sphi 0, %s87
    %s89 = sphi 0, %s87
    %s90 = sphi 0, %s89
    %s104 = sphi 0, %s90
    %s108 = sphi 0, %s108
    %s110 = sphi 0, %s108
    %s111 = sphi 0, %s110
    %s125 = sphi 0, %s111
    %s131 = sphi 0, %s133
    %s134 = sphi 0, %s131
    %s135 = sphi 0, %s134
    %s151 = sphi 0, %s135
  $region4: #{basic_block_forward.2} parent=0 // loop_header_branch
    %14 = sbr.rel (%p12) target = $region8
  $region5: #{basic_block_forward.2} parent=0 // loop_body
    %s16 = ssub.s32 %s11, 1
    %s17 = ssub.s32 %s11, 2
    %s18 = sadd.s32 %s11, 1
    %s19 = ssub.s32 %s11, %s18
    %p20 = scmp.eq.s32.totalorder %s19, 0
    %s22 = sadd.s32 %s21, 1
    %s23 = scalar_select %p20, %s21, %s22
    %p26 = pneg %p20
    %p27 = scmp.eq.s32.totalorder %s11, 1
    %p28 = por %p26, %p27
    %p29 = scmp.ne.s32.totalorder %s21, %s24
    %p30 = scmp.eq.s32.totalorder %s11, 0
    %p31 = por %p29, %p30
    %p32 = scmp.ne.s32.totalorder %s21, %s24
    %p33 = scmp.eq.s32.totalorder %s16, 1
    %p34 = por %p32, %p33
    %p35 = scmp.ne.s32.totalorder %s24, %s25
    %p36 = scmp.eq.s32.totalorder %s16, 0
    %p37 = por %p35, %p36
    %p38 = scmp.ne.s32.totalorder %s24, %s25
    %p39 = scmp.eq.s32.totalorder %s17, 1
    %p40 = por %p38, %p39
    %p42 = scmp.ne.s32.totalorder %s25, %s41
    %p43 = scmp.eq.s32.totalorder %s17, 0
    %p44 = por %p42, %p43
    %s46 = sadd.s32 %s45, 1
    %p49 = scmp.eq.s32.totalorder %s11, 1
    %p50 = scmp.ne.s32.totalorder %s45, %s47
    %p51 = scmp.eq.s32.totalorder %s11, 0
    %p52 = por %p50, %p51
    %p53 = scmp.ne.s32.totalorder %s45, %s47
    %p54 = scmp.eq.s32.totalorder %s16, 1
    %p55 = por %p53, %p54
    %p56 = scmp.ne.s32.totalorder %s47, %s48
    %p57 = scmp.eq.s32.totalorder %s16, 0
    %p58 = por %p56, %p57
    %p59 = scmp.ne.s32.totalorder %s47, %s48
    %p60 = scmp.eq.s32.totalorder %s17, 1
    %p61 = por %p59, %p60
    %p63 = scmp.ne.s32.totalorder %s48, %s62
    %p64 = scmp.eq.s32.totalorder %s17, 0
    %p65 = por %p63, %p64
    %s67 = sadd.s32 %s66, 1
    %p70 = scmp.eq.s32.totalorder %s11, 1
    %p71 = scmp.ne.s32.totalorder %s66, %s68
    %p72 = scmp.eq.s32.totalorder %s11, 0
    %p73 = por %p71, %p72
    %p74 = scmp.ne.s32.totalorder %s66, %s68
    %p75 = scmp.eq.s32.totalorder %s16, 1
    %p76 = por %p74, %p75
    %p77 = scmp.ne.s32.totalorder %s68, %s69
    %p78 = scmp.eq.s32.totalorder %s16, 0
    %p79 = por %p77, %p78
    %p80 = scmp.ne.s32.totalorder %s68, %s69
    %p81 = scmp.eq.s32.totalorder %s17, 1
    %p82 = por %p80, %p81
    %p84 = scmp.ne.s32.totalorder %s69, %s83
    %p85 = scmp.eq.s32.totalorder %s17, 0
    %p86 = por %p84, %p85
    %s88 = sadd.s32 %s87, 1
    %p91 = scmp.eq.s32.totalorder %s11, 1
    %p92 = scmp.ne.s32.totalorder %s87, %s89
    %p93 = scmp.eq.s32.totalorder %s11, 0
    %p94 = por %p92, %p93
    %p95 = scmp.ne.s32.totalorder %s87, %s89
    %p96 = scmp.eq.s32.totalorder %s16, 1
    %p97 = por %p95, %p96
    %p98 = scmp.ne.s32.totalorder %s89, %s90
    %p99 = scmp.eq.s32.totalorder %s16, 0
    %p100 = por %p98, %p99
    %p101 = scmp.ne.s32.totalorder %s89, %s90
    %p102 = scmp.eq.s32.totalorder %s17, 1
    %p103 = por %p101, %p102
    %p105 = scmp.ne.s32.totalorder %s90, %s104
    %p106 = scmp.eq.s32.totalorder %s17, 0
    %p107 = por %p105, %p106
    %s109 = sadd.s32 %s108, 1
    %p112 = scmp.eq.s32.totalorder %s11, 1
    %p113 = scmp.ne.s32.totalorder %s108, %s110
    %p114 = scmp.eq.s32.totalorder %s11, 0
    %p115 = por %p113, %p114
    %p116 = scmp.ne.s32.totalorder %s108, %s110
    %p117 = scmp.eq.s32.totalorder %s16, 1
    %p118 = por %p116, %p117
    %p119 = scmp.ne.s32.totalorder %s110, %s111
    %p120 = scmp.eq.s32.totalorder %s16, 0
    %p121 = por %p119, %p120
    %p122 = scmp.ne.s32.totalorder %s110, %s111
    %p123 = scmp.eq.s32.totalorder %s17, 1
    %p124 = por %p122, %p123
    %p126 = scmp.ne.s32.totalorder %s111, %s125
    %p127 = scmp.eq.s32.totalorder %s17, 0
    %p128 = por %p126, %p127
    %s129 = ssub.s32 %s11, %s18
    %p130 = scmp.eq.s32.totalorder %s129, 0
    %s132 = sadd.s32 %s131, 1
    %s133 = scalar_select %p130, %s131, %s132
    %p136 = pneg %p130
    %p137 = scmp.eq.s32.totalorder %s11, 1
    %p138 = por %p136, %p137
    %p139 = scmp.ne.s32.totalorder %s131, %s134
    %p140 = scmp.eq.s32.totalorder %s11, 0
    %p141 = por %p139, %p140
    %p142 = scmp.ne.s32.totalorder %s131, %s134
    %p143 = scmp.eq.s32.totalorder %s16, 1
    %p144 = por %p142, %p143
    %p145 = scmp.ne.s32.totalorder %s134, %s135
    %p146 = scmp.eq.s32.totalorder %s16, 0
    %p147 = por %p145, %p146
    %p148 = scmp.ne.s32.totalorder %s134, %s135
    %p149 = scmp.eq.s32.totalorder %s17, 1
    %p150 = por %p148, %p149
    %p152 = scmp.ne.s32.totalorder %s135, %s151
    %p153 = scmp.eq.s32.totalorder %s17, 0
    %p154 = por %p152, %p153
    %p155 = scmp.le.s32.totalorder 1, %s11
    %p156 = scmp.lt.s32.totalorder %s11, 3
    %p157 = pnand %p155, %p156
    %p158 = pneg %p157
    // Predicated region
    $region9: #{basic_block_forward.2} parent=5 // pred_check
      _
    $region10: #{basic_block_forward.2} parent=5 // pred_check_branch
      %160 = sbr.rel (%p157) target = $region12
    $region11: #{basic_block_forward.2} parent=5 // pred_region
      %s161 = ssub.s32 %s11, 1
      // Predicated region
      $region13: #{basic_block_forward.2} parent=11 // pred_check
        %p162 = pneg %p58
      $region14: #{basic_block_forward.2} parent=11 // pred_check_branch
        %164 = sbr.rel (%p162) target = $region16
      $region15: #{basic_block_forward.2} parent=11 // pred_region
        _
      $region16: #{basic_block_forward.2} parent=11 // pred_fallthru
        _
      // Predicated region
      $region17: #{basic_block_forward.2} parent=11 // pred_check
        %p165 = pneg %p79
      $region18: #{basic_block_forward.2} parent=11 // pred_check_branch
        %167 = sbr.rel (%p165) target = $region20
      $region19: #{basic_block_forward.2} parent=11 // pred_region
        _
      $region20: #{basic_block_forward.2} parent=11 // pred_fallthru
        _
      // Predicated region
      $region21: #{basic_block_forward.2} parent=11 // pred_check
        %p168 = pneg %p100
      $region22: #{basic_block_forward.2} parent=11 // pred_check_branch
        %170 = sbr.rel (%p168) target = $region24
      $region23: #{basic_block_forward.2} parent=11 // pred_region
        _
      $region24: #{basic_block_forward.2} parent=11 // pred_fallthru
        _
      // Predicated region
      $region25: #{basic_block_forward.2} parent=11 // pred_check
        %p171 = pneg %p121
      $region26: #{basic_block_forward.2} parent=11 // pred_check_branch
        %173 = sbr.rel (%p171) target = $region28
      $region27: #{basic_block_forward.2} parent=11 // pred_region
        _
      $region28: #{basic_block_forward.2} parent=11 // pred_fallthru
        _
    $region12: #{basic_block_forward.2} parent=5 // pred_fallthru
      _
    %p174 = scmp.lt.s32.totalorder %s11, 2
    // Predicated region
    $region29: #{basic_block_forward.2} parent=5 // pred_check
      %p175 = pneg %p174
    $region30: #{basic_block_forward.2} parent=5 // pred_check_branch
      %177 = sbr.rel (%p175) target = $region32
    $region31: #{basic_block_forward.2} parent=5 // pred_region
      // Predicated region
      $region33: #{basic_block_forward.2} parent=31 // pred_check
        %p178 = pneg %p31
      $region34: #{basic_block_forward.2} parent=31 // pred_check_branch
        %180 = sbr.rel (%p178) target = $region36
      $region35: #{basic_block_forward.2} parent=31 // pred_region
        %p181 = scmp.lt.s32.totalorder %s11, 1
        %s182 = scalar_select %p181, %s11, 1
        %s183 = smul.addr %s182, 32
        %s184 = smul.addr %s183, 8
        %s185 = scalar_lea.vmem %s0, %s184
      $region36: #{basic_block_forward.2} parent=31 // pred_fallthru
        _
    $region32: #{basic_block_forward.2} parent=5 // pred_fallthru
      _
    %p186 = scmp.le.s32.totalorder 1, %s11
    %p187 = scmp.lt.s32.totalorder %s11, 3
    %p188 = pnand %p186, %p187
    %p189 = pneg %p188
    // Predicated region
    $region37: #{basic_block_forward.2} parent=5 // pred_check
      _
    $region38: #{basic_block_forward.2} parent=5 // pred_check_branch
      %191 = sbr.rel (%p188) target = $region40
    $region39: #{basic_block_forward.2} parent=5 // pred_region
      %s192 = ssub.s32 %s11, 1
      %p193 = scmp.lt.s32.totalorder %s16, 1
      %s194 = scalar_select %p193, %s16, 1
      %s195 = smul.addr %s194, 32
      %s196 = smul.addr %s195, 8
      %s197 = scalar_lea.vmem %s0, %s196
      %p198 = pneg %p37
      %p199 = pneg %p34
      %p200 = pneg %p58
      %p201 = pneg %p55
      %p202 = pneg %p79
      %p203 = pneg %p76
      %p204 = pneg %p100
      %p205 = pneg %p97
      %p206 = pneg %p121
      %p207 = pneg %p118
      %p208 = pneg %p147
      %p209 = pneg %p144
      %p210 = scmp.lt.s32.totalorder %s16, 1
      %s211 = scalar_select %p210, %s16, 1
      %s212 = smul.addr %s211, 8
      %s213 = smul.addr %s212, 4
      %s214 = scalar_lea.vmem %s5, %s213
      %p215 = scmp.lt.s32.totalorder %s16, 1
      %s216 = scalar_select %p215, %s16, 1
      %s217 = smul.addr %s216, 32
      %s218 = smul.addr %s217, 8
      %s219 = scalar_lea.vmem %s0, %s218
      %p220 = scmp.lt.s32.totalorder %s16, 1
      %s221 = scalar_select %p220, %s16, 1
      %s222 = smul.addr %s221, 8
      %s223 = smul.addr %s222, 4
      %s224 = scalar_lea.vmem %s5, %s223
      %v226 = vld [vmem:[%s1] sm:$0x1]
      %v227 = vld [vmem:[%s2] sm:$0x1]
      %vm228 = vcmask 27648
      %229 = vst.msk [vmem:[#allocation2] sm:$0xf] %vm228, 0
      %vm230 = vcmask 24576
      %231 = vst.msk [vmem:[#allocation2 + $0x4] sm:$0x1] %vm230, 0
      %232 = vst.msk [vmem:[#allocation2 + $0x8] sm:$0xf] %vm228, 0
      %233 = vst.msk [vmem:[#allocation2 + $0xc] sm:$0x1] %vm230, 0
      %234 = vst.msk [vmem:[#allocation2 + $0x10] sm:$0xf] %vm228, 0
      %235 = vst.msk [vmem:[#allocation2 + $0x14] sm:$0x1] %vm230, 0
      %236 = vst.msk [vmem:[#allocation2 + $0x18] sm:$0xf] %vm228, 0
      %237 = vst.msk [vmem:[#allocation2 + $0x1c] sm:$0x1] %vm230, 0
      %238 = vst.msk [vmem:[#allocation2 + $0x20] sm:$0xf] %vm228, 0
      %239 = vst.msk [vmem:[#allocation2 + $0x24] sm:$0x1] %vm230, 0
      %240 = vst.msk [vmem:[#allocation2 + $0x28] sm:$0xf] %vm228, 0
      %241 = vst.msk [vmem:[#allocation2 + $0x2c] sm:$0x1] %vm230, 0
      %242 = vst.msk [vmem:[#allocation2 + $0x30] sm:$0xf] %vm228, 0
      %243 = vst.msk [vmem:[#allocation2 + $0x34] sm:$0x1] %vm230, 0
      %244 = vst.msk [vmem:[#allocation2 + $0x38] sm:$0xf] %vm228, 0
      %245 = vst.msk [vmem:[#allocation2 + $0x3c] sm:$0x1] %vm230, 0
      %246 = vst.msk [vmem:[#allocation2 + $0x40] sm:$0xf] %vm228, 0
      %247 = vst.msk [vmem:[#allocation2 + $0x44] sm:$0x1] %vm230, 0
      %248 = vst.msk [vmem:[#allocation2 + $0x48] sm:$0xf] %vm228, 0
      %249 = vst.msk [vmem:[#allocation2 + $0x4c] sm:$0x1] %vm230, 0
      %250 = vst.msk [vmem:[#allocation2 + $0x50] sm:$0xf] %vm228, 0
      %251 = vst.msk [vmem:[#allocation2 + $0x54] sm:$0x1] %vm230, 0
      %252 = vst.msk [vmem:[#allocation2 + $0x58] sm:$0xf] %vm228, 0
      %253 = vst.msk [vmem:[#allocation2 + $0x5c] sm:$0x1] %vm230, 0
      %254 = vst.msk [vmem:[#allocation2 + $0x60] sm:$0xf] %vm228, 0
      %255 = vst.msk [vmem:[#allocation2 + $0x64] sm:$0x1] %vm230, 0
      %256 = vst.msk [vmem:[#allocation2 + $0x68] sm:$0xf] %vm228, 0
      %257 = vst.msk [vmem:[#allocation2 + $0x6c] sm:$0x1] %vm230, 0
      %258 = vst.msk [vmem:[#allocation2 + $0x70] sm:$0xf] %vm228, 0
      %259 = vst.msk [vmem:[#allocation2 + $0x74] sm:$0x1] %vm230, 0
      %260 = vst.msk [vmem:[#allocation2 + $0x78] sm:$0xf] %vm228, 0
      %261 = vst.msk [vmem:[#allocation2 + $0x7c] sm:$0x1] %vm230, 0
      %262 = vst.msk [vmem:[#allocation2 + $0x80] sm:$0xf] %vm228, 0
      %263 = vst.msk [vmem:[#allocation2 + $0x84] sm:$0x1] %vm230, 0
      %264 = vst.msk [vmem:[#allocation2 + $0x88] sm:$0xf] %vm228, 0
      %265 = vst.msk [vmem:[#allocation2 + $0x8c] sm:$0x1] %vm230, 0
      %266 = vst.msk [vmem:[#allocation2 + $0x90] sm:$0xf] %vm228, 0
      %267 = vst.msk [vmem:[#allocation2 + $0x94] sm:$0x1] %vm230, 0
      %268 = vst.msk [vmem:[#allocation2 + $0x98] sm:$0xf] %vm228, 0
      %269 = vst.msk [vmem:[#allocation2 + $0x9c] sm:$0x1] %vm230, 0
      %270 = vst.msk [vmem:[#allocation2 + $0xa0] sm:$0xf] %vm228, 0
      %271 = vst.msk [vmem:[#allocation2 + $0xa4] sm:$0x1] %vm230, 0
      %272 = vst.msk [vmem:[#allocation2 + $0xa8] sm:$0xf] %vm228, 0
      %273 = vst.msk [vmem:[#allocation2 + $0xac] sm:$0x1] %vm230, 0
      %274 = vst.msk [vmem:[#allocation2 + $0xb0] sm:$0xf] %vm228, 0
      %275 = vst.msk [vmem:[#allocation2 + $0xb4] sm:$0x1] %vm230, 0
      %276 = vst.msk [vmem:[#allocation2 + $0xb8] sm:$0xf] %vm228, 0
      %277 = vst.msk [vmem:[#allocation2 + $0xbc] sm:$0x1] %vm230, 0
      %278 = vst.msk [vmem:[#allocation2 + $0xc0] sm:$0xf] %vm228, 0
      %279 = vst.msk [vmem:[#allocation2 + $0xc4] sm:$0x1] %vm230, 0
      %280 = vst.msk [vmem:[#allocation2 + $0xc8] sm:$0xf] %vm228, 0
      %281 = vst.msk [vmem:[#allocation2 + $0xcc] sm:$0x1] %vm230, 0
      %282 = vst.msk [vmem:[#allocation2 + $0xd0] sm:$0xf] %vm228, 0
      %283 = vst.msk [vmem:[#allocation2 + $0xd4] sm:$0x1] %vm230, 0
      %284 = vst.msk [vmem:[#allocation2 + $0xd8] sm:$0xf] %vm228, 0
      %285 = vst.msk [vmem:[#allocation2 + $0xdc] sm:$0x1] %vm230, 0
      %286 = vst.msk [vmem:[#allocation2 + $0xe0] sm:$0xf] %vm228, 0
      %287 = vst.msk [vmem:[#allocation2 + $0xe4] sm:$0x1] %vm230, 0
      %288 = vst.msk [vmem:[#allocation2 + $0xe8] sm:$0xf] %vm228, 0
      %289 = vst.msk [vmem:[#allocation2 + $0xec] sm:$0x1] %vm230, 0
      %290 = vst.msk [vmem:[#allocation2 + $0xf0] sm:$0xf] %vm228, 0
      %291 = vst.msk [vmem:[#allocation2 + $0xf4] sm:$0x1] %vm230, 0
      %292 = vst.msk [vmem:[#allocation2 + $0xf8] sm:$0xf] %vm228, 0
      %293 = vst.msk [vmem:[#allocation2 + $0xfc] sm:$0x1] %vm230, 0
      %294 = vst.msk [vmem:[#allocation2 + $0x100] sm:$0xf] %vm228, 0
      %295 = vst.msk [vmem:[#allocation2 + $0x104] sm:$0x1] %vm230, 0
      %296 = vst.msk [vmem:[#allocation2 + $0x108] sm:$0xf] %vm228, 0
      %297 = vst.msk [vmem:[#allocation2 + $0x10c] sm:$0x1] %vm230, 0
      %298 = vst.msk [vmem:[#allocation2 + $0x110] sm:$0xf] %vm228, 0
      %299 = vst.msk [vmem:[#allocation2 + $0x114] sm:$0x1] %vm230, 0
      %300 = vst.msk [vmem:[#allocation2 + $0x118] sm:$0xf] %vm228, 0
      %301 = vst.msk [vmem:[#allocation2 + $0x11c] sm:$0x1] %vm230, 0
      %302 = vst.msk [vmem:[#allocation2 + $0x120] sm:$0xf] %vm228, 0
      %303 = vst.msk [vmem:[#allocation2 + $0x124] sm:$0x1] %vm230, 0
      %304 = vst.msk [vmem:[#allocation2 + $0x128] sm:$0xf] %vm228, 0
      %305 = vst.msk [vmem:[#allocation2 + $0x12c] sm:$0x1] %vm230, 0
      %306 = vst.msk [vmem:[#allocation2 + $0x130] sm:$0xf] %vm228, 0
      %307 = vst.msk [vmem:[#allocation2 + $0x134] sm:$0x1] %vm230, 0
      %308 = vst.msk [vmem:[#allocation2 + $0x138] sm:$0xf] %vm228, 0
      %309 = vst.msk [vmem:[#allocation2 + $0x13c] sm:$0x1] %vm230, 0
      %s310 = scalar_lea.vmem %s219, 192
      %v311 = vld [vmem:[%s310] sm:$0xff]
      %v312 = vld [vmem:[%s310 + $0x8] sm:$0xff]
      %v313 = vld [vmem:[%s310 + $0x10] sm:$0xff]
      %v314 = vld [vmem:[%s310 + $0x18] sm:$0xff]
      %v315 = vld [vmem:[%s310 + $0x20] sm:$0xff]
      %v316 = vld [vmem:[%s310 + $0x28] sm:$0xff]
      %v317 = vld [vmem:[%s310 + $0x30] sm:$0xff]
      %v318 = vld [vmem:[%s310 + $0x38] sm:$0xff]
      %v320 = vlaneseq
      %v321 = vshrl.u32 %v320, 7
      %v322 = vsub.s32 0, %v321
      %v323 = vrot.slane %v226, %v322
      %v325 = vmul.f32 %v311, %v323
      %v326 = vmul.f32 %v312, %v323
      %v327 = vmul.f32 %v313, %v323
      %v328 = vmul.f32 %v314, %v323
      %v329 = vmul.f32 %v315, %v323
      %v330 = vmul.f32 %v316, %v323
      %v331 = vmul.f32 %v317, %v323
      %v332 = vmul.f32 %v318, %v323
      %v334 = vlaneseq
      %v335 = vshrl.u32 %v334, 7
      %v336 = vsub.s32 0, %v335
      %v337 = vrot.slane %v227, %v336
      %v339 = vadd.f32 %v325, %v337
      %v340 = vadd.f32 %v326, %v337
      %v341 = vadd.f32 %v327, %v337
      %v342 = vadd.f32 %v328, %v337
      %v343 = vadd.f32 %v329, %v337
      %v344 = vadd.f32 %v330, %v337
      %v345 = vadd.f32 %v331, %v337
      %v346 = vadd.f32 %v332, %v337
      %v347 = vmax.f32 %v339, 0.0
      %v348 = vmax.f32 %v340, 0.0
      %v349 = vmax.f32 %v341, 0.0
      %v350 = vmax.f32 %v342, 0.0
      %v351 = vmax.f32 %v343, 0.0
      %v352 = vmax.f32 %v344, 0.0
      %v353 = vmax.f32 %v345, 0.0
      %v354 = vmax.f32 %v346, 0.0
      %v355 = vpack.c.bf16 %v347, %v347
      %v356 = vpack.c.bf16 %v348, %v348
      %v357 = vpack.c.bf16 %v349, %v349
      %v358 = vpack.c.bf16 %v350, %v350
      %v359 = vpack.c.bf16 %v351, %v351
      %v360 = vpack.c.bf16 %v352, %v352
      %v361 = vpack.c.bf16 %v353, %v353
      %v362 = vpack.c.bf16 %v354, %v354
      %v371 = vunpack.c.l.b16 %v355
      %v372 = vunpack.c.l.b16 %v356
      %v373 = vunpack.c.l.b16 %v357
      %v374 = vunpack.c.l.b16 %v358
      %v375 = vunpack.c.l.b16 %v359
      %v376 = vunpack.c.l.b16 %v360
      %v377 = vunpack.c.l.b16 %v361
      %v378 = vunpack.c.l.b16 %v362
      %v379 = vpack.c.b16 %v371, %v371
      %v380 = vpack.c.b16 %v372, %v372
      %v381 = vpack.c.b16 %v373, %v373
      %v382 = vpack.c.b16 %v374, %v374
      %v383 = vpack.c.b16 %v375, %v375
      %v384 = vpack.c.b16 %v376, %v376
      %v385 = vpack.c.b16 %v377, %v377
      %v386 = vpack.c.b16 %v378, %v378
      %v388 = vshrl.u32 %v379, 16
      %v390 = vrot.slane %v388, 7
      %v391 = vshll.u32 %v379, 16
      %v393 = vor.u32 %v390, %v391
      %v394 = vrot.slane %v390, 4
      %v396 = vshrl.u32 %v380, 16
      %v398 = vrot.slane %v396, 7
      %v399 = vshll.u32 %v380, 16
      %v401 = vor.u32 %v398, %v399
      %v402 = vrot.slane %v398, 4
      %v404 = vshrl.u32 %v381, 16
      %v406 = vrot.slane %v404, 7
      %v407 = vshll.u32 %v381, 16
      %v409 = vor.u32 %v406, %v407
      %v410 = vrot.slane %v406, 4
      %v412 = vshrl.u32 %v382, 16
      %v414 = vrot.slane %v412, 7
      %v415 = vshll.u32 %v382, 16
      %v417 = vor.u32 %v414, %v415
      %v418 = vrot.slane %v414, 4
      %v420 = vshrl.u32 %v383, 16
      %v422 = vrot.slane %v420, 7
      %v423 = vshll.u32 %v383, 16
      %v425 = vor.u32 %v422, %v423
      %v426 = vrot.slane %v422, 4
      %v428 = vshrl.u32 %v384, 16
      %v430 = vrot.slane %v428, 7
      %v431 = vshll.u32 %v384, 16
      %v433 = vor.u32 %v430, %v431
      %v434 = vrot.slane %v430, 4
      %v436 = vshrl.u32 %v385, 16
      %v438 = vrot.slane %v436, 7
      %v439 = vshll.u32 %v385, 16
      %v441 = vor.u32 %v438, %v439
      %v442 = vrot.slane %v438, 4
      %v444 = vshrl.u32 %v386, 16
      %v446 = vrot.slane %v444, 7
      %v447 = vshll.u32 %v386, 16
      %v449 = vor.u32 %v446, %v447
      %v450 = vrot.slane %v446, 4
      %s467 = scalar_lea.vmem [#allocation2], 8
      %vm468 = vcmask 27648
      %vm469 = vsmask.f32 7938
      %vm470 = vmand %vm468, %vm469
      %v471 = vld [vmem:[%s467] sm:$0xf]
      %v472 = vsel %vm470, %v393, %v471
      %473 = vst [vmem:[%s467] sm:$0xf] %v472
      %vm474 = vcmask 24576
      %vm475 = vsmask.f32 256
      %vm476 = vmand %vm474, %vm475
      %v477 = vld [vmem:[%s467 + $0x4] sm:$0x1]
      %v478 = vsel %vm476, %v394, %v477
      %479 = vst [vmem:[%s467 + $0x4] sm:$0x1] %v478
      %v480 = vld [vmem:[%s467 + $0x8] sm:$0xf]
      %v481 = vsel %vm470, %v401, %v480
      %482 = vst [vmem:[%s467 + $0x8] sm:$0xf] %v481
      %v483 = vld [vmem:[%s467 + $0xc] sm:$0x1]
      %v484 = vsel %vm476, %v402, %v483
      %485 = vst [vmem:[%s467 + $0xc] sm:$0x1] %v484
      %v486 = vld [vmem:[%s467 + $0x10] sm:$0xf]
      %v487 = vsel %vm470, %v409, %v486
      %488 = vst [vmem:[%s467 + $0x10] sm:$0xf] %v487
      %v489 = vld [vmem:[%s467 + $0x14] sm:$0x1]
      %v490 = vsel %vm476, %v410, %v489
      %491 = vst [vmem:[%s467 + $0x14] sm:$0x1] %v490
      %v492 = vld [vmem:[%s467 + $0x18] sm:$0xf]
      %v493 = vsel %vm470, %v417, %v492
      %494 = vst [vmem:[%s467 + $0x18] sm:$0xf] %v493
      %v495 = vld [vmem:[%s467 + $0x1c] sm:$0x1]
      %v496 = vsel %vm476, %v418, %v495
      %497 = vst [vmem:[%s467 + $0x1c] sm:$0x1] %v496
      %v498 = vld [vmem:[%s467 + $0x20] sm:$0xf]
      %v499 = vsel %vm470, %v425, %v498
      %500 = vst [vmem:[%s467 + $0x20] sm:$0xf] %v499
      %v501 = vld [vmem:[%s467 + $0x24] sm:$0x1]
      %v502 = vsel %vm476, %v426, %v501
      %503 = vst [vmem:[%s467 + $0x24] sm:$0x1] %v502
      %v504 = vld [vmem:[%s467 + $0x28] sm:$0xf]
      %v505 = vsel %vm470, %v433, %v504
      %506 = vst [vmem:[%s467 + $0x28] sm:$0xf] %v505
      %v507 = vld [vmem:[%s467 + $0x2c] sm:$0x1]
      %v508 = vsel %vm476, %v434, %v507
      %509 = vst [vmem:[%s467 + $0x2c] sm:$0x1] %v508
      %v510 = vld [vmem:[%s467 + $0x30] sm:$0xf]
      %v511 = vsel %vm470, %v441, %v510
      %512 = vst [vmem:[%s467 + $0x30] sm:$0xf] %v511
      %v513 = vld [vmem:[%s467 + $0x34] sm:$0x1]
      %v514 = vsel %vm476, %v442, %v513
      %515 = vst [vmem:[%s467 + $0x34] sm:$0x1] %v514
      %v516 = vld [vmem:[%s467 + $0x38] sm:$0xf]
      %v517 = vsel %vm470, %v449, %v516
      %518 = vst [vmem:[%s467 + $0x38] sm:$0xf] %v517
      %v519 = vld [vmem:[%s467 + $0x3c] sm:$0x1]
      %v520 = vsel %vm476, %v450, %v519
      %521 = vst [vmem:[%s467 + $0x3c] sm:$0x1] %v520
      %s522 = scalar_lea.vmem %s219, 128
      %v523 = vld [vmem:[%s522] sm:$0xff]
      %v524 = vld [vmem:[%s522 + $0x8] sm:$0xff]
      %v525 = vld [vmem:[%s522 + $0x10] sm:$0xff]
      %v526 = vld [vmem:[%s522 + $0x18] sm:$0xff]
      %v527 = vld [vmem:[%s522 + $0x20] sm:$0xff]
      %v528 = vld [vmem:[%s522 + $0x28] sm:$0xff]
      %v529 = vld [vmem:[%s522 + $0x30] sm:$0xff]
      %v530 = vld [vmem:[%s522 + $0x38] sm:$0xff]
      %v531 = vmul.f32 %v523, %v323
      %v532 = vmul.f32 %v524, %v323
      %v533 = vmul.f32 %v525, %v323
      %v534 = vmul.f32 %v526, %v323
      %v535 = vmul.f32 %v527, %v323
      %v536 = vmul.f32 %v528, %v323
      %v537 = vmul.f32 %v529, %v323
      %v538 = vmul.f32 %v530, %v323
      %v539 = vadd.f32 %v531, %v337
      %v540 = vadd.f32 %v532, %v337
      %v541 = vadd.f32 %v533, %v337
      %v542 = vadd.f32 %v534, %v337
      %v543 = vadd.f32 %v535, %v337
      %v544 = vadd.f32 %v536, %v337
      %v545 = vadd.f32 %v537, %v337
      %v546 = vadd.f32 %v538, %v337
      %v547 = vmax.f32 %v539, 0.0
      %v548 = vmax.f32 %v540, 0.0
      %v549 = vmax.f32 %v541, 0.0
      %v550 = vmax.f32 %v542, 0.0
      %v551 = vmax.f32 %v543, 0.0
      %v552 = vmax.f32 %v544, 0.0
      %v553 = vmax.f32 %v545, 0.0
      %v554 = vmax.f32 %v546, 0.0
      %v555 = vpack.c.bf16 %v547, %v547
      %v556 = vpack.c.bf16 %v548, %v548
      %v557 = vpack.c.bf16 %v549, %v549
      %v558 = vpack.c.bf16 %v550, %v550
      %v559 = vpack.c.bf16 %v551, %v551
      %v560 = vpack.c.bf16 %v552, %v552
      %v561 = vpack.c.bf16 %v553, %v553
      %v562 = vpack.c.bf16 %v554, %v554
      %s563 = scalar_lea.vmem [#allocation2], 88
      %564 = vst.msk [vmem:[%s563] sm:$0xf] %vm228, %v555
      %565 = vst.msk [vmem:[%s563 + $0x8] sm:$0xf] %vm228, %v556
      %566 = vst.msk [vmem:[%s563 + $0x10] sm:$0xf] %vm228, %v557
      %567 = vst.msk [vmem:[%s563 + $0x18] sm:$0xf] %vm228, %v558
      %568 = vst.msk [vmem:[%s563 + $0x20] sm:$0xf] %vm228, %v559
      %569 = vst.msk [vmem:[%s563 + $0x28] sm:$0xf] %vm228, %v560
      %570 = vst.msk [vmem:[%s563 + $0x30] sm:$0xf] %vm228, %v561
      %571 = vst.msk [vmem:[%s563 + $0x38] sm:$0xf] %vm228, %v562
      %s572 = scalar_lea.vmem %s219, 64
      %v573 = vld [vmem:[%s572] sm:$0xff]
      %v574 = vld [vmem:[%s572 + $0x8] sm:$0xff]
      %v575 = vld [vmem:[%s572 + $0x10] sm:$0xff]
      %v576 = vld [vmem:[%s572 + $0x18] sm:$0xff]
      %v577 = vld [vmem:[%s572 + $0x20] sm:$0xff]
      %v578 = vld [vmem:[%s572 + $0x28] sm:$0xff]
      %v579 = vld [vmem:[%s572 + $0x30] sm:$0xff]
      %v580 = vld [vmem:[%s572 + $0x38] sm:$0xff]
      %v581 = vmul.f32 %v573, %v323
      %v582 = vmul.f32 %v574, %v323
      %v583 = vmul.f32 %v575, %v323
      %v584 = vmul.f32 %v576, %v323
      %v585 = vmul.f32 %v577, %v323
      %v586 = vmul.f32 %v578, %v323
      %v587 = vmul.f32 %v579, %v323
      %v588 = vmul.f32 %v580, %v323
      %v589 = vadd.f32 %v581, %v337
      %v590 = vadd.f32 %v582, %v337
      %v591 = vadd.f32 %v583, %v337
      %v592 = vadd.f32 %v584, %v337
      %v593 = vadd.f32 %v585, %v337
      %v594 = vadd.f32 %v586, %v337
      %v595 = vadd.f32 %v587, %v337
      %v596 = vadd.f32 %v588, %v337
      %v597 = vmax.f32 %v589, 0.0
      %v598 = vmax.f32 %v590, 0.0
      %v599 = vmax.f32 %v591, 0.0
      %v600 = vmax.f32 %v592, 0.0
      %v601 = vmax.f32 %v593, 0.0
      %v602 = vmax.f32 %v594, 0.0
      %v603 = vmax.f32 %v595, 0.0
      %v604 = vmax.f32 %v596, 0.0
      %v605 = vpack.c.bf16 %v597, %v597
      %v606 = vpack.c.bf16 %v598, %v598
      %v607 = vpack.c.bf16 %v599, %v599
      %v608 = vpack.c.bf16 %v600, %v600
      %v609 = vpack.c.bf16 %v601, %v601
      %v610 = vpack.c.bf16 %v602, %v602
      %v611 = vpack.c.bf16 %v603, %v603
      %v612 = vpack.c.bf16 %v604, %v604
      %v621 = vunpack.c.l.b16 %v605
      %v622 = vunpack.c.l.b16 %v606
      %v623 = vunpack.c.l.b16 %v607
      %v624 = vunpack.c.l.b16 %v608
      %v625 = vunpack.c.l.b16 %v609
      %v626 = vunpack.c.l.b16 %v610
      %v627 = vunpack.c.l.b16 %v611
      %v628 = vunpack.c.l.b16 %v612
      %v629 = vpack.c.b16 %v621, %v621
      %v630 = vpack.c.b16 %v622, %v622
      %v631 = vpack.c.b16 %v623, %v623
      %v632 = vpack.c.b16 %v624, %v624
      %v633 = vpack.c.b16 %v625, %v625
      %v634 = vpack.c.b16 %v626, %v626
      %v635 = vpack.c.b16 %v627, %v627
      %v636 = vpack.c.b16 %v628, %v628
      %v638 = vshrl.u32 %v629, 16
      %v640 = vrot.slane %v638, 7
      %v641 = vshll.u32 %v629, 16
      %v643 = vor.u32 %v640, %v641
      %v644 = vrot.slane %v640, 4
      %v646 = vshrl.u32 %v630, 16
      %v648 = vrot.slane %v646, 7
      %v649 = vshll.u32 %v630, 16
      %v651 = vor.u32 %v648, %v649
      %v652 = vrot.slane %v648, 4
      %v654 = vshrl.u32 %v631, 16
      %v656 = vrot.slane %v654, 7
      %v657 = vshll.u32 %v631, 16
      %v659 = vor.u32 %v656, %v657
      %v660 = vrot.slane %v656, 4
      %v662 = vshrl.u32 %v632, 16
      %v664 = vrot.slane %v662, 7
      %v665 = vshll.u32 %v632, 16
      %v667 = vor.u32 %v664, %v665
      %v668 = vrot.slane %v664, 4
      %v670 = vshrl.u32 %v633, 16
      %v672 = vrot.slane %v670, 7
      %v673 = vshll.u32 %v633, 16
      %v675 = vor.u32 %v672, %v673
      %v676 = vrot.slane %v672, 4
      %v678 = vshrl.u32 %v634, 16
      %v680 = vrot.slane %v678, 7
      %v681 = vshll.u32 %v634, 16
      %v683 = vor.u32 %v680, %v681
      %v684 = vrot.slane %v680, 4
      %v686 = vshrl.u32 %v635, 16
      %v688 = vrot.slane %v686, 7
      %v689 = vshll.u32 %v635, 16
      %v691 = vor.u32 %v688, %v689
      %v692 = vrot.slane %v688, 4
      %v694 = vshrl.u32 %v636, 16
      %v696 = vrot.slane %v694, 7
      %v697 = vshll.u32 %v636, 16
      %v699 = vor.u32 %v696, %v697
      %v700 = vrot.slane %v696, 4
      %s717 = scalar_lea.vmem [#allocation2], 160
      %v718 = vld [vmem:[%s717] sm:$0xf]
      %v719 = vsel %vm470, %v643, %v718
      %720 = vst [vmem:[%s717] sm:$0xf] %v719
      %v721 = vld [vmem:[%s717 + $0x4] sm:$0x1]
      %v722 = vsel %vm476, %v644, %v721
      %723 = vst [vmem:[%s717 + $0x4] sm:$0x1] %v722
      %v724 = vld [vmem:[%s717 + $0x8] sm:$0xf]
      %v725 = vsel %vm470, %v651, %v724
      %726 = vst [vmem:[%s717 + $0x8] sm:$0xf] %v725
      %v727 = vld [vmem:[%s717 + $0xc] sm:$0x1]
      %v728 = vsel %vm476, %v652, %v727
      %729 = vst [vmem:[%s717 + $0xc] sm:$0x1] %v728
      %v730 = vld [vmem:[%s717 + $0x10] sm:$0xf]
      %v731 = vsel %vm470, %v659, %v730
      %732 = vst [vmem:[%s717 + $0x10] sm:$0xf] %v731
      %v733 = vld [vmem:[%s717 + $0x14] sm:$0x1]
      %v734 = vsel %vm476, %v660, %v733
      %735 = vst [vmem:[%s717 + $0x14] sm:$0x1] %v734
      %v736 = vld [vmem:[%s717 + $0x18] sm:$0xf]
      %v737 = vsel %vm470, %v667, %v736
      %738 = vst [vmem:[%s717 + $0x18] sm:$0xf] %v737
      %v739 = vld [vmem:[%s717 + $0x1c] sm:$0x1]
      %v740 = vsel %vm476, %v668, %v739
      %741 = vst [vmem:[%s717 + $0x1c] sm:$0x1] %v740
      %v742 = vld [vmem:[%s717 + $0x20] sm:$0xf]
      %v743 = vsel %vm470, %v675, %v742
      %744 = vst [vmem:[%s717 + $0x20] sm:$0xf] %v743
      %v745 = vld [vmem:[%s717 + $0x24] sm:$0x1]
      %v746 = vsel %vm476, %v676, %v745
      %747 = vst [vmem:[%s717 + $0x24] sm:$0x1] %v746
      %v748 = vld [vmem:[%s717 + $0x28] sm:$0xf]
      %v749 = vsel %vm470, %v683, %v748
      %750 = vst [vmem:[%s717 + $0x28] sm:$0xf] %v749
      %v751 = vld [vmem:[%s717 + $0x2c] sm:$0x1]
      %v752 = vsel %vm476, %v684, %v751
      %753 = vst [vmem:[%s717 + $0x2c] sm:$0x1] %v752
      %v754 = vld [vmem:[%s717 + $0x30] sm:$0xf]
      %v755 = vsel %vm470, %v691, %v754
      %756 = vst [vmem:[%s717 + $0x30] sm:$0xf] %v755
      %v757 = vld [vmem:[%s717 + $0x34] sm:$0x1]
      %v758 = vsel %vm476, %v692, %v757
      %759 = vst [vmem:[%s717 + $0x34] sm:$0x1] %v758
      %v760 = vld [vmem:[%s717 + $0x38] sm:$0xf]
      %v761 = vsel %vm470, %v699, %v760
      %762 = vst [vmem:[%s717 + $0x38] sm:$0xf] %v761
      %v763 = vld [vmem:[%s717 + $0x3c] sm:$0x1]
      %v764 = vsel %vm476, %v700, %v763
      %765 = vst [vmem:[%s717 + $0x3c] sm:$0x1] %v764
      %v766 = vld [vmem:[%s219] sm:$0xff]
      %v767 = vld [vmem:[%s219 + $0x8] sm:$0xff]
      %v768 = vld [vmem:[%s219 + $0x10] sm:$0xff]
      %v769 = vld [vmem:[%s219 + $0x18] sm:$0xff]
      %v770 = vld [vmem:[%s219 + $0x20] sm:$0xff]
      %v771 = vld [vmem:[%s219 + $0x28] sm:$0xff]
      %v772 = vld [vmem:[%s219 + $0x30] sm:$0xff]
      %v773 = vld [vmem:[%s219 + $0x38] sm:$0xff]
      %v774 = vmul.f32 %v766, %v323
      %v775 = vmul.f32 %v767, %v323
      %v776 = vmul.f32 %v768, %v323
      %v777 = vmul.f32 %v769, %v323
      %v778 = vmul.f32 %v770, %v323
      %v779 = vmul.f32 %v771, %v323
      %v780 = vmul.f32 %v772, %v323
      %v781 = vmul.f32 %v773, %v323
      %v782 = vadd.f32 %v774, %v337
      %v783 = vadd.f32 %v775, %v337
      %v784 = vadd.f32 %v776, %v337
      %v785 = vadd.f32 %v777, %v337
      %v786 = vadd.f32 %v778, %v337
      %v787 = vadd.f32 %v779, %v337
      %v788 = vadd.f32 %v780, %v337
      %v789 = vadd.f32 %v781, %v337
      %v790 = vmax.f32 %v782, 0.0
      %v791 = vmax.f32 %v783, 0.0
      %v792 = vmax.f32 %v784, 0.0
      %v793 = vmax.f32 %v785, 0.0
      %v794 = vmax.f32 %v786, 0.0
      %v795 = vmax.f32 %v787, 0.0
      %v796 = vmax.f32 %v788, 0.0
      %v797 = vmax.f32 %v789, 0.0
      %v798 = vpack.c.bf16 %v790, %v790
      %v799 = vpack.c.bf16 %v791, %v791
      %v800 = vpack.c.bf16 %v792, %v792
      %v801 = vpack.c.bf16 %v793, %v793
      %v802 = vpack.c.bf16 %v794, %v794
      %v803 = vpack.c.bf16 %v795, %v795
      %v804 = vpack.c.bf16 %v796, %v796
      %v805 = vpack.c.bf16 %v797, %v797
      %s806 = scalar_lea.vmem [#allocation2], 240
      %807 = vst.msk [vmem:[%s806] sm:$0xf] %vm228, %v798
      %808 = vst.msk [vmem:[%s806 + $0x8] sm:$0xf] %vm228, %v799
      %809 = vst.msk [vmem:[%s806 + $0x10] sm:$0xf] %vm228, %v800
      %810 = vst.msk [vmem:[%s806 + $0x18] sm:$0xf] %vm228, %v801
      %811 = vst.msk [vmem:[%s806 + $0x20] sm:$0xf] %vm228, %v802
      %812 = vst.msk [vmem:[%s806 + $0x28] sm:$0xf] %vm228, %v803
      %813 = vst.msk [vmem:[%s806 + $0x30] sm:$0xf] %vm228, %v804
      %814 = vst.msk [vmem:[%s806 + $0x38] sm:$0xf] %vm228, %v805
      %v815 = vld [vmem:[#allocation2] sm:$0xf]
      %v816 = vld [vmem:[#allocation2 + $0x8] sm:$0xf]
      %v817 = vld [vmem:[#allocation2 + $0x10] sm:$0xf]
      %v818 = vld [vmem:[#allocation2 + $0x18] sm:$0xf]
      %v819 = vld [vmem:[#allocation2 + $0x20] sm:$0xf]
      %v820 = vld [vmem:[#allocation2 + $0x28] sm:$0xf]
      %v821 = vld [vmem:[#allocation2 + $0x30] sm:$0xf]
      %v822 = vld [vmem:[#allocation2 + $0x38] sm:$0xf]
      %v823 = vld [vmem:[%s3] sm:$0x3]
      %s824 = scalar_lea.vmem [#allocation2], 80
      %v825 = vld [vmem:[%s824] sm:$0xf]
      %v826 = vld [vmem:[%s824 + $0x8] sm:$0xf]
      %v827 = vld [vmem:[%s824 + $0x10] sm:$0xf]
      %v828 = vld [vmem:[%s824 + $0x18] sm:$0xf]
      %v829 = vld [vmem:[%s824 + $0x20] sm:$0xf]
      %v830 = vld [vmem:[%s824 + $0x28] sm:$0xf]
      %v831 = vld [vmem:[%s824 + $0x30] sm:$0xf]
      %v832 = vld [vmem:[%s824 + $0x38] sm:$0xf]
      %s833 = scalar_lea.vmem %s3, 2
      %v834 = vld [vmem:[%s833] sm:$0x3]
      %v843 = vunpack.c.l.b16 %v825
      %v844 = vunpack.c.l.b16 %v826
      %v845 = vunpack.c.l.b16 %v827
      %v846 = vunpack.c.l.b16 %v828
      %v847 = vunpack.c.l.b16 %v829
      %v848 = vunpack.c.l.b16 %v830
      %v849 = vunpack.c.l.b16 %v831
      %v850 = vunpack.c.l.b16 %v832
      %v851 = vpack.c.b16 %v844, %v843
      %v852 = vpack.c.b16 %v846, %v845
      %v853 = vpack.c.b16 %v848, %v847
      %v854 = vpack.c.b16 %v850, %v849
      %vm855 = vcmask 31744
      %v857 = vsel %vm855, %v851, 0
      %v860 = vsel %vm855, %v852, 0
      %v863 = vsel %vm855, %v853, 0
      %v866 = vsel %vm855, %v854, 0
      %vm868 = vcmask 1041408
      %v870 = vsel %vm868, %v834, 0
      %872 = vmatprep.subr.bf16.mxu0 0
      %873 = vmatpush1.bf16.msra.mxu0 %v870
      %874 = vmatprep.subr.bf16.mxu0 0
      %875 = vmatpush1.bf16.msra.mxu0 0
      %876 = vmatprep.subr.bf16.mxu0 0
      %877 = vmatpush1.bf16.msra.mxu0 0
      %878 = vmatprep.subr.bf16.mxu0 0
      %879 = vmatpush1.bf16.msra.mxu0 0
      %880 = vmatprep.subr.bf16.mxu0 0
      %881 = vmatpush1.bf16.msra.mxu0 0
      %882 = vmatprep.subr.bf16.mxu0 0
      %883 = vmatpush1.bf16.msra.mxu0 0
      %884 = vmatprep.subr.bf16.mxu0 0
      %885 = vmatpush1.bf16.msra.mxu0 0
      %886 = vmatprep.subr.bf16.mxu0 0
      %887 = vmatpush1.bf16.msra.mxu0 0
      %888 = vmatprep.subr.bf16.mxu0 0
      %889 = vmatpush1.bf16.msra.mxu0 0
      %890 = vmatprep.subr.bf16.mxu0 0
      %891 = vmatpush1.bf16.msra.mxu0 0
      %892 = vmatprep.subr.bf16.mxu0 0
      %893 = vmatpush1.bf16.msra.mxu0 0
      %894 = vmatprep.subr.bf16.mxu0 0
      %895 = vmatpush1.bf16.msra.mxu0 0
      %896 = vmatprep.subr.bf16.mxu0 0
      %897 = vmatpush1.bf16.msra.mxu0 0
      %898 = vmatprep.subr.bf16.mxu0 0
      %899 = vmatpush1.bf16.msra.mxu0 0
      %900 = vmatprep.subr.bf16.mxu0 0
      %901 = vmatpush1.bf16.msra.mxu0 0
      %902 = vmatprep.subr.bf16.mxu0 0
      %903 = vmatpush1.bf16.msra.mxu0 0
      %904 = vmatprep.mubr.bf16.mxu0 0
      %905 = vmatmul.mubr.bf16.gmra.mrb[0].mxu0 %v857
      %v906 = vpop.f32.mrb[0].mxu0
      %v907 = vadd.f32 0.0, %v906
      %v908 = vpop.f32.mrb[0].mxu0
      %v909 = vpop.f32.mrb[0].mxu0
      %v910 = vadd.f32 0.0, %v909
      %v911 = vpop.f32.mrb[0].mxu0
      %912 = vmatprep.mubr.bf16.mxu0 0
      %913 = vmatmul.mubr.bf16.gmra.mrb[0].mxu0 %v860
      %v914 = vpop.f32.mrb[0].mxu0
      %v915 = vadd.f32 0.0, %v914
      %v916 = vpop.f32.mrb[0].mxu0
      %v917 = vpop.f32.mrb[0].mxu0
      %v918 = vadd.f32 0.0, %v917
      %v919 = vpop.f32.mrb[0].mxu0
      %920 = vmatprep.mubr.bf16.mxu0 0
      %921 = vmatmul.mubr.bf16.gmra.mrb[0].mxu0 %v863
      %v922 = vpop.f32.mrb[0].mxu0
      %v923 = vadd.f32 0.0, %v922
      %v924 = vpop.f32.mrb[0].mxu0
      %v925 = vpop.f32.mrb[0].mxu0
      %v926 = vadd.f32 0.0, %v925
      %v927 = vpop.f32.mrb[0].mxu0
      %928 = vmatprep.mubr.bf16.mxu0 0
      %929 = vmatmul.mubr.bf16.gmra.mrb[0].mxu0 %v866
      %v930 = vpop.f32.mrb[0].mxu0
      %v931 = vadd.f32 0.0, %v930
      %v932 = vpop.f32.mrb[0].mxu0
      %v933 = vpop.f32.mrb[0].mxu0
      %v934 = vadd.f32 0.0, %v933
      %v935 = vpop.f32.mrb[0].mxu0
      %936 = vdwg.mxu0
      %v945 = vunpack.c.l.b16 %v815
      %v946 = vunpack.c.l.b16 %v816
      %v947 = vunpack.c.l.b16 %v817
      %v948 = vunpack.c.l.b16 %v818
      %v949 = vunpack.c.l.b16 %v819
      %v950 = vunpack.c.l.b16 %v820
      %v951 = vunpack.c.l.b16 %v821
      %v952 = vunpack.c.l.b16 %v822
      %v953 = vpack.c.b16 %v946, %v945
      %v954 = vpack.c.b16 %v948, %v947
      %v955 = vpack.c.b16 %v950, %v949
      %v956 = vpack.c.b16 %v952, %v951
      %v958 = vsel %vm855, %v953, 0
      %v961 = vsel %vm855, %v954, 0
      %v964 = vsel %vm855, %v955, 0
      %v967 = vsel %vm855, %v956, 0
      %v970 = vsel %vm868, %v823, 0
      %972 = vmatprep.subr.bf16.mxu0 0
      %973 = vmatpush1.bf16.msra.mxu0 %v970
      %974 = vmatprep.subr.bf16.mxu0 0
      %975 = vmatpush1.bf16.msra.mxu0 0
      %976 = vmatprep.subr.bf16.mxu0 0
      %977 = vmatpush1.bf16.msra.mxu0 0
      %978 = vmatprep.subr.bf16.mxu0 0
      %979 = vmatpush1.bf16.msra.mxu0 0
      %980 = vmatprep.subr.bf16.mxu0 0
      %981 = vmatpush1.bf16.msra.mxu0 0
      %982 = vmatprep.subr.bf16.mxu0 0
      %983 = vmatpush1.bf16.msra.mxu0 0
      %984 = vmatprep.subr.bf16.mxu0 0
      %985 = vmatpush1.bf16.msra.mxu0 0
      %986 = vmatprep.subr.bf16.mxu0 0
      %987 = vmatpush1.bf16.msra.mxu0 0
      %988 = vmatprep.subr.bf16.mxu0 0
      %989 = vmatpush1.bf16.msra.mxu0 0
      %990 = vmatprep.subr.bf16.mxu0 0
      %991 = vmatpush1.bf16.msra.mxu0 0
      %992 = vmatprep.subr.bf16.mxu0 0
      %993 = vmatpush1.bf16.msra.mxu0 0
      %994 = vmatprep.subr.bf16.mxu0 0
      %995 = vmatpush1.bf16.msra.mxu0 0
      %996 = vmatprep.subr.bf16.mxu0 0
      %997 = vmatpush1.bf16.msra.mxu0 0
      %998 = vmatprep.subr.bf16.mxu0 0
      %999 = vmatpush1.bf16.msra.mxu0 0
      %1000 = vmatprep.subr.bf16.mxu0 0
      %1001 = vmatpush1.bf16.msra.mxu0 0
      %1002 = vmatprep.subr.bf16.mxu0 0
      %1003 = vmatpush1.bf16.msra.mxu0 0
      %1004 = vmatprep.mubr.bf16.mxu0 0
      %1005 = vmatmul.mubr.bf16.gmra.mrb[0].mxu0 %v958
      %v1006 = vpop.f32.mrb[0].mxu0
      %v1007 = vadd.f32 %v907, %v1006
      %v1008 = vpop.f32.mrb[0].mxu0
      %v1009 = vpop.f32.mrb[0].mxu0
      %v1010 = vadd.f32 %v910, %v1009
      %v1011 = vpop.f32.mrb[0].mxu0
      %1012 = vmatprep.mubr.bf16.mxu0 0
      %1013 = vmatmul.mubr.bf16.gmra.mrb[0].mxu0 %v961
      %v1014 = vpop.f32.mrb[0].mxu0
      %v1015 = vadd.f32 %v915, %v1014
      %v1016 = vpop.f32.mrb[0].mxu0
      %v1017 = vpop.f32.mrb[0].mxu0
      %v1018 = vadd.f32 %v918, %v1017
      %v1019 = vpop.f32.mrb[0].mxu0
      %1020 = vmatprep.mubr.bf16.mxu0 0
      %1021 = vmatmul.mubr.bf16.gmra.mrb[0].mxu0 %v964
      %v1022 = vpop.f32.mrb[0].mxu0
      %v1023 = vadd.f32 %v923, %v1022
      %v1024 = vpop.f32.mrb[0].mxu0
      %v1025 = vpop.f32.mrb[0].mxu0
      %v1026 = vadd.f32 %v926, %v1025
      %v1027 = vpop.f32.mrb[0].mxu0
      %1028 = vmatprep.mubr.bf16.mxu0 0
      %1029 = vmatmul.mubr.bf16.gmra.mrb[0].mxu0 %v967
      %v1030 = vpop.f32.mrb[0].mxu0
      %v1031 = vadd.f32 %v931, %v1030
      %v1032 = vpop.f32.mrb[0].mxu0
      %v1033 = vpop.f32.mrb[0].mxu0
      %v1034 = vadd.f32 %v934, %v1033
      %v1035 = vpop.f32.mrb[0].mxu0
      %1036 = vdwg.mxu0
      %v1037 = vld [vmem:[#allocation2] sm:$0xf]
      %v1038 = vld [vmem:[#allocation2 + $0x4] sm:$0x1]
      %v1039 = vld [vmem:[#allocation2 + $0x8] sm:$0xf]
      %v1040 = vld [vmem:[#allocation2 + $0xc] sm:$0x1]
      %v1041 = vld [vmem:[#allocation2 + $0x10] sm:$0xf]
      %v1042 = vld [vmem:[#allocation2 + $0x14] sm:$0x1]
      %v1043 = vld [vmem:[#allocation2 + $0x18] sm:$0xf]
      %v1044 = vld [vmem:[#allocation2 + $0x1c] sm:$0x1]
      %v1045 = vld [vmem:[#allocation2 + $0x20] sm:$0xf]
      %v1046 = vld [vmem:[#allocation2 + $0x24] sm:$0x1]
      %v1047 = vld [vmem:[#allocation2 + $0x28] sm:$0xf]
      %v1048 = vld [vmem:[#allocation2 + $0x2c] sm:$0x1]
      %v1049 = vld [vmem:[#allocation2 + $0x30] sm:$0xf]
      %v1050 = vld [vmem:[#allocation2 + $0x34] sm:$0x1]
      %v1051 = vld [vmem:[#allocation2 + $0x38] sm:$0xf]
      %v1052 = vld [vmem:[#allocation2 + $0x3c] sm:$0x1]
      %vm1053 = vsmask.f32 3328
      %vm1054 = vsmask.f32 7440
      %vm1055 = vmor %vm1053, %vm1054
      %v1057 = vshrl.u32 %v1037, 16
      %v1059 = vrot.slane %v1057, 4
      %v1060 = vshll.u32 %v1037, 16
      %v1062 = vrot.slane %v1060, 5
      %v1063 = vor.u32 %v1059, %v1062
      %v1064 = vrot.slane %v1063, 4
      %v1066 = vshll.u32 %v1038, 16
      %v1068 = vrot.slane %v1066, 5
      %v1069 = vsel %vm1055, %v1064, %v1068
      %v1071 = vshrl.u32 %v1039, 16
      %v1073 = vrot.slane %v1071, 4
      %v1074 = vshll.u32 %v1039, 16
      %v1076 = vrot.slane %v1074, 5
      %v1077 = vor.u32 %v1073, %v1076
      %v1078 = vrot.slane %v1077, 4
      %v1080 = vshll.u32 %v1040, 16
      %v1082 = vrot.slane %v1080, 5
      %v1083 = vsel %vm1055, %v1078, %v1082
      %v1085 = vshrl.u32 %v1041, 16
      %v1087 = vrot.slane %v1085, 4
      %v1088 = vshll.u32 %v1041, 16
      %v1090 = vrot.slane %v1088, 5
      %v1091 = vor.u32 %v1087, %v1090
      %v1092 = vrot.slane %v1091, 4
      %v1094 = vshll.u32 %v1042, 16
      %v1096 = vrot.slane %v1094, 5
      %v1097 = vsel %vm1055, %v1092, %v1096
      %v1099 = vshrl.u32 %v1043, 16
      %v1101 = vrot.slane %v1099, 4
      %v1102 = vshll.u32 %v1043, 16
      %v1104 = vrot.slane %v1102, 5
      %v1105 = vor.u32 %v1101, %v1104
      %v1106 = vrot.slane %v1105, 4
      %v1108 = vshll.u32 %v1044, 16
      %v1110 = vrot.slane %v1108, 5
      %v1111 = vsel %vm1055, %v1106, %v1110
      %v1113 = vshrl.u32 %v1045, 16
      %v1115 = vrot.slane %v1113, 4
      %v1116 = vshll.u32 %v1045, 16
      %v1118 = vrot.slane %v1116, 5
      %v1119 = vor.u32 %v1115, %v1118
      %v1120 = vrot.slane %v1119, 4
      %v1122 = vshll.u32 %v1046, 16
      %v1124 = vrot.slane %v1122, 5
      %v1125 = vsel %vm1055, %v1120, %v1124
      %v1127 = vshrl.u32 %v1047, 16
      %v1129 = vrot.slane %v1127, 4
      %v1130 = vshll.u32 %v1047, 16
      %v1132 = vrot.slane %v1130, 5
      %v1133 = vor.u32 %v1129, %v1132
      %v1134 = vrot.slane %v1133, 4
      %v1136 = vshll.u32 %v1048, 16
      %v1138 = vrot.slane %v1136, 5
      %v1139 = vsel %vm1055, %v1134, %v1138
      %v1141 = vshrl.u32 %v1049, 16
      %v1143 = vrot.slane %v1141, 4
      %v1144 = vshll.u32 %v1049, 16
      %v1146 = vrot.slane %v1144, 5
      %v1147 = vor.u32 %v1143, %v1146
      %v1148 = vrot.slane %v1147, 4
      %v1150 = vshll.u32 %v1050, 16
      %v1152 = vrot.slane %v1150, 5
      %v1153 = vsel %vm1055, %v1148, %v1152
      %v1155 = vshrl.u32 %v1051, 16
      %v1157 = vrot.slane %v1155, 4
      %v1158 = vshll.u32 %v1051, 16
      %v1160 = vrot.slane %v1158, 5
      %v1161 = vor.u32 %v1157, %v1160
      %v1162 = vrot.slane %v1161, 4
      %v1164 = vshll.u32 %v1052, 16
      %v1166 = vrot.slane %v1164, 5
      %v1167 = vsel %vm1055, %v1162, %v1166
      %s1168 = scalar_lea.vmem %s3, 4
      %v1169 = vld [vmem:[%s1168] sm:$0x3]
      %v1170 = vunpack.c.l.b16 %v1069
      %v1171 = vunpack.c.l.b16 %v1083
      %v1172 = vunpack.c.l.b16 %v1097
      %v1173 = vunpack.c.l.b16 %v1111
      %v1174 = vunpack.c.l.b16 %v1125
      %v1175 = vunpack.c.l.b16 %v1139
      %v1176 = vunpack.c.l.b16 %v1153
      %v1177 = vunpack.c.l.b16 %v1167
      %v1178 = vpack.c.b16 %v1171, %v1170
      %v1179 = vpack.c.b16 %v1173, %v1172
      %v1180 = vpack.c.b16 %v1175, %v1174
      %v1181 = vpack.c.b16 %v1177, %v1176
      %v1183 = vsel %vm855, %v1178, 0
      %v1186 = vsel %vm855, %v1179, 0
      %v1189 = vsel %vm855, %v1180, 0
      %v1192 = vsel %vm855, %v1181, 0
      %v1195 = vsel %vm868, %v1169, 0
      %1197 = vmatprep.subr.bf16.mxu0 0
      %1198 = vmatpush1.bf16.msra.mxu0 %v1195
      %1199 = vmatprep.subr.bf16.mxu0 0
      %1200 = vmatpush1.bf16.msra.mxu0 0
      %1201 = vmatprep.subr.bf16.mxu0 0
      %1202 = vmatpush1.bf16.msra.mxu0 0
      %1203 = vmatprep.subr.bf16.mxu0 0
      %1204 = vmatpush1.bf16.msra.mxu0 0
      %1205 = vmatprep.subr.bf16.mxu0 0
      %1206 = vmatpush1.bf16.msra.mxu0 0
      %1207 = vmatprep.subr.bf16.mxu0 0
      %1208 = vmatpush1.bf16.msra.mxu0 0
      %1209 = vmatprep.subr.bf16.mxu0 0
      %1210 = vmatpush1.bf16.msra.mxu0 0
      %1211 = vmatprep.subr.bf16.mxu0 0
      %1212 = vmatpush1.bf16.msra.mxu0 0
      %1213 = vmatprep.subr.bf16.mxu0 0
      %1214 = vmatpush1.bf16.msra.mxu0 0
      %1215 = vmatprep.subr.bf16.mxu0 0
      %1216 = vmatpush1.bf16.msra.mxu0 0
      %1217 = vmatprep.subr.bf16.mxu0 0
      %1218 = vmatpush1.bf16.msra.mxu0 0
      %1219 = vmatprep.subr.bf16.mxu0 0
      %1220 = vmatpush1.bf16.msra.mxu0 0
      %1221 = vmatprep.subr.bf16.mxu0 0
      %1222 = vmatpush1.bf16.msra.mxu0 0
      %1223 = vmatprep.subr.bf16.mxu0 0
      %1224 = vmatpush1.bf16.msra.mxu0 0
      %1225 = vmatprep.subr.bf16.mxu0 0
      %1226 = vmatpush1.bf16.msra.mxu0 0
      %1227 = vmatprep.subr.bf16.mxu0 0
      %1228 = vmatpush1.bf16.msra.mxu0 0
      %1229 = vmatprep.mubr.bf16.mxu0 0
      %1230 = vmatmul.mubr.bf16.gmra.mrb[0].mxu0 %v1183
      %v1231 = vpop.f32.mrb[0].mxu0
      %v1232 = vadd.f32 0.0, %v1231
      %v1233 = vpop.f32.mrb[0].mxu0
      %v1234 = vpop.f32.mrb[0].mxu0
      %v1235 = vadd.f32 0.0, %v1234
      %v1236 = vpop.f32.mrb[0].mxu0
      %1237 = vmatprep.mubr.bf16.mxu0 0
      %1238 = vmatmul.mubr.bf16.gmra.mrb[0].mxu0 %v1186
      %v1239 = vpop.f32.mrb[0].mxu0
      %v1240 = vadd.f32 0.0, %v1239
      %v1241 = vpop.f32.mrb[0].mxu0
      %v1242 = vpop.f32.mrb[0].mxu0
      %v1243 = vadd.f32 0.0, %v1242
      %v1244 = vpop.f32.mrb[0].mxu0
      %1245 = vmatprep.mubr.bf16.mxu0 0
      %1246 = vmatmul.mubr.bf16.gmra.mrb[0].mxu0 %v1189
      %v1247 = vpop.f32.mrb[0].mxu0
      %v1248 = vadd.f32 0.0, %v1247
      %v1249 = vpop.f32.mrb[0].mxu0
      %v1250 = vpop.f32.mrb[0].mxu0
      %v1251 = vadd.f32 0.0, %v1250
      %v1252 = vpop.f32.mrb[0].mxu0
      %1253 = vmatprep.mubr.bf16.mxu0 0
      %1254 = vmatmul.mubr.bf16.gmra.mrb[0].mxu0 %v1192
      %v1255 = vpop.f32.mrb[0].mxu0
      %v1256 = vadd.f32 0.0, %v1255
      %v1257 = vpop.f32.mrb[0].mxu0
      %v1258 = vpop.f32.mrb[0].mxu0
      %v1259 = vadd.f32 0.0, %v1258
      %v1260 = vpop.f32.mrb[0].mxu0
      %1261 = vdwg.mxu0
      %v1262 = vadd.f32 %v1007, %v1232
      %v1263 = vadd.f32 %v1010, %v1235
      %v1264 = vadd.f32 %v1015, %v1240
      %v1265 = vadd.f32 %v1018, %v1243
      %v1266 = vadd.f32 %v1023, %v1248
      %v1267 = vadd.f32 %v1026, %v1251
      %v1268 = vadd.f32 %v1031, %v1256
      %v1269 = vadd.f32 %v1034, %v1259
      %v1270 = vld [vmem:[%s717] sm:$0xf]
      %v1271 = vld [vmem:[%s717 + $0x8] sm:$0xf]
      %v1272 = vld [vmem:[%s717 + $0x10] sm:$0xf]
      %v1273 = vld [vmem:[%s717 + $0x18] sm:$0xf]
      %v1274 = vld [vmem:[%s717 + $0x20] sm:$0xf]
      %v1275 = vld [vmem:[%s717 + $0x28] sm:$0xf]
      %v1276 = vld [vmem:[%s717 + $0x30] sm:$0xf]
      %v1277 = vld [vmem:[%s717 + $0x38] sm:$0xf]
      %s1278 = scalar_lea.vmem %s3, 6
      %v1279 = vld [vmem:[%s1278] sm:$0x3]
      %v1288 = vunpack.c.l.b16 %v1270
      %v1289 = vunpack.c.l.b16 %v1271
      %v1290 = vunpack.c.l.b16 %v1272
      %v1291 = vunpack.c.l.b16 %v1273
      %v1292 = vunpack.c.l.b16 %v1274
      %v1293 = vunpack.c.l.b16 %v1275
      %v1294 = vunpack.c.l.b16 %v1276
      %v1295 = vunpack.c.l.b16 %v1277
      %v1296 = vpack.c.b16 %v1289, %v1288
      %v1297 = vpack.c.b16 %v1291, %v1290
      %v1298 = vpack.c.b16 %v1293, %v1292
      %v1299 = vpack.c.b16 %v1295, %v1294
      %v1301 = vsel %vm855, %v1296, 0
      %v1304 = vsel %vm855, %v1297, 0
      %v1307 = vsel %vm855, %v1298, 0
      %v1310 = vsel %vm855, %v1299, 0
      %v1313 = vsel %vm868, %v1279, 0
      %1315 = vmatprep.subr.bf16.mxu0 0
      %1316 = vmatpush1.bf16.msra.mxu0 %v1313
      %1317 = vmatprep.subr.bf16.mxu0 0
      %1318 = vmatpush1.bf16.msra.mxu0 0
      %1319 = vmatprep.subr.bf16.mxu0 0
      %1320 = vmatpush1.bf16.msra.mxu0 0
      %1321 = vmatprep.subr.bf16.mxu0 0
      %1322 = vmatpush1.bf16.msra.mxu0 0
      %1323 = vmatprep.subr.bf16.mxu0 0
      %1324 = vmatpush1.bf16.msra.mxu0 0
      %1325 = vmatprep.subr.bf16.mxu0 0
      %1326 = vmatpush1.bf16.msra.mxu0 0
      %1327 = vmatprep.subr.bf16.mxu0 0
      %1328 = vmatpush1.bf16.msra.mxu0 0
      %1329 = vmatprep.subr.bf16.mxu0 0
      %1330 = vmatpush1.bf16.msra.mxu0 0
      %1331 = vmatprep.subr.bf16.mxu0 0
      %1332 = vmatpush1.bf16.msra.mxu0 0
      %1333 = vmatprep.subr.bf16.mxu0 0
      %1334 = vmatpush1.bf16.msra.mxu0 0
      %1335 = vmatprep.subr.bf16.mxu0 0
      %1336 = vmatpush1.bf16.msra.mxu0 0
      %1337 = vmatprep.subr.bf16.mxu0 0
      %1338 = vmatpush1.bf16.msra.mxu0 0
      %1339 = vmatprep.subr.bf16.mxu0 0
      %1340 = vmatpush1.bf16.msra.mxu0 0
      %1341 = vmatprep.subr.bf16.mxu0 0
      %1342 = vmatpush1.bf16.msra.mxu0 0
      %1343 = vmatprep.subr.bf16.mxu0 0
      %1344 = vmatpush1.bf16.msra.mxu0 0
      %1345 = vmatprep.subr.bf16.mxu0 0
      %1346 = vmatpush1.bf16.msra.mxu0 0
      %1347 = vmatprep.mubr.bf16.mxu0 0
      %1348 = vmatmul.mubr.bf16.gmra.mrb[0].mxu0 %v1301
      %v1349 = vpop.f32.mrb[0].mxu0
      %v1350 = vadd.f32 0.0, %v1349
      %v1351 = vpop.f32.mrb[0].mxu0
      %v1352 = vpop.f32.mrb[0].mxu0
      %v1353 = vadd.f32 0.0, %v1352
      %v1354 = vpop.f32.mrb[0].mxu0
      %1355 = vmatprep.mubr.bf16.mxu0 0
      %1356 = vmatmul.mubr.bf16.gmra.mrb[0].mxu0 %v1304
      %v1357 = vpop.f32.mrb[0].mxu0
      %v1358 = vadd.f32 0.0, %v1357
      %v1359 = vpop.f32.mrb[0].mxu0
      %v1360 = vpop.f32.mrb[0].mxu0
      %v1361 = vadd.f32 0.0, %v1360
      %v1362 = vpop.f32.mrb[0].mxu0
      %1363 = vmatprep.mubr.bf16.mxu0 0
      %1364 = vmatmul.mubr.bf16.gmra.mrb[0].mxu0 %v1307
      %v1365 = vpop.f32.mrb[0].mxu0
      %v1366 = vadd.f32 0.0, %v1365
      %v1367 = vpop.f32.mrb[0].mxu0
      %v1368 = vpop.f32.mrb[0].mxu0
      %v1369 = vadd.f32 0.0, %v1368
      %v1370 = vpop.f32.mrb[0].mxu0
      %1371 = vmatprep.mubr.bf16.mxu0 0
      %1372 = vmatmul.mubr.bf16.gmra.mrb[0].mxu0 %v1310
      %v1373 = vpop.f32.mrb[0].mxu0
      %v1374 = vadd.f32 0.0, %v1373
      %v1375 = vpop.f32.mrb[0].mxu0
      %v1376 = vpop.f32.mrb[0].mxu0
      %v1377 = vadd.f32 0.0, %v1376
      %v1378 = vpop.f32.mrb[0].mxu0
      %1379 = vdwg.mxu0
      %v1380 = vadd.f32 %v1262, %v1350
      %v1381 = vadd.f32 %v1263, %v1353
      %v1382 = vadd.f32 %v1264, %v1358
      %v1383 = vadd.f32 %v1265, %v1361
      %v1384 = vadd.f32 %v1266, %v1366
      %v1385 = vadd.f32 %v1267, %v1369
      %v1386 = vadd.f32 %v1268, %v1374
      %v1387 = vadd.f32 %v1269, %v1377
      %v1388 = vld [vmem:[%s806] sm:$0xf]
      %v1389 = vld [vmem:[%s806 + $0x8] sm:$0xf]
      %v1390 = vld [vmem:[%s806 + $0x10] sm:$0xf]
      %v1391 = vld [vmem:[%s806 + $0x18] sm:$0xf]
      %v1392 = vld [vmem:[%s806 + $0x20] sm:$0xf]
      %v1393 = vld [vmem:[%s806 + $0x28] sm:$0xf]
      %v1394 = vld [vmem:[%s806 + $0x30] sm:$0xf]
      %v1395 = vld [vmem:[%s806 + $0x38] sm:$0xf]
      %s1396 = scalar_lea.vmem %s3, 8
      %v1397 = vld [vmem:[%s1396] sm:$0x3]
      %v1406 = vunpack.c.l.b16 %v1388
      %v1407 = vunpack.c.l.b16 %v1389
      %v1408 = vunpack.c.l.b16 %v1390
      %v1409 = vunpack.c.l.b16 %v1391
      %v1410 = vunpack.c.l.b16 %v1392
      %v1411 = vunpack.c.l.b16 %v1393
      %v1412 = vunpack.c.l.b16 %v1394
      %v1413 = vunpack.c.l.b16 %v1395
      %v1414 = vpack.c.b16 %v1407, %v1406
      %v1415 = vpack.c.b16 %v1409, %v1408
      %v1416 = vpack.c.b16 %v1411, %v1410
      %v1417 = vpack.c.b16 %v1413, %v1412
      %v1419 = vsel %vm855, %v1414, 0
      %v1422 = vsel %vm855, %v1415, 0
      %v1425 = vsel %vm855, %v1416, 0
      %v1428 = vsel %vm855, %v1417, 0
      %v1431 = vsel %vm868, %v1397, 0
      %1433 = vmatprep.subr.bf16.mxu0 0
      %1434 = vmatpush1.bf16.msra.mxu0 %v1431
      %1435 = vmatprep.subr.bf16.mxu0 0
      %1436 = vmatpush1.bf16.msra.mxu0 0
      %1437 = vmatprep.subr.bf16.mxu0 0
      %1438 = vmatpush1.bf16.msra.mxu0 0
      %1439 = vmatprep.subr.bf16.mxu0 0
      %1440 = vmatpush1.bf16.msra.mxu0 0
      %1441 = vmatprep.subr.bf16.mxu0 0
      %1442 = vmatpush1.bf16.msra.mxu0 0
      %1443 = vmatprep.subr.bf16.mxu0 0
      %1444 = vmatpush1.bf16.msra.mxu0 0
      %1445 = vmatprep.subr.bf16.mxu0 0
      %1446 = vmatpush1.bf16.msra.mxu0 0
      %1447 = vmatprep.subr.bf16.mxu0 0
      %1448 = vmatpush1.bf16.msra.mxu0 0
      %1449 = vmatprep.subr.bf16.mxu0 0
      %1450 = vmatpush1.bf16.msra.mxu0 0
      %1451 = vmatprep.subr.bf16.mxu0 0
      %1452 = vmatpush1.bf16.msra.mxu0 0
      %1453 = vmatprep.subr.bf16.mxu0 0
      %1454 = vmatpush1.bf16.msra.mxu0 0
      %1455 = vmatprep.subr.bf16.mxu0 0
      %1456 = vmatpush1.bf16.msra.mxu0 0
      %1457 = vmatprep.subr.bf16.mxu0 0
      %1458 = vmatpush1.bf16.msra.mxu0 0
      %1459 = vmatprep.subr.bf16.mxu0 0
      %1460 = vmatpush1.bf16.msra.mxu0 0
      %1461 = vmatprep.subr.bf16.mxu0 0
      %1462 = vmatpush1.bf16.msra.mxu0 0
      %1463 = vmatprep.subr.bf16.mxu0 0
      %1464 = vmatpush1.bf16.msra.mxu0 0
      %1465 = vmatprep.mubr.bf16.mxu0 0
      %1466 = vmatmul.mubr.bf16.gmra.mrb[0].mxu0 %v1419
      %v1467 = vpop.f32.mrb[0].mxu0
      %v1468 = vadd.f32 0.0, %v1467
      %v1469 = vpop.f32.mrb[0].mxu0
      %v1470 = vpop.f32.mrb[0].mxu0
      %v1471 = vadd.f32 0.0, %v1470
      %v1472 = vpop.f32.mrb[0].mxu0
      %1473 = vmatprep.mubr.bf16.mxu0 0
      %1474 = vmatmul.mubr.bf16.gmra.mrb[0].mxu0 %v1422
      %v1475 = vpop.f32.mrb[0].mxu0
      %v1476 = vadd.f32 0.0, %v1475
      %v1477 = vpop.f32.mrb[0].mxu0
      %v1478 = vpop.f32.mrb[0].mxu0
      %v1479 = vadd.f32 0.0, %v1478
      %v1480 = vpop.f32.mrb[0].mxu0
      %1481 = vmatprep.mubr.bf16.mxu0 0
      %1482 = vmatmul.mubr.bf16.gmra.mrb[0].mxu0 %v1425
      %v1483 = vpop.f32.mrb[0].mxu0
      %v1484 = vadd.f32 0.0, %v1483
      %v1485 = vpop.f32.mrb[0].mxu0
      %v1486 = vpop.f32.mrb[0].mxu0
      %v1487 = vadd.f32 0.0, %v1486
      %v1488 = vpop.f32.mrb[0].mxu0
      %1489 = vmatprep.mubr.bf16.mxu0 0
      %1490 = vmatmul.mubr.bf16.gmra.mrb[0].mxu0 %v1428
      %v1491 = vpop.f32.mrb[0].mxu0
      %v1492 = vadd.f32 0.0, %v1491
      %v1493 = vpop.f32.mrb[0].mxu0
      %v1494 = vpop.f32.mrb[0].mxu0
      %v1495 = vadd.f32 0.0, %v1494
      %v1496 = vpop.f32.mrb[0].mxu0
      %1497 = vdwg.mxu0
      %v1498 = vadd.f32 %v1380, %v1468
      %v1499 = vadd.f32 %v1381, %v1471
      %v1500 = vadd.f32 %v1382, %v1476
      %v1501 = vadd.f32 %v1383, %v1479
      %v1502 = vadd.f32 %v1384, %v1484
      %v1503 = vadd.f32 %v1385, %v1487
      %v1504 = vadd.f32 %v1386, %v1492
      %v1505 = vadd.f32 %v1387, %v1495
      %v1506 = vld [vmem:[%s717] sm:$0xf]
      %v1507 = vld [vmem:[%s717 + $0x4] sm:$0x1]
      %v1508 = vld [vmem:[%s717 + $0x8] sm:$0xf]
      %v1509 = vld [vmem:[%s717 + $0xc] sm:$0x1]
      %v1510 = vld [vmem:[%s717 + $0x10] sm:$0xf]
      %v1511 = vld [vmem:[%s717 + $0x14] sm:$0x1]
      %v1512 = vld [vmem:[%s717 + $0x18] sm:$0xf]
      %v1513 = vld [vmem:[%s717 + $0x1c] sm:$0x1]
      %v1514 = vld [vmem:[%s717 + $0x20] sm:$0xf]
      %v1515 = vld [vmem:[%s717 + $0x24] sm:$0x1]
      %v1516 = vld [vmem:[%s717 + $0x28] sm:$0xf]
      %v1517 = vld [vmem:[%s717 + $0x2c] sm:$0x1]
      %v1518 = vld [vmem:[%s717 + $0x30] sm:$0xf]
      %v1519 = vld [vmem:[%s717 + $0x34] sm:$0x1]
      %v1520 = vld [vmem:[%s717 + $0x38] sm:$0xf]
      %v1521 = vld [vmem:[%s717 + $0x3c] sm:$0x1]
      %v1523 = vshrl.u32 %v1506, 16
      %v1525 = vrot.slane %v1523, 4
      %v1526 = vshll.u32 %v1506, 16
      %v1528 = vrot.slane %v1526, 5
      %v1529 = vor.u32 %v1525, %v1528
      %v1530 = vrot.slane %v1529, 4
      %v1532 = vshll.u32 %v1507, 16
      %v1534 = vrot.slane %v1532, 5
      %v1535 = vsel %vm1055, %v1530, %v1534
      %v1537 = vshrl.u32 %v1508, 16
      %v1539 = vrot.slane %v1537, 4
      %v1540 = vshll.u32 %v1508, 16
      %v1542 = vrot.slane %v1540, 5
      %v1543 = vor.u32 %v1539, %v1542
      %v1544 = vrot.slane %v1543, 4
      %v1546 = vshll.u32 %v1509, 16
      %v1548 = vrot.slane %v1546, 5
      %v1549 = vsel %vm1055, %v1544, %v1548
      %v1551 = vshrl.u32 %v1510, 16
      %v1553 = vrot.slane %v1551, 4
      %v1554 = vshll.u32 %v1510, 16
      %v1556 = vrot.slane %v1554, 5
      %v1557 = vor.u32 %v1553, %v1556
      %v1558 = vrot.slane %v1557, 4
      %v1560 = vshll.u32 %v1511, 16
      %v1562 = vrot.slane %v1560, 5
      %v1563 = vsel %vm1055, %v1558, %v1562
      %v1565 = vshrl.u32 %v1512, 16
      %v1567 = vrot.slane %v1565, 4
      %v1568 = vshll.u32 %v1512, 16
      %v1570 = vrot.slane %v1568, 5
      %v1571 = vor.u32 %v1567, %v1570
      %v1572 = vrot.slane %v1571, 4
      %v1574 = vshll.u32 %v1513, 16
      %v1576 = vrot.slane %v1574, 5
      %v1577 = vsel %vm1055, %v1572, %v1576
      %v1579 = vshrl.u32 %v1514, 16
      %v1581 = vrot.slane %v1579, 4
      %v1582 = vshll.u32 %v1514, 16
      %v1584 = vrot.slane %v1582, 5
      %v1585 = vor.u32 %v1581, %v1584
      %v1586 = vrot.slane %v1585, 4
      %v1588 = vshll.u32 %v1515, 16
      %v1590 = vrot.slane %v1588, 5
      %v1591 = vsel %vm1055, %v1586, %v1590
      %v1593 = vshrl.u32 %v1516, 16
      %v1595 = vrot.slane %v1593, 4
      %v1596 = vshll.u32 %v1516, 16
      %v1598 = vrot.slane %v1596, 5
      %v1599 = vor.u32 %v1595, %v1598
      %v1600 = vrot.slane %v1599, 4
      %v1602 = vshll.u32 %v1517, 16
      %v1604 = vrot.slane %v1602, 5
      %v1605 = vsel %vm1055, %v1600, %v1604
      %v1607 = vshrl.u32 %v1518, 16
      %v1609 = vrot.slane %v1607, 4
      %v1610 = vshll.u32 %v1518, 16
      %v1612 = vrot.slane %v1610, 5
      %v1613 = vor.u32 %v1609, %v1612
      %v1614 = vrot.slane %v1613, 4
      %v1616 = vshll.u32 %v1519, 16
      %v1618 = vrot.slane %v1616, 5
      %v1619 = vsel %vm1055, %v1614, %v1618
      %v1621 = vshrl.u32 %v1520, 16
      %v1623 = vrot.slane %v1621, 4
      %v1624 = vshll.u32 %v1520, 16
      %v1626 = vrot.slane %v1624, 5
      %v1627 = vor.u32 %v1623, %v1626
      %v1628 = vrot.slane %v1627, 4
      %v1630 = vshll.u32 %v1521, 16
      %v1632 = vrot.slane %v1630, 5
      %v1633 = vsel %vm1055, %v1628, %v1632
      %s1634 = scalar_lea.vmem %s3, 10
      %v1635 = vld [vmem:[%s1634] sm:$0x3]
      %v1636 = vunpack.c.l.b16 %v1535
      %v1637 = vunpack.c.l.b16 %v1549
      %v1638 = vunpack.c.l.b16 %v1563
      %v1639 = vunpack.c.l.b16 %v1577
      %v1640 = vunpack.c.l.b16 %v1591
      %v1641 = vunpack.c.l.b16 %v1605
      %v1642 = vunpack.c.l.b16 %v1619
      %v1643 = vunpack.c.l.b16 %v1633
      %v1644 = vpack.c.b16 %v1637, %v1636
      %v1645 = vpack.c.b16 %v1639, %v1638
      %v1646 = vpack.c.b16 %v1641, %v1640
      %v1647 = vpack.c.b16 %v1643, %v1642
      %v1649 = vsel %vm855, %v1644, 0
      %v1652 = vsel %vm855, %v1645, 0
      %v1655 = vsel %vm855, %v1646, 0
      %v1658 = vsel %vm855, %v1647, 0
      %v1661 = vsel %vm868, %v1635, 0
      %1663 = vmatprep.subr.bf16.mxu0 0
      %1664 = vmatpush1.bf16.msra.mxu0 %v1661
      %1665 = vmatprep.subr.bf16.mxu0 0
      %1666 = vmatpush1.bf16.msra.mxu0 0
      %1667 = vmatprep.subr.bf16.mxu0 0
      %1668 = vmatpush1.bf16.msra.mxu0 0
      %1669 = vmatprep.subr.bf16.mxu0 0
      %1670 = vmatpush1.bf16.msra.mxu0 0
      %1671 = vmatprep.subr.bf16.mxu0 0
      %1672 = vmatpush1.bf16.msra.mxu0 0
      %1673 = vmatprep.subr.bf16.mxu0 0
      %1674 = vmatpush1.bf16.msra.mxu0 0
      %1675 = vmatprep.subr.bf16.mxu0 0
      %1676 = vmatpush1.bf16.msra.mxu0 0
      %1677 = vmatprep.subr.bf16.mxu0 0
      %1678 = vmatpush1.bf16.msra.mxu0 0
      %1679 = vmatprep.subr.bf16.mxu0 0
      %1680 = vmatpush1.bf16.msra.mxu0 0
      %1681 = vmatprep.subr.bf16.mxu0 0
      %1682 = vmatpush1.bf16.msra.mxu0 0
      %1683 = vmatprep.subr.bf16.mxu0 0
      %1684 = vmatpush1.bf16.msra.mxu0 0
      %1685 = vmatprep.subr.bf16.mxu0 0
      %1686 = vmatpush1.bf16.msra.mxu0 0
      %1687 = vmatprep.subr.bf16.mxu0 0
      %1688 = vmatpush1.bf16.msra.mxu0 0
      %1689 = vmatprep.subr.bf16.mxu0 0
      %1690 = vmatpush1.bf16.msra.mxu0 0
      %1691 = vmatprep.subr.bf16.mxu0 0
      %1692 = vmatpush1.bf16.msra.mxu0 0
      %1693 = vmatprep.subr.bf16.mxu0 0
      %1694 = vmatpush1.bf16.msra.mxu0 0
      %1695 = vmatprep.mubr.bf16.mxu0 0
      %1696 = vmatmul.mubr.bf16.gmra.mrb[0].mxu0 %v1649
      %v1697 = vpop.f32.mrb[0].mxu0
      %v1698 = vadd.f32 0.0, %v1697
      %v1699 = vpop.f32.mrb[0].mxu0
      %v1700 = vpop.f32.mrb[0].mxu0
      %v1701 = vadd.f32 0.0, %v1700
      %v1702 = vpop.f32.mrb[0].mxu0
      %1703 = vmatprep.mubr.bf16.mxu0 0
      %1704 = vmatmul.mubr.bf16.gmra.mrb[0].mxu0 %v1652
      %v1705 = vpop.f32.mrb[0].mxu0
      %v1706 = vadd.f32 0.0, %v1705
      %v1707 = vpop.f32.mrb[0].mxu0
      %v1708 = vpop.f32.mrb[0].mxu0
      %v1709 = vadd.f32 0.0, %v1708
      %v1710 = vpop.f32.mrb[0].mxu0
      %1711 = vmatprep.mubr.bf16.mxu0 0
      %1712 = vmatmul.mubr.bf16.gmra.mrb[0].mxu0 %v1655
      %v1713 = vpop.f32.mrb[0].mxu0
      %v1714 = vadd.f32 0.0, %v1713
      %v1715 = vpop.f32.mrb[0].mxu0
      %v1716 = vpop.f32.mrb[0].mxu0
      %v1717 = vadd.f32 0.0, %v1716
      %v1718 = vpop.f32.mrb[0].mxu0
      %1719 = vmatprep.mubr.bf16.mxu0 0
      %1720 = vmatmul.mubr.bf16.gmra.mrb[0].mxu0 %v1658
      %v1721 = vpop.f32.mrb[0].mxu0
      %v1722 = vadd.f32 0.0, %v1721
      %v1723 = vpop.f32.mrb[0].mxu0
      %v1724 = vpop.f32.mrb[0].mxu0
      %v1725 = vadd.f32 0.0, %v1724
      %v1726 = vpop.f32.mrb[0].mxu0
      %1727 = vdwg.mxu0
      %v1728 = vadd.f32 %v1498, %v1698
      %v1729 = vadd.f32 %v1499, %v1701
      %v1730 = vadd.f32 %v1500, %v1706
      %v1731 = vadd.f32 %v1501, %v1709
      %v1732 = vadd.f32 %v1502, %v1714
      %v1733 = vadd.f32 %v1503, %v1717
      %v1734 = vadd.f32 %v1504, %v1722
      %v1735 = vadd.f32 %v1505, %v1725
      %v1736 = vld [vmem:[%s467] sm:$0xf]
      %v1737 = vld [vmem:[%s467 + $0x8] sm:$0xf]
      %v1738 = vld [vmem:[%s467 + $0x10] sm:$0xf]
      %v1739 = vld [vmem:[%s467 + $0x18] sm:$0xf]
      %v1740 = vld [vmem:[%s467 + $0x20] sm:$0xf]
      %v1741 = vld [vmem:[%s467 + $0x28] sm:$0xf]
      %v1742 = vld [vmem:[%s467 + $0x30] sm:$0xf]
      %v1743 = vld [vmem:[%s467 + $0x38] sm:$0xf]
      %s1744 = scalar_lea.vmem %s3, 12
      %v1745 = vld [vmem:[%s1744] sm:$0x3]
      %v1754 = vunpack.c.l.b16 %v1736
      %v1755 = vunpack.c.l.b16 %v1737
      %v1756 = vunpack.c.l.b16 %v1738
      %v1757 = vunpack.c.l.b16 %v1739
      %v1758 = vunpack.c.l.b16 %v1740
      %v1759 = vunpack.c.l.b16 %v1741
      %v1760 = vunpack.c.l.b16 %v1742
      %v1761 = vunpack.c.l.b16 %v1743
      %v1762 = vpack.c.b16 %v1755, %v1754
      %v1763 = vpack.c.b16 %v1757, %v1756
      %v1764 = vpack.c.b16 %v1759, %v1758
      %v1765 = vpack.c.b16 %v1761, %v1760
      %v1767 = vsel %vm855, %v1762, 0
      %v1770 = vsel %vm855, %v1763, 0
      %v1773 = vsel %vm855, %v1764, 0
      %v1776 = vsel %vm855, %v1765, 0
      %v1779 = vsel %vm868, %v1745, 0
      %1781 = vmatprep.subr.bf16.mxu0 0
      %1782 = vmatpush1.bf16.msra.mxu0 %v1779
      %1783 = vmatprep.subr.bf16.mxu0 0
      %1784 = vmatpush1.bf16.msra.mxu0 0
      %1785 = vmatprep.subr.bf16.mxu0 0
      %1786 = vmatpush1.bf16.msra.mxu0 0
      %1787 = vmatprep.subr.bf16.mxu0 0
      %1788 = vmatpush1.bf16.msra.mxu0 0
      %1789 = vmatprep.subr.bf16.mxu0 0
      %1790 = vmatpush1.bf16.msra.mxu0 0
      %1791 = vmatprep.subr.bf16.mxu0 0
      %1792 = vmatpush1.bf16.msra.mxu0 0
      %1793 = vmatprep.subr.bf16.mxu0 0
      %1794 = vmatpush1.bf16.msra.mxu0 0
      %1795 = vmatprep.subr.bf16.mxu0 0
      %1796 = vmatpush1.bf16.msra.mxu0 0
      %1797 = vmatprep.subr.bf16.mxu0 0
      %1798 = vmatpush1.bf16.msra.mxu0 0
      %1799 = vmatprep.subr.bf16.mxu0 0
      %1800 = vmatpush1.bf16.msra.mxu0 0
      %1801 = vmatprep.subr.bf16.mxu0 0
      %1802 = vmatpush1.bf16.msra.mxu0 0
      %1803 = vmatprep.subr.bf16.mxu0 0
      %1804 = vmatpush1.bf16.msra.mxu0 0
      %1805 = vmatprep.subr.bf16.mxu0 0
      %1806 = vmatpush1.bf16.msra.mxu0 0
      %1807 = vmatprep.subr.bf16.mxu0 0
      %1808 = vmatpush1.bf16.msra.mxu0 0
      %1809 = vmatprep.subr.bf16.mxu0 0
      %1810 = vmatpush1.bf16.msra.mxu0 0
      %1811 = vmatprep.subr.bf16.mxu0 0
      %1812 = vmatpush1.bf16.msra.mxu0 0
      %1813 = vmatprep.mubr.bf16.mxu0 0
      %1814 = vmatmul.mubr.bf16.gmra.mrb[0].mxu0 %v1767
      %v1815 = vpop.f32.mrb[0].mxu0
      %v1816 = vadd.f32 0.0, %v1815
      %v1817 = vpop.f32.mrb[0].mxu0
      %v1818 = vpop.f32.mrb[0].mxu0
      %v1819 = vadd.f32 0.0, %v1818
      %v1820 = vpop.f32.mrb[0].mxu0
      %1821 = vmatprep.mubr.bf16.mxu0 0
      %1822 = vmatmul.mubr.bf16.gmra.mrb[0].mxu0 %v1770
      %v1823 = vpop.f32.mrb[0].mxu0
      %v1824 = vadd.f32 0.0, %v1823
      %v1825 = vpop.f32.mrb[0].mxu0
      %v1826 = vpop.f32.mrb[0].mxu0
      %v1827 = vadd.f32 0.0, %v1826
      %v1828 = vpop.f32.mrb[0].mxu0
      %1829 = vmatprep.mubr.bf16.mxu0 0
      %1830 = vmatmul.mubr.bf16.gmra.mrb[0].mxu0 %v1773
      %v1831 = vpop.f32.mrb[0].mxu0
      %v1832 = vadd.f32 0.0, %v1831
      %v1833 = vpop.f32.mrb[0].mxu0
      %v1834 = vpop.f32.mrb[0].mxu0
      %v1835 = vadd.f32 0.0, %v1834
      %v1836 = vpop.f32.mrb[0].mxu0
      %1837 = vmatprep.mubr.bf16.mxu0 0
      %1838 = vmatmul.mubr.bf16.gmra.mrb[0].mxu0 %v1776
      %v1839 = vpop.f32.mrb[0].mxu0
      %v1840 = vadd.f32 0.0, %v1839
      %v1841 = vpop.f32.mrb[0].mxu0
      %v1842 = vpop.f32.mrb[0].mxu0
      %v1843 = vadd.f32 0.0, %v1842
      %v1844 = vpop.f32.mrb[0].mxu0
      %1845 = vdwg.mxu0
      %v1846 = vadd.f32 %v1728, %v1816
      %v1847 = vadd.f32 %v1729, %v1819
      %v1848 = vadd.f32 %v1730, %v1824
      %v1849 = vadd.f32 %v1731, %v1827
      %v1850 = vadd.f32 %v1732, %v1832
      %v1851 = vadd.f32 %v1733, %v1835
      %v1852 = vadd.f32 %v1734, %v1840
      %v1853 = vadd.f32 %v1735, %v1843
      %v1854 = vld [vmem:[%s563] sm:$0xf]
      %v1855 = vld [vmem:[%s563 + $0x8] sm:$0xf]
      %v1856 = vld [vmem:[%s563 + $0x10] sm:$0xf]
      %v1857 = vld [vmem:[%s563 + $0x18] sm:$0xf]
      %v1858 = vld [vmem:[%s563 + $0x20] sm:$0xf]
      %v1859 = vld [vmem:[%s563 + $0x28] sm:$0xf]
      %v1860 = vld [vmem:[%s563 + $0x30] sm:$0xf]
      %v1861 = vld [vmem:[%s563 + $0x38] sm:$0xf]
      %s1862 = scalar_lea.vmem %s3, 14
      %v1863 = vld [vmem:[%s1862] sm:$0x3]
      %v1872 = vunpack.c.l.b16 %v1854
      %v1873 = vunpack.c.l.b16 %v1855
      %v1874 = vunpack.c.l.b16 %v1856
      %v1875 = vunpack.c.l.b16 %v1857
      %v1876 = vunpack.c.l.b16 %v1858
      %v1877 = vunpack.c.l.b16 %v1859
      %v1878 = vunpack.c.l.b16 %v1860
      %v1879 = vunpack.c.l.b16 %v1861
      %v1880 = vpack.c.b16 %v1873, %v1872
      %v1881 = vpack.c.b16 %v1875, %v1874
      %v1882 = vpack.c.b16 %v1877, %v1876
      %v1883 = vpack.c.b16 %v1879, %v1878
      %v1885 = vsel %vm855, %v1880, 0
      %v1888 = vsel %vm855, %v1881, 0
      %v1891 = vsel %vm855, %v1882, 0
      %v1894 = vsel %vm855, %v1883, 0
      %v1897 = vsel %vm868, %v1863, 0
      %1899 = vmatprep.subr.bf16.mxu0 0
      %1900 = vmatpush1.bf16.msra.mxu0 %v1897
      %1901 = vmatprep.subr.bf16.mxu0 0
      %1902 = vmatpush1.bf16.msra.mxu0 0
      %1903 = vmatprep.subr.bf16.mxu0 0
      %1904 = vmatpush1.bf16.msra.mxu0 0
      %1905 = vmatprep.subr.bf16.mxu0 0
      %1906 = vmatpush1.bf16.msra.mxu0 0
      %1907 = vmatprep.subr.bf16.mxu0 0
      %1908 = vmatpush1.bf16.msra.mxu0 0
      %1909 = vmatprep.subr.bf16.mxu0 0
      %1910 = vmatpush1.bf16.msra.mxu0 0
      %1911 = vmatprep.subr.bf16.mxu0 0
      %1912 = vmatpush1.bf16.msra.mxu0 0
      %1913 = vmatprep.subr.bf16.mxu0 0
      %1914 = vmatpush1.bf16.msra.mxu0 0
      %1915 = vmatprep.subr.bf16.mxu0 0
      %1916 = vmatpush1.bf16.msra.mxu0 0
      %1917 = vmatprep.subr.bf16.mxu0 0
      %1918 = vmatpush1.bf16.msra.mxu0 0
      %1919 = vmatprep.subr.bf16.mxu0 0
      %1920 = vmatpush1.bf16.msra.mxu0 0
      %1921 = vmatprep.subr.bf16.mxu0 0
      %1922 = vmatpush1.bf16.msra.mxu0 0
      %1923 = vmatprep.subr.bf16.mxu0 0
      %1924 = vmatpush1.bf16.msra.mxu0 0
      %1925 = vmatprep.subr.bf16.mxu0 0
      %1926 = vmatpush1.bf16.msra.mxu0 0
      %1927 = vmatprep.subr.bf16.mxu0 0
      %1928 = vmatpush1.bf16.msra.mxu0 0
      %1929 = vmatprep.subr.bf16.mxu0 0
      %1930 = vmatpush1.bf16.msra.mxu0 0
      %1931 = vmatprep.mubr.bf16.mxu0 0
      %1932 = vmatmul.mubr.bf16.gmra.mrb[0].mxu0 %v1885
      %v1933 = vpop.f32.mrb[0].mxu0
      %v1934 = vadd.f32 0.0, %v1933
      %v1935 = vpop.f32.mrb[0].mxu0
      %v1936 = vpop.f32.mrb[0].mxu0
      %v1937 = vadd.f32 0.0, %v1936
      %v1938 = vpop.f32.mrb[0].mxu0
      %1939 = vmatprep.mubr.bf16.mxu0 0
      %1940 = vmatmul.mubr.bf16.gmra.mrb[0].mxu0 %v1888
      %v1941 = vpop.f32.mrb[0].mxu0
      %v1942 = vadd.f32 0.0, %v1941
      %v1943 = vpop.f32.mrb[0].mxu0
      %v1944 = vpop.f32.mrb[0].mxu0
      %v1945 = vadd.f32 0.0, %v1944
      %v1946 = vpop.f32.mrb[0].mxu0
      %1947 = vmatprep.mubr.bf16.mxu0 0
      %1948 = vmatmul.mubr.bf16.gmra.mrb[0].mxu0 %v1891
      %v1949 = vpop.f32.mrb[0].mxu0
      %v1950 = vadd.f32 0.0, %v1949
      %v1951 = vpop.f32.mrb[0].mxu0
      %v1952 = vpop.f32.mrb[0].mxu0
      %v1953 = vadd.f32 0.0, %v1952
      %v1954 = vpop.f32.mrb[0].mxu0
      %1955 = vmatprep.mubr.bf16.mxu0 0
      %1956 = vmatmul.mubr.bf16.gmra.mrb[0].mxu0 %v1894
      %v1957 = vpop.f32.mrb[0].mxu0
      %v1958 = vadd.f32 0.0, %v1957
      %v1959 = vpop.f32.mrb[0].mxu0
      %v1960 = vpop.f32.mrb[0].mxu0
      %v1961 = vadd.f32 0.0, %v1960
      %v1962 = vpop.f32.mrb[0].mxu0
      %1963 = vdwg.mxu0
      %v1964 = vadd.f32 %v1846, %v1934
      %v1965 = vadd.f32 %v1847, %v1937
      %v1966 = vadd.f32 %v1848, %v1942
      %v1967 = vadd.f32 %v1849, %v1945
      %v1968 = vadd.f32 %v1850, %v1950
      %v1969 = vadd.f32 %v1851, %v1953
      %v1970 = vadd.f32 %v1852, %v1958
      %v1971 = vadd.f32 %v1853, %v1961
      %v1972 = vld [vmem:[%s467] sm:$0xf]
      %v1973 = vld [vmem:[%s467 + $0x4] sm:$0x1]
      %v1974 = vld [vmem:[%s467 + $0x8] sm:$0xf]
      %v1975 = vld [vmem:[%s467 + $0xc] sm:$0x1]
      %v1976 = vld [vmem:[%s467 + $0x10] sm:$0xf]
      %v1977 = vld [vmem:[%s467 + $0x14] sm:$0x1]
      %v1978 = vld [vmem:[%s467 + $0x18] sm:$0xf]
      %v1979 = vld [vmem:[%s467 + $0x1c] sm:$0x1]
      %v1980 = vld [vmem:[%s467 + $0x20] sm:$0xf]
      %v1981 = vld [vmem:[%s467 + $0x24] sm:$0x1]
      %v1982 = vld [vmem:[%s467 + $0x28] sm:$0xf]
      %v1983 = vld [vmem:[%s467 + $0x2c] sm:$0x1]
      %v1984 = vld [vmem:[%s467 + $0x30] sm:$0xf]
      %v1985 = vld [vmem:[%s467 + $0x34] sm:$0x1]
      %v1986 = vld [vmem:[%s467 + $0x38] sm:$0xf]
      %v1987 = vld [vmem:[%s467 + $0x3c] sm:$0x1]
      %v1989 = vshrl.u32 %v1972, 16
      %v1991 = vrot.slane %v1989, 4
      %v1992 = vshll.u32 %v1972, 16
      %v1994 = vrot.slane %v1992, 5
      %v1995 = vor.u32 %v1991, %v1994
      %v1996 = vrot.slane %v1995, 4
      %v1998 = vshll.u32 %v1973, 16
      %v2000 = vrot.slane %v1998, 5
      %v2001 = vsel %vm1055, %v1996, %v2000
      %v2003 = vshrl.u32 %v1974, 16
      %v2005 = vrot.slane %v2003, 4
      %v2006 = vshll.u32 %v1974, 16
      %v2008 = vrot.slane %v2006, 5
      %v2009 = vor.u32 %v2005, %v2008
      %v2010 = vrot.slane %v2009, 4
      %v2012 = vshll.u32 %v1975, 16
      %v2014 = vrot.slane %v2012, 5
      %v2015 = vsel %vm1055, %v2010, %v2014
      %v2017 = vshrl.u32 %v1976, 16
      %v2019 = vrot.slane %v2017, 4
      %v2020 = vshll.u32 %v1976, 16
      %v2022 = vrot.slane %v2020, 5
      %v2023 = vor.u32 %v2019, %v2022
      %v2024 = vrot.slane %v2023, 4
      %v2026 = vshll.u32 %v1977, 16
      %v2028 = vrot.slane %v2026, 5
      %v2029 = vsel %vm1055, %v2024, %v2028
      %v2031 = vshrl.u32 %v1978, 16
      %v2033 = vrot.slane %v2031, 4
      %v2034 = vshll.u32 %v1978, 16
      %v2036 = vrot.slane %v2034, 5
      %v2037 = vor.u32 %v2033, %v2036
      %v2038 = vrot.slane %v2037, 4
      %v2040 = vshll.u32 %v1979, 16
      %v2042 = vrot.slane %v2040, 5
      %v2043 = vsel %vm1055, %v2038, %v2042
      %v2045 = vshrl.u32 %v1980, 16
      %v2047 = vrot.slane %v2045, 4
      %v2048 = vshll.u32 %v1980, 16
      %v2050 = vrot.slane %v2048, 5
      %v2051 = vor.u32 %v2047, %v2050
      %v2052 = vrot.slane %v2051, 4
      %v2054 = vshll.u32 %v1981, 16
      %v2056 = vrot.slane %v2054, 5
      %v2057 = vsel %vm1055, %v2052, %v2056
      %v2059 = vshrl.u32 %v1982, 16
      %v2061 = vrot.slane %v2059, 4
      %v2062 = vshll.u32 %v1982, 16
      %v2064 = vrot.slane %v2062, 5
      %v2065 = vor.u32 %v2061, %v2064
      %v2066 = vrot.slane %v2065, 4
      %v2068 = vshll.u32 %v1983, 16
      %v2070 = vrot.slane %v2068, 5
      %v2071 = vsel %vm1055, %v2066, %v2070
      %v2073 = vshrl.u32 %v1984, 16
      %v2075 = vrot.slane %v2073, 4
      %v2076 = vshll.u32 %v1984, 16
      %v2078 = vrot.slane %v2076, 5
      %v2079 = vor.u32 %v2075, %v2078
      %v2080 = vrot.slane %v2079, 4
      %v2082 = vshll.u32 %v1985, 16
      %v2084 = vrot.slane %v2082, 5
      %v2085 = vsel %vm1055, %v2080, %v2084
      %v2087 = vshrl.u32 %v1986, 16
      %v2089 = vrot.slane %v2087, 4
      %v2090 = vshll.u32 %v1986, 16
      %v2092 = vrot.slane %v2090, 5
      %v2093 = vor.u32 %v2089, %v2092
      %v2094 = vrot.slane %v2093, 4
      %v2096 = vshll.u32 %v1987, 16
      %v2098 = vrot.slane %v2096, 5
      %v2099 = vsel %vm1055, %v2094, %v2098
      %s2100 = scalar_lea.vmem %s3, 16
      %v2101 = vld [vmem:[%s2100] sm:$0x3]
      %v2102 = vunpack.c.l.b16 %v2001
      %v2103 = vunpack.c.l.b16 %v2015
      %v2104 = vunpack.c.l.b16 %v2029
      %v2105 = vunpack.c.l.b16 %v2043
      %v2106 = vunpack.c.l.b16 %v2057
      %v2107 = vunpack.c.l.b16 %v2071
      %v2108 = vunpack.c.l.b16 %v2085
      %v2109 = vunpack.c.l.b16 %v2099
      %v2110 = vpack.c.b16 %v2103, %v2102
      %v2111 = vpack.c.b16 %v2105, %v2104
      %v2112 = vpack.c.b16 %v2107, %v2106
      %v2113 = vpack.c.b16 %v2109, %v2108
      %v2115 = vsel %vm855, %v2110, 0
      %v2118 = vsel %vm855, %v2111, 0
      %v2121 = vsel %vm855, %v2112, 0
      %v2124 = vsel %vm855, %v2113, 0
      %v2127 = vsel %vm868, %v2101, 0
      %2129 = vmatprep.subr.bf16.mxu0 0
      %2130 = vmatpush1.bf16.msra.mxu0 %v2127
      %2131 = vmatprep.subr.bf16.mxu0 0
      %2132 = vmatpush1.bf16.msra.mxu0 0
      %2133 = vmatprep.subr.bf16.mxu0 0
      %2134 = vmatpush1.bf16.msra.mxu0 0
      %2135 = vmatprep.subr.bf16.mxu0 0
      %2136 = vmatpush1.bf16.msra.mxu0 0
      %2137 = vmatprep.subr.bf16.mxu0 0
      %2138 = vmatpush1.bf16.msra.mxu0 0
      %2139 = vmatprep.subr.bf16.mxu0 0
      %2140 = vmatpush1.bf16.msra.mxu0 0
      %2141 = vmatprep.subr.bf16.mxu0 0
      %2142 = vmatpush1.bf16.msra.mxu0 0
      %2143 = vmatprep.subr.bf16.mxu0 0
      %2144 = vmatpush1.bf16.msra.mxu0 0
      %2145 = vmatprep.subr.bf16.mxu0 0
      %2146 = vmatpush1.bf16.msra.mxu0 0
      %2147 = vmatprep.subr.bf16.mxu0 0
      %2148 = vmatpush1.bf16.msra.mxu0 0
      %2149 = vmatprep.subr.bf16.mxu0 0
      %2150 = vmatpush1.bf16.msra.mxu0 0
      %2151 = vmatprep.subr.bf16.mxu0 0
      %2152 = vmatpush1.bf16.msra.mxu0 0
      %2153 = vmatprep.subr.bf16.mxu0 0
      %2154 = vmatpush1.bf16.msra.mxu0 0
      %2155 = vmatprep.subr.bf16.mxu0 0
      %2156 = vmatpush1.bf16.msra.mxu0 0
      %2157 = vmatprep.subr.bf16.mxu0 0
      %2158 = vmatpush1.bf16.msra.mxu0 0
      %2159 = vmatprep.subr.bf16.mxu0 0
      %2160 = vmatpush1.bf16.msra.mxu0 0
      %2161 = vmatprep.mubr.bf16.mxu0 0
      %2162 = vmatmul.mubr.bf16.gmra.mrb[0].mxu0 %v2115
      %v2163 = vpop.f32.mrb[0].mxu0
      %v2164 = vadd.f32 0.0, %v2163
      %v2165 = vpop.f32.mrb[0].mxu0
      %v2166 = vpop.f32.mrb[0].mxu0
      %v2167 = vadd.f32 0.0, %v2166
      %v2168 = vpop.f32.mrb[0].mxu0
      %2169 = vmatprep.mubr.bf16.mxu0 0
      %2170 = vmatmul.mubr.bf16.gmra.mrb[0].mxu0 %v2118
      %v2171 = vpop.f32.mrb[0].mxu0
      %v2172 = vadd.f32 0.0, %v2171
      %v2173 = vpop.f32.mrb[0].mxu0
      %v2174 = vpop.f32.mrb[0].mxu0
      %v2175 = vadd.f32 0.0, %v2174
      %v2176 = vpop.f32.mrb[0].mxu0
      %2177 = vmatprep.mubr.bf16.mxu0 0
      %2178 = vmatmul.mubr.bf16.gmra.mrb[0].mxu0 %v2121
      %v2179 = vpop.f32.mrb[0].mxu0
      %v2180 = vadd.f32 0.0, %v2179
      %v2181 = vpop.f32.mrb[0].mxu0
      %v2182 = vpop.f32.mrb[0].mxu0
      %v2183 = vadd.f32 0.0, %v2182
      %v2184 = vpop.f32.mrb[0].mxu0
      %2185 = vmatprep.mubr.bf16.mxu0 0
      %2186 = vmatmul.mubr.bf16.gmra.mrb[0].mxu0 %v2124
      %v2187 = vpop.f32.mrb[0].mxu0
      %v2188 = vadd.f32 0.0, %v2187
      %v2189 = vpop.f32.mrb[0].mxu0
      %v2190 = vpop.f32.mrb[0].mxu0
      %v2191 = vadd.f32 0.0, %v2190
      %v2192 = vpop.f32.mrb[0].mxu0
      %2193 = vdwg.mxu0
      %v2194 = vadd.f32 %v1964, %v2164
      %v2195 = vadd.f32 %v1965, %v2167
      %v2196 = vadd.f32 %v1966, %v2172
      %v2197 = vadd.f32 %v1967, %v2175
      %v2198 = vadd.f32 %v1968, %v2180
      %v2199 = vadd.f32 %v1969, %v2183
      %v2200 = vadd.f32 %v1970, %v2188
      %v2201 = vadd.f32 %v1971, %v2191
      %v2202 = vld [vmem:[%s4] sm:$0x1]
      %v2204 = vlaneseq
      %v2205 = vshrl.u32 %v2204, 7
      %v2206 = vsub.s32 0, %v2205
      %v2207 = vrot.slane %v2202, %v2206
      %v2209 = vadd.f32 %v2194, %v2207
      %v2210 = vadd.f32 %v2195, %v2207
      %v2211 = vadd.f32 %v2196, %v2207
      %v2212 = vadd.f32 %v2197, %v2207
      %v2213 = vadd.f32 %v2198, %v2207
      %v2214 = vadd.f32 %v2199, %v2207
      %v2215 = vadd.f32 %v2200, %v2207
      %v2216 = vadd.f32 %v2201, %v2207
      %v2217 = vmax.f32 %v2209, 0.0
      %v2218 = vmax.f32 %v2210, 0.0
      %v2219 = vmax.f32 %v2211, 0.0
      %v2220 = vmax.f32 %v2212, 0.0
      %v2221 = vmax.f32 %v2213, 0.0
      %v2222 = vmax.f32 %v2214, 0.0
      %v2223 = vmax.f32 %v2215, 0.0
      %v2224 = vmax.f32 %v2216, 0.0
      %v2225 = vpack.c.bf16 %v2217, %v2217
      %v2226 = vpack.c.bf16 %v2218, %v2218
      %v2227 = vpack.c.bf16 %v2219, %v2219
      %v2228 = vpack.c.bf16 %v2220, %v2220
      %v2229 = vpack.c.bf16 %v2221, %v2221
      %v2230 = vpack.c.bf16 %v2222, %v2222
      %v2231 = vpack.c.bf16 %v2223, %v2223
      %v2232 = vpack.c.bf16 %v2224, %v2224
      %2233 = vst [vmem:[%s224] sm:$0xf] %v2225
      %2234 = vst [vmem:[%s224 + $0x4] sm:$0xf] %v2226
      %2235 = vst [vmem:[%s224 + $0x8] sm:$0xf] %v2227
      %2236 = vst [vmem:[%s224 + $0xc] sm:$0xf] %v2228
      %2237 = vst [vmem:[%s224 + $0x10] sm:$0xf] %v2229
      %2238 = vst [vmem:[%s224 + $0x14] sm:$0xf] %v2230
      %2239 = vst [vmem:[%s224 + $0x18] sm:$0xf] %v2231
      %2240 = vst [vmem:[%s224 + $0x1c] sm:$0xf] %v2232
      %p2241 = scmp.lt.s32.totalorder %s16, 1
      %s2242 = scalar_select %p2241, %s16, 1
      %s2243 = smul.addr %s2242, 8
      %s2244 = smul.addr %s2243, 4
      %s2245 = scalar_lea.vmem %s5, %s2244
      // Predicated region
      $region41: #{basic_block_forward.2} parent=39 // pred_check
        %p2246 = pneg %p144
      $region42: #{basic_block_forward.2} parent=39 // pred_check_branch
        %2248 = sbr.rel (%p2246) target = $region44
      $region43: #{basic_block_forward.2} parent=39 // pred_region
        _
      $region44: #{basic_block_forward.2} parent=39 // pred_fallthru
        _
    $region40: #{basic_block_forward.2} parent=5 // pred_fallthru
      _
    %p2249 = scmp.le.s32.totalorder 2, %s11
    // Predicated region
    $region45: #{basic_block_forward.2} parent=5 // pred_check
      %p2250 = pneg %p2249
    $region46: #{basic_block_forward.2} parent=5 // pred_check_branch
      %2252 = sbr.rel (%p2250) target = $region48
    $region47: #{basic_block_forward.2} parent=5 // pred_region
      %s2253 = ssub.s32 %s11, 2
      // Predicated region
      $region49: #{basic_block_forward.2} parent=47 // pred_check
        %p2254 = pneg %p150
      $region50: #{basic_block_forward.2} parent=47 // pred_check_branch
        %2256 = sbr.rel (%p2254) target = $region52
      $region51: #{basic_block_forward.2} parent=47 // pred_region
        %p2257 = scmp.lt.s32.totalorder %s17, 1
        %s2258 = scalar_select %p2257, %s17, 1
        %s2259 = smul.addr %s2258, 8
        %s2260 = smul.addr %s2259, 4
        %s2261 = scalar_lea.vmem %s5, %s2260
      $region52: #{basic_block_forward.2} parent=47 // pred_fallthru
        _
    $region48: #{basic_block_forward.2} parent=5 // pred_fallthru
      _
  $region6: #{basic_block_forward.2} parent=0 // loop_footer
    %s15 = sadd.s32 1, %s11
  $region7: #{basic_block_forward.2} parent=0 // loop_footer_branch
    %10 = sbr.rel target = $region3
  $region8: #{basic_block_forward.2} parent=0 // loop_exit
    _

// kernel: basic_block_forward.3
$region0: #{basic_block_forward.3}
  #allocation0 [shape = 'u32[]', space=smem, size = 0x4, offset = 0x4, fixed_abs, tag = 'smem constant byte address 0x4 - core index']
  #allocation1 [shape = 'u32[144,128]{1,0:T(1,128)}', space=vmem, size = 0x12000, scoped, tag = 'internal scratch']
  #allocation2 [shape = 'bf16[10,10,128]{2,1,0:T(8,128)(2,1)}', space=vmem, size = 0xa000, scoped, tag = 'scratch operand']
  %s0 = inlined_call_operand.vmem [shape: bf16[2,8,8,128], index: 0, kind: input, shape index: {}]
  %s1 = inlined_call_operand.vmem [shape: bf16[9,128,128], index: 1, kind: input, shape index: {}]
  %s2 = inlined_call_operand.vmem [shape: f32[2,8,8,4], index: 2, kind: input, shape index: {}]
  %s3 = inlined_call_operand.vmem [shape: f32[1,4], index: 3, kind: input, shape index: {}]
  %s4 = inlined_call_operand.vmem [shape: f32[1,4], index: 4, kind: input, shape index: {}]
  %s5 = inlined_call_operand.vmem [shape: bf16[4,128], index: 5, kind: input, shape index: {}]
  %s6 = inlined_call_operand.hbm [shape: f32[2,8,8,128], index: 6, kind: output, shape index: {}]
  %s7 = sld [smem:[#allocation0]]
  $region57: #{basic_block_forward.3} parent=0
    _
  %s9 = ssub.s32 1, %s7
  %s10 = scalar_select 0, %s9, %s7
  $region1: #{basic_block_forward.3} parent=0
    #allocation3 [shape = 'u8[65536]{0}', space=vmem, size = 0x10000, scoped, tag = 'output window, operand 0']
    #allocation4 [shape = 's32[2]{0}', space=sflag, size = 0x8, scoped, tag = 'scoped memory for basic_block_forward.3']
    %11 = vsyncpa [#allocation4], 0
    %s12 = scalar_lea.sflag [#allocation4], 1
    %13 = vsyncpa %s12, 0
    loop: start=0, step=1, limit=4
    $region2: #{basic_block_forward.3} parent=1 // loop_pre_header
      _
    $region3: #{basic_block_forward.3} parent=1 // loop_header
      %s15 = sphi 0, %s19
      %p16 = scmp.ge.s32.totalorder %s15, 4
      %s25 = sphi 0, %s27
      %s28 = sphi 0, %s25
      %s29 = sphi 0, %s28
      %s45 = sphi 0, %s29
      %s49 = sphi 0, %s49
      %s51 = sphi 0, %s49
      %s52 = sphi 0, %s51
      %s66 = sphi 0, %s52
      %s72 = sphi 0, %s74
      %s75 = sphi 0, %s72
      %s76 = sphi 0, %s75
      %s92 = sphi 0, %s76
      %s96 = sphi 0, %s96
      %s98 = sphi 0, %s96
      %s99 = sphi 0, %s98
      %s113 = sphi 0, %s99
      %s117 = sphi 0, %s117
      %s119 = sphi 0, %s117
      %s120 = sphi 0, %s119
      %s134 = sphi 0, %s120
      %s138 = sphi 0, %s138
      %s140 = sphi 0, %s138
      %s141 = sphi 0, %s140
      %s155 = sphi 0, %s141
      %s161 = sphi 0, %s163
      %s164 = sphi 0, %s161
      %s165 = sphi 0, %s164
      %s181 = sphi 0, %s165
    $region4: #{basic_block_forward.3} parent=1 // loop_header_branch
      %18 = sbr.rel (%p16) target = $region8
    $region5: #{basic_block_forward.3} parent=1 // loop_body
      %s20 = ssub.s32 %s15, 1
      %s21 = ssub.s32 %s15, 2
      %s22 = sadd.s32 %s15, 1
      %s23 = ssub.s32 %s15, %s22
      %p24 = scmp.eq.s32.totalorder %s23, 0
      %s26 = sadd.s32 %s25, 1
      %s27 = scalar_select %p24, %s25, %s26
      %p30 = pneg %p24
      %p31 = scmp.eq.s32.totalorder %s15, 1
      %p32 = por %p30, %p31
      %p33 = scmp.ne.s32.totalorder %s25, %s28
      %p34 = scmp.eq.s32.totalorder %s15, 0
      %p35 = por %p33, %p34
      %p36 = scmp.ne.s32.totalorder %s25, %s28
      %p37 = scmp.eq.s32.totalorder %s20, 1
      %p38 = por %p36, %p37
      %p39 = scmp.ne.s32.totalorder %s28, %s29
      %p40 = scmp.eq.s32.totalorder %s20, 0
      %p41 = por %p39, %p40
      %p42 = scmp.ne.s32.totalorder %s28, %s29
      %p43 = scmp.eq.s32.totalorder %s21, 1
      %p44 = por %p42, %p43
      %p46 = scmp.ne.s32.totalorder %s29, %s45
      %p47 = scmp.eq.s32.totalorder %s21, 0
      %p48 = por %p46, %p47
      %s50 = sadd.s32 %s49, 1
      %p53 = scmp.eq.s32.totalorder %s15, 1
      %p54 = scmp.ne.s32.totalorder %s49, %s51
      %p55 = scmp.eq.s32.totalorder %s15, 0
      %p56 = por %p54, %p55
      %p57 = scmp.ne.s32.totalorder %s49, %s51
      %p58 = scmp.eq.s32.totalorder %s20, 1
      %p59 = por %p57, %p58
      %p60 = scmp.ne.s32.totalorder %s51, %s52
      %p61 = scmp.eq.s32.totalorder %s20, 0
      %p62 = por %p60, %p61
      %p63 = scmp.ne.s32.totalorder %s51, %s52
      %p64 = scmp.eq.s32.totalorder %s21, 1
      %p65 = por %p63, %p64
      %p67 = scmp.ne.s32.totalorder %s52, %s66
      %p68 = scmp.eq.s32.totalorder %s21, 0
      %p69 = por %p67, %p68
      %s70 = ssub.s32 %s15, %s22
      %p71 = scmp.eq.s32.totalorder %s70, 0
      %s73 = sadd.s32 %s72, 1
      %s74 = scalar_select %p71, %s72, %s73
      %p77 = pneg %p71
      %p78 = scmp.eq.s32.totalorder %s15, 1
      %p79 = por %p77, %p78
      %p80 = scmp.ne.s32.totalorder %s72, %s75
      %p81 = scmp.eq.s32.totalorder %s15, 0
      %p82 = por %p80, %p81
      %p83 = scmp.ne.s32.totalorder %s72, %s75
      %p84 = scmp.eq.s32.totalorder %s20, 1
      %p85 = por %p83, %p84
      %p86 = scmp.ne.s32.totalorder %s75, %s76
      %p87 = scmp.eq.s32.totalorder %s20, 0
      %p88 = por %p86, %p87
      %p89 = scmp.ne.s32.totalorder %s75, %s76
      %p90 = scmp.eq.s32.totalorder %s21, 1
      %p91 = por %p89, %p90
      %p93 = scmp.ne.s32.totalorder %s76, %s92
      %p94 = scmp.eq.s32.totalorder %s21, 0
      %p95 = por %p93, %p94
      %s97 = sadd.s32 %s96, 1
      %p100 = scmp.eq.s32.totalorder %s15, 1
      %p101 = scmp.ne.s32.totalorder %s96, %s98
      %p102 = scmp.eq.s32.totalorder %s15, 0
      %p103 = por %p101, %p102
      %p104 = scmp.ne.s32.totalorder %s96, %s98
      %p105 = scmp.eq.s32.totalorder %s20, 1
      %p106 = por %p104, %p105
      %p107 = scmp.ne.s32.totalorder %s98, %s99
      %p108 = scmp.eq.s32.totalorder %s20, 0
      %p109 = por %p107, %p108
      %p110 = scmp.ne.s32.totalorder %s98, %s99
      %p111 = scmp.eq.s32.totalorder %s21, 1
      %p112 = por %p110, %p111
      %p114 = scmp.ne.s32.totalorder %s99, %s113
      %p115 = scmp.eq.s32.totalorder %s21, 0
      %p116 = por %p114, %p115
      %s118 = sadd.s32 %s117, 1
      %p121 = scmp.eq.s32.totalorder %s15, 1
      %p122 = scmp.ne.s32.totalorder %s117, %s119
      %p123 = scmp.eq.s32.totalorder %s15, 0
      %p124 = por %p122, %p123
      %p125 = scmp.ne.s32.totalorder %s117, %s119
      %p126 = scmp.eq.s32.totalorder %s20, 1
      %p127 = por %p125, %p126
      %p128 = scmp.ne.s32.totalorder %s119, %s120
      %p129 = scmp.eq.s32.totalorder %s20, 0
      %p130 = por %p128, %p129
      %p131 = scmp.ne.s32.totalorder %s119, %s120
      %p132 = scmp.eq.s32.totalorder %s21, 1
      %p133 = por %p131, %p132
      %p135 = scmp.ne.s32.totalorder %s120, %s134
      %p136 = scmp.eq.s32.totalorder %s21, 0
      %p137 = por %p135, %p136
      %s139 = sadd.s32 %s138, 1
      %p142 = scmp.eq.s32.totalorder %s15, 1
      %p143 = scmp.ne.s32.totalorder %s138, %s140
      %p144 = scmp.eq.s32.totalorder %s15, 0
      %p145 = por %p143, %p144
      %p146 = scmp.ne.s32.totalorder %s138, %s140
      %p147 = scmp.eq.s32.totalorder %s20, 1
      %p148 = por %p146, %p147
      %p149 = scmp.ne.s32.totalorder %s140, %s141
      %p150 = scmp.eq.s32.totalorder %s20, 0
      %p151 = por %p149, %p150
      %p152 = scmp.ne.s32.totalorder %s140, %s141
      %p153 = scmp.eq.s32.totalorder %s21, 1
      %p154 = por %p152, %p153
      %p156 = scmp.ne.s32.totalorder %s141, %s155
      %p157 = scmp.eq.s32.totalorder %s21, 0
      %p158 = por %p156, %p157
      %s159 = ssub.s32 %s15, %s22
      %p160 = scmp.eq.s32.totalorder %s159, 0
      %s162 = sadd.s32 %s161, 1
      %s163 = scalar_select %p160, %s161, %s162
      %p166 = pneg %p160
      %p167 = scmp.eq.s32.totalorder %s15, 1
      %p168 = por %p166, %p167
      %p169 = scmp.ne.s32.totalorder %s161, %s164
      %p170 = scmp.eq.s32.totalorder %s15, 0
      %p171 = por %p169, %p170
      %p172 = scmp.ne.s32.totalorder %s161, %s164
      %p173 = scmp.eq.s32.totalorder %s20, 1
      %p174 = por %p172, %p173
      %p175 = scmp.ne.s32.totalorder %s164, %s165
      %p176 = scmp.eq.s32.totalorder %s20, 0
      %p177 = por %p175, %p176
      %p178 = scmp.ne.s32.totalorder %s164, %s165
      %p179 = scmp.eq.s32.totalorder %s21, 1
      %p180 = por %p178, %p179
      %p182 = scmp.ne.s32.totalorder %s165, %s181
      %p183 = scmp.eq.s32.totalorder %s21, 0
      %p184 = por %p182, %p183
      %p185 = scmp.le.s32.totalorder 1, %s15
      %p186 = scmp.lt.s32.totalorder %s15, 3
      %p187 = pnand %p185, %p186
      %p188 = pneg %p187
      // Predicated region
      $region9: #{basic_block_forward.3} parent=5 // pred_check
        _
      $region10: #{basic_block_forward.3} parent=5 // pred_check_branch
        %190 = sbr.rel (%p187) target = $region12
      $region11: #{basic_block_forward.3} parent=5 // pred_region
        %s191 = ssub.s32 %s15, 1
        // Predicated region
        $region13: #{basic_block_forward.3} parent=11 // pred_check
          %p192 = pneg %p62
        $region14: #{basic_block_forward.3} parent=11 // pred_check_branch
          %194 = sbr.rel (%p192) target = $region16
        $region15: #{basic_block_forward.3} parent=11 // pred_region
          _
        $region16: #{basic_block_forward.3} parent=11 // pred_fallthru
          _
        // Predicated region
        $region17: #{basic_block_forward.3} parent=11 // pred_check
          %p195 = pneg %p109
        $region18: #{basic_block_forward.3} parent=11 // pred_check_branch
          %197 = sbr.rel (%p195) target = $region20
        $region19: #{basic_block_forward.3} parent=11 // pred_region
          _
        $region20: #{basic_block_forward.3} parent=11 // pred_fallthru
          _
        // Predicated region
        $region21: #{basic_block_forward.3} parent=11 // pred_check
          %p198 = pneg %p130
        $region22: #{basic_block_forward.3} parent=11 // pred_check_branch
          %200 = sbr.rel (%p198) target = $region24
        $region23: #{basic_block_forward.3} parent=11 // pred_region
          _
        $region24: #{basic_block_forward.3} parent=11 // pred_fallthru
          _
        // Predicated region
        $region25: #{basic_block_forward.3} parent=11 // pred_check
          %p201 = pneg %p151
        $region26: #{basic_block_forward.3} parent=11 // pred_check_branch
          %203 = sbr.rel (%p201) target = $region28
        $region27: #{basic_block_forward.3} parent=11 // pred_region
          _
        $region28: #{basic_block_forward.3} parent=11 // pred_fallthru
          _
      $region12: #{basic_block_forward.3} parent=5 // pred_fallthru
        _
      %p204 = scmp.lt.s32.totalorder %s15, 2
      // Predicated region
      $region29: #{basic_block_forward.3} parent=5 // pred_check
        %p205 = pneg %p204
      $region30: #{basic_block_forward.3} parent=5 // pred_check_branch
        %207 = sbr.rel (%p205) target = $region32
      $region31: #{basic_block_forward.3} parent=5 // pred_region
        // Predicated region
        $region33: #{basic_block_forward.3} parent=31 // pred_check
          %p208 = pneg %p35
        $region34: #{basic_block_forward.3} parent=31 // pred_check_branch
          %210 = sbr.rel (%p208) target = $region36
        $region35: #{basic_block_forward.3} parent=31 // pred_region
          %p211 = scmp.lt.s32.totalorder %s15, 1
          %s212 = scalar_select %p211, %s15, 1
          %s213 = smul.addr %s212, 8
          %s214 = smul.addr %s213, 4
          %s215 = scalar_lea.vmem %s0, %s214
        $region36: #{basic_block_forward.3} parent=31 // pred_fallthru
          _
        // Predicated region
        $region37: #{basic_block_forward.3} parent=31 // pred_check
          %p216 = pneg %p82
        $region38: #{basic_block_forward.3} parent=31 // pred_check_branch
          %218 = sbr.rel (%p216) target = $region40
        $region39: #{basic_block_forward.3} parent=31 // pred_region
          %p219 = scmp.lt.s32.totalorder %s15, 1
          %s220 = scalar_select %p219, %s15, 1
          %s221 = smul.addr %s220, 8
          %s222 = smul.addr %s221, 8
          %s223 = scalar_lea.vmem %s2, %s222
        $region40: #{basic_block_forward.3} parent=31 // pred_fallthru
          _
      $region32: #{basic_block_forward.3} parent=5 // pred_fallthru
        _
      %p224 = scmp.le.s32.totalorder 1, %s15
      %p225 = scmp.lt.s32.totalorder %s15, 3
      %p226 = pnand %p224, %p225
      %p227 = pneg %p226
      // Predicated region
      $region41: #{basic_block_forward.3} parent=5 // pred_check
        _
      $region42: #{basic_block_forward.3} parent=5 // pred_check_branch
        %229 = sbr.rel (%p226) target = $region44
      $region43: #{basic_block_forward.3} parent=5 // pred_region
        %s230 = ssub.s32 %s15, 1
        %p231 = scmp.lt.s32.totalorder %s20, 1
        %s232 = scalar_select %p231, %s20, 1
        %s233 = smul.addr %s232, 8
        %s234 = smul.addr %s233, 4
        %s235 = scalar_lea.vmem %s0, %s234
        %p236 = pneg %p41
        %p237 = pneg %p38
        %p238 = pneg %p62
        %p239 = pneg %p59
        %p240 = scmp.lt.s32.totalorder %s20, 1
        %s241 = scalar_select %p240, %s20, 1
        %s242 = smul.addr %s241, 8
        %s243 = smul.addr %s242, 8
        %s244 = scalar_lea.vmem %s2, %s243
        %p245 = pneg %p88
        %p246 = pneg %p85
        %p247 = pneg %p109
        %p248 = pneg %p106
        %p249 = pneg %p130
        %p250 = pneg %p127
        %p251 = pneg %p151
        %p252 = pneg %p148
        %p253 = pneg %p177
        %p254 = pneg %p174
        %s255 = sand.u32 %s164, 1
        %s256 = scalar_lea.sflag [#allocation4], %s255
        %s257 = sand.u32 %s164, 1
        %s258 = smul.addr %s257, 64
        %s259 = scalar_lea.vmem [#allocation3], %s258
        %p260 = scmp.lt.s32.totalorder %s20, 1
        %s261 = scalar_select %p260, %s20, 1
        %s262 = smul.addr %s261, 8
        %s263 = smul.addr %s262, 4
        %s264 = scalar_lea.vmem %s0, %s263
        %p265 = scmp.lt.s32.totalorder %s20, 1
        %s266 = scalar_select %p265, %s20, 1
        %s267 = smul.addr %s266, 8
        %s268 = smul.addr %s267, 8
        %s269 = scalar_lea.vmem %s2, %s268
        %271 = vst [vmem:[#allocation2] sm:$0xf] 0
        %272 = vst [vmem:[#allocation2 + $0x4] sm:$0x1] 0
        %273 = vst [vmem:[#allocation2 + $0x8] sm:$0xf] 0
        %274 = vst [vmem:[#allocation2 + $0xc] sm:$0x1] 0
        %275 = vst [vmem:[#allocation2 + $0x10] sm:$0xf] 0
        %276 = vst [vmem:[#allocation2 + $0x14] sm:$0x1] 0
        %277 = vst [vmem:[#allocation2 + $0x18] sm:$0xf] 0
        %278 = vst [vmem:[#allocation2 + $0x1c] sm:$0x1] 0
        %279 = vst [vmem:[#allocation2 + $0x20] sm:$0xf] 0
        %280 = vst [vmem:[#allocation2 + $0x24] sm:$0x1] 0
        %281 = vst [vmem:[#allocation2 + $0x28] sm:$0xf] 0
        %282 = vst [vmem:[#allocation2 + $0x2c] sm:$0x1] 0
        %283 = vst [vmem:[#allocation2 + $0x30] sm:$0xf] 0
        %284 = vst [vmem:[#allocation2 + $0x34] sm:$0x1] 0
        %285 = vst [vmem:[#allocation2 + $0x38] sm:$0xf] 0
        %286 = vst [vmem:[#allocation2 + $0x3c] sm:$0x1] 0
        %287 = vst [vmem:[#allocation2 + $0x40] sm:$0xf] 0
        %288 = vst [vmem:[#allocation2 + $0x44] sm:$0x1] 0
        %289 = vst [vmem:[#allocation2 + $0x48] sm:$0xf] 0
        %290 = vst [vmem:[#allocation2 + $0x4c] sm:$0x1] 0
        %v291 = vld [vmem:[%s264] sm:$0xf]
        %v292 = vld [vmem:[%s264 + $0x4] sm:$0xf]
        %v293 = vld [vmem:[%s264 + $0x8] sm:$0xf]
        %v294 = vld [vmem:[%s264 + $0xc] sm:$0xf]
        %v295 = vld [vmem:[%s264 + $0x10] sm:$0xf]
        %v296 = vld [vmem:[%s264 + $0x14] sm:$0xf]
        %v297 = vld [vmem:[%s264 + $0x18] sm:$0xf]
        %v298 = vld [vmem:[%s264 + $0x1c] sm:$0xf]
        %v300 = vshrl.u32 %v291, 16
        %v302 = vrot.slane %v300, 7
        %v303 = vshll.u32 %v291, 16
        %v305 = vor.u32 %v302, %v303
        %v306 = vrot.slane %v302, 4
        %v308 = vshrl.u32 %v292, 16
        %v310 = vrot.slane %v308, 7
        %v311 = vshll.u32 %v292, 16
        %v313 = vor.u32 %v310, %v311
        %v314 = vrot.slane %v310, 4
        %v316 = vshrl.u32 %v293, 16
        %v318 = vrot.slane %v316, 7
        %v319 = vshll.u32 %v293, 16
        %v321 = vor.u32 %v318, %v319
        %v322 = vrot.slane %v318, 4
        %v324 = vshrl.u32 %v294, 16
        %v326 = vrot.slane %v324, 7
        %v327 = vshll.u32 %v294, 16
        %v329 = vor.u32 %v326, %v327
        %v330 = vrot.slane %v326, 4
        %v332 = vshrl.u32 %v295, 16
        %v334 = vrot.slane %v332, 7
        %v335 = vshll.u32 %v295, 16
        %v337 = vor.u32 %v334, %v335
        %v338 = vrot.slane %v334, 4
        %v340 = vshrl.u32 %v296, 16
        %v342 = vrot.slane %v340, 7
        %v343 = vshll.u32 %v296, 16
        %v345 = vor.u32 %v342, %v343
        %v346 = vrot.slane %v342, 4
        %v348 = vshrl.u32 %v297, 16
        %v350 = vrot.slane %v348, 7
        %v351 = vshll.u32 %v297, 16
        %v353 = vor.u32 %v350, %v351
        %v354 = vrot.slane %v350, 4
        %v356 = vshrl.u32 %v298, 16
        %v358 = vrot.slane %v356, 7
        %v359 = vshll.u32 %v298, 16
        %v361 = vor.u32 %v358, %v359
        %v362 = vrot.slane %v358, 4
        %s379 = scalar_lea.vmem [#allocation2], 8
        %vm380 = vcmask 1043456
        %vm381 = vsmask.f32 7938
        %vm382 = vmand %vm380, %vm381
        %v383 = vld [vmem:[%s379] sm:$0xf]
        %v384 = vsel %vm382, %v305, %v383
        %385 = vst [vmem:[%s379] sm:$0xf] %v384
        %vm386 = vcmask 1040384
        %vm387 = vsmask.f32 256
        %vm388 = vmand %vm386, %vm387
        %v389 = vld [vmem:[%s379 + $0x4] sm:$0x1]
        %v390 = vsel %vm388, %v306, %v389
        %391 = vst [vmem:[%s379 + $0x4] sm:$0x1] %v390
        %v392 = vld [vmem:[%s379 + $0x8] sm:$0xf]
        %v393 = vsel %vm382, %v313, %v392
        %394 = vst [vmem:[%s379 + $0x8] sm:$0xf] %v393
        %v395 = vld [vmem:[%s379 + $0xc] sm:$0x1]
        %v396 = vsel %vm388, %v314, %v395
        %397 = vst [vmem:[%s379 + $0xc] sm:$0x1] %v396
        %v398 = vld [vmem:[%s379 + $0x10] sm:$0xf]
        %v399 = vsel %vm382, %v321, %v398
        %400 = vst [vmem:[%s379 + $0x10] sm:$0xf] %v399
        %v401 = vld [vmem:[%s379 + $0x14] sm:$0x1]
        %v402 = vsel %vm388, %v322, %v401
        %403 = vst [vmem:[%s379 + $0x14] sm:$0x1] %v402
        %v404 = vld [vmem:[%s379 + $0x18] sm:$0xf]
        %v405 = vsel %vm382, %v329, %v404
        %406 = vst [vmem:[%s379 + $0x18] sm:$0xf] %v405
        %v407 = vld [vmem:[%s379 + $0x1c] sm:$0x1]
        %v408 = vsel %vm388, %v330, %v407
        %409 = vst [vmem:[%s379 + $0x1c] sm:$0x1] %v408
        %v410 = vld [vmem:[%s379 + $0x20] sm:$0xf]
        %v411 = vsel %vm382, %v337, %v410
        %412 = vst [vmem:[%s379 + $0x20] sm:$0xf] %v411
        %v413 = vld [vmem:[%s379 + $0x24] sm:$0x1]
        %v414 = vsel %vm388, %v338, %v413
        %415 = vst [vmem:[%s379 + $0x24] sm:$0x1] %v414
        %v416 = vld [vmem:[%s379 + $0x28] sm:$0xf]
        %v417 = vsel %vm382, %v345, %v416
        %418 = vst [vmem:[%s379 + $0x28] sm:$0xf] %v417
        %v419 = vld [vmem:[%s379 + $0x2c] sm:$0x1]
        %v420 = vsel %vm388, %v346, %v419
        %421 = vst [vmem:[%s379 + $0x2c] sm:$0x1] %v420
        %v422 = vld [vmem:[%s379 + $0x30] sm:$0xf]
        %v423 = vsel %vm382, %v353, %v422
        %424 = vst [vmem:[%s379 + $0x30] sm:$0xf] %v423
        %v425 = vld [vmem:[%s379 + $0x34] sm:$0x1]
        %v426 = vsel %vm388, %v354, %v425
        %427 = vst [vmem:[%s379 + $0x34] sm:$0x1] %v426
        %v428 = vld [vmem:[%s379 + $0x38] sm:$0xf]
        %v429 = vsel %vm382, %v361, %v428
        %430 = vst [vmem:[%s379 + $0x38] sm:$0xf] %v429
        %v431 = vld [vmem:[%s379 + $0x3c] sm:$0x1]
        %v432 = vsel %vm388, %v362, %v431
        %433 = vst [vmem:[%s379 + $0x3c] sm:$0x1] %v432
        %v434 = vld [vmem:[#allocation2] sm:$0xf]
        %v435 = vld [vmem:[#allocation2 + $0x8] sm:$0xf]
        %v436 = vld [vmem:[#allocation2 + $0x10] sm:$0xf]
        %v437 = vld [vmem:[#allocation2 + $0x18] sm:$0xf]
        %v438 = vld [vmem:[#allocation2 + $0x20] sm:$0xf]
        %v439 = vld [vmem:[#allocation2 + $0x28] sm:$0xf]
        %v440 = vld [vmem:[#allocation2 + $0x30] sm:$0xf]
        %v441 = vld [vmem:[#allocation2 + $0x38] sm:$0xf]
        %v442 = vld [vmem:[%s1] sm:$0xf]
        %v443 = vld [vmem:[%s1 + $0x4] sm:$0xf]
        %v444 = vld [vmem:[%s1 + $0x8] sm:$0xf]
        %v445 = vld [vmem:[%s1 + $0xc] sm:$0xf]
        %v446 = vld [vmem:[%s1 + $0x10] sm:$0xf]
        %v447 = vld [vmem:[%s1 + $0x14] sm:$0xf]
        %v448 = vld [vmem:[%s1 + $0x18] sm:$0xf]
        %v449 = vld [vmem:[%s1 + $0x1c] sm:$0xf]
        %v450 = vld [vmem:[%s1 + $0x20] sm:$0xf]
        %v451 = vld [vmem:[%s1 + $0x24] sm:$0xf]
        %v452 = vld [vmem:[%s1 + $0x28] sm:$0xf]
        %v453 = vld [vmem:[%s1 + $0x2c] sm:$0xf]
        %v454 = vld [vmem:[%s1 + $0x30] sm:$0xf]
        %v455 = vld [vmem:[%s1 + $0x34] sm:$0xf]
        %v456 = vld [vmem:[%s1 + $0x38] sm:$0xf]
        %v457 = vld [vmem:[%s1 + $0x3c] sm:$0xf]
        %v458 = vld [vmem:[#allocation2 + $0x4] sm:$0x1]
        %v459 = vld [vmem:[#allocation2 + $0xc] sm:$0x1]
        %v460 = vld [vmem:[#allocation2 + $0x14] sm:$0x1]
        %v461 = vld [vmem:[#allocation2 + $0x1c] sm:$0x1]
        %v462 = vld [vmem:[#allocation2 + $0x24] sm:$0x1]
        %v463 = vld [vmem:[#allocation2 + $0x2c] sm:$0x1]
        %v464 = vld [vmem:[#allocation2 + $0x34] sm:$0x1]
        %v465 = vld [vmem:[#allocation2 + $0x3c] sm:$0x1]
        %vm466 = vsmask.f32 3328
        %vm467 = vsmask.f32 7440
        %vm468 = vmor %vm466, %vm467
        %v470 = vshrl.u32 %v434, 16
        %v472 = vrot.slane %v470, 4
        %v473 = vshll.u32 %v434, 16
        %v475 = vrot.slane %v473, 5
        %v476 = vor.u32 %v472, %v475
        %v477 = vrot.slane %v476, 4
        %v479 = vshll.u32 %v458, 16
        %v481 = vrot.slane %v479, 5
        %v482 = vsel %vm468, %v477, %v481
        %v484 = vshrl.u32 %v435, 16
        %v486 = vrot.slane %v484, 4
        %v487 = vshll.u32 %v435, 16
        %v489 = vrot.slane %v487, 5
        %v490 = vor.u32 %v486, %v489
        %v491 = vrot.slane %v490, 4
        %v493 = vshll.u32 %v459, 16
        %v495 = vrot.slane %v493, 5
        %v496 = vsel %vm468, %v491, %v495
        %v498 = vshrl.u32 %v436, 16
        %v500 = vrot.slane %v498, 4
        %v501 = vshll.u32 %v436, 16
        %v503 = vrot.slane %v501, 5
        %v504 = vor.u32 %v500, %v503
        %v505 = vrot.slane %v504, 4
        %v507 = vshll.u32 %v460, 16
        %v509 = vrot.slane %v507, 5
        %v510 = vsel %vm468, %v505, %v509
        %v512 = vshrl.u32 %v437, 16
        %v514 = vrot.slane %v512, 4
        %v515 = vshll.u32 %v437, 16
        %v517 = vrot.slane %v515, 5
        %v518 = vor.u32 %v514, %v517
        %v519 = vrot.slane %v518, 4
        %v521 = vshll.u32 %v461, 16
        %v523 = vrot.slane %v521, 5
        %v524 = vsel %vm468, %v519, %v523
        %v526 = vshrl.u32 %v438, 16
        %v528 = vrot.slane %v526, 4
        %v529 = vshll.u32 %v438, 16
        %v531 = vrot.slane %v529, 5
        %v532 = vor.u32 %v528, %v531
        %v533 = vrot.slane %v532, 4
        %v535 = vshll.u32 %v462, 16
        %v537 = vrot.slane %v535, 5
        %v538 = vsel %vm468, %v533, %v537
        %v540 = vshrl.u32 %v439, 16
        %v542 = vrot.slane %v540, 4
        %v543 = vshll.u32 %v439, 16
        %v545 = vrot.slane %v543, 5
        %v546 = vor.u32 %v542, %v545
        %v547 = vrot.slane %v546, 4
        %v549 = vshll.u32 %v463, 16
        %v551 = vrot.slane %v549, 5
        %v552 = vsel %vm468, %v547, %v551
        %v554 = vshrl.u32 %v440, 16
        %v556 = vrot.slane %v554, 4
        %v557 = vshll.u32 %v440, 16
        %v559 = vrot.slane %v557, 5
        %v560 = vor.u32 %v556, %v559
        %v561 = vrot.slane %v560, 4
        %v563 = vshll.u32 %v464, 16
        %v565 = vrot.slane %v563, 5
        %v566 = vsel %vm468, %v561, %v565
        %v568 = vshrl.u32 %v441, 16
        %v570 = vrot.slane %v568, 4
        %v571 = vshll.u32 %v441, 16
        %v573 = vrot.slane %v571, 5
        %v574 = vor.u32 %v570, %v573
        %v575 = vrot.slane %v574, 4
        %v577 = vshll.u32 %v465, 16
        %v579 = vrot.slane %v577, 5
        %v580 = vsel %vm468, %v575, %v579
        %s581 = scalar_lea.vmem %s1, 64
        %v582 = vld [vmem:[%s581] sm:$0xf]
        %v583 = vld [vmem:[%s581 + $0x4] sm:$0xf]
        %v584 = vld [vmem:[%s581 + $0x8] sm:$0xf]
        %v585 = vld [vmem:[%s581 + $0xc] sm:$0xf]
        %v586 = vld [vmem:[%s581 + $0x10] sm:$0xf]
        %v587 = vld [vmem:[%s581 + $0x14] sm:$0xf]
        %v588 = vld [vmem:[%s581 + $0x18] sm:$0xf]
        %v589 = vld [vmem:[%s581 + $0x1c] sm:$0xf]
        %v590 = vld [vmem:[%s581 + $0x20] sm:$0xf]
        %v591 = vld [vmem:[%s581 + $0x24] sm:$0xf]
        %v592 = vld [vmem:[%s581 + $0x28] sm:$0xf]
        %v593 = vld [vmem:[%s581 + $0x2c] sm:$0xf]
        %v594 = vld [vmem:[%s581 + $0x30] sm:$0xf]
        %v595 = vld [vmem:[%s581 + $0x34] sm:$0xf]
        %v596 = vld [vmem:[%s581 + $0x38] sm:$0xf]
        %v597 = vld [vmem:[%s581 + $0x3c] sm:$0xf]
        %v598 = vunpack.c.l.b16 %v482
        %v599 = vunpack.c.l.b16 %v496
        %v600 = vunpack.c.l.b16 %v510
        %v601 = vunpack.c.l.b16 %v524
        %v602 = vunpack.c.l.b16 %v538
        %v603 = vunpack.c.l.b16 %v552
        %v604 = vunpack.c.l.b16 %v566
        %v605 = vunpack.c.l.b16 %v580
        %v606 = vpack.c.b16 %v599, %v598
        %v607 = vpack.c.b16 %v601, %v600
        %v608 = vpack.c.b16 %v603, %v602
        %v609 = vpack.c.b16 %v605, %v604
        %v630 = vunpack.c.l.b16 %v582
        %v631 = vunpack.c.l.b16 %v583
        %v632 = vunpack.c.l.b16 %v584
        %v633 = vunpack.c.l.b16 %v585
        %v634 = vunpack.c.l.b16 %v586
        %v635 = vunpack.c.l.b16 %v587
        %v636 = vunpack.c.l.b16 %v588
        %v637 = vunpack.c.l.b16 %v589
        %v638 = vunpack.c.l.b16 %v590
        %v639 = vunpack.c.l.b16 %v591
        %v640 = vunpack.c.l.b16 %v592
        %v641 = vunpack.c.l.b16 %v593
        %v642 = vunpack.c.l.b16 %v594
        %v643 = vunpack.c.l.b16 %v595
        %v644 = vunpack.c.l.b16 %v596
        %v645 = vunpack.c.l.b16 %v597
        %v646 = vpack.c.b16 %v631, %v630
        %v647 = vpack.c.b16 %v633, %v632
        %v648 = vpack.c.b16 %v635, %v634
        %v649 = vpack.c.b16 %v637, %v636
        %v650 = vpack.c.b16 %v639, %v638
        %v651 = vpack.c.b16 %v641, %v640
        %v652 = vpack.c.b16 %v643, %v642
        %v653 = vpack.c.b16 %v645, %v644
        %662 = vmatprep.subr.bf16.mxu0 0
        %663 = vmatpush1.bf16.msra.mxu0 %v646
        %664 = vmatprep.subr.bf16.mxu0 0
        %665 = vmatpush1.bf16.msra.mxu0 %v647
        %666 = vmatprep.subr.bf16.mxu0 0
        %667 = vmatpush1.bf16.msra.mxu0 %v648
        %668 = vmatprep.subr.bf16.mxu0 0
        %669 = vmatpush1.bf16.msra.mxu0 %v649
        %670 = vmatprep.subr.bf16.mxu0 0
        %671 = vmatpush1.bf16.msra.mxu0 %v650
        %672 = vmatprep.subr.bf16.mxu0 0
        %673 = vmatpush1.bf16.msra.mxu0 %v651
        %674 = vmatprep.subr.bf16.mxu0 0
        %675 = vmatpush1.bf16.msra.mxu0 %v652
        %676 = vmatprep.subr.bf16.mxu0 0
        %677 = vmatpush1.bf16.msra.mxu0 %v653
        %678 = vmatprep.subr.bf16.mxu0 0
        %679 = vmatpush1.bf16.msra.mxu0 0
        %680 = vmatprep.subr.bf16.mxu0 0
        %681 = vmatpush1.bf16.msra.mxu0 0
        %682 = vmatprep.subr.bf16.mxu0 0
        %683 = vmatpush1.bf16.msra.mxu0 0
        %684 = vmatprep.subr.bf16.mxu0 0
        %685 = vmatpush1.bf16.msra.mxu0 0
        %686 = vmatprep.subr.bf16.mxu0 0
        %687 = vmatpush1.bf16.msra.mxu0 0
        %688 = vmatprep.subr.bf16.mxu0 0
        %689 = vmatpush1.bf16.msra.mxu0 0
        %690 = vmatprep.subr.bf16.mxu0 0
        %691 = vmatpush1.bf16.msra.mxu0 0
        %692 = vmatprep.subr.bf16.mxu0 0
        %693 = vmatpush1.bf16.msra.mxu0 0
        %694 = vmatprep.mubr.bf16.mxu0 0
        %695 = vmatmul.mubr.bf16.gmra.mrb[0].mxu0 %v606
        %v696 = vpop.f32.mrb[0].mxu0
        %v697 = vadd.f32 0.0, %v696
        %v698 = vpop.f32.mrb[0].mxu0
        %v699 = vpop.f32.mrb[0].mxu0
        %v700 = vadd.f32 0.0, %v699
        %v701 = vpop.f32.mrb[0].mxu0
        %702 = vmatprep.mubr.bf16.mxu0 0
        %703 = vmatmul.mubr.bf16.gmra.mrb[0].mxu0 %v607
        %v704 = vpop.f32.mrb[0].mxu0
        %v705 = vadd.f32 0.0, %v704
        %v706 = vpop.f32.mrb[0].mxu0
        %v707 = vpop.f32.mrb[0].mxu0
        %v708 = vadd.f32 0.0, %v707
        %v709 = vpop.f32.mrb[0].mxu0
        %710 = vmatprep.mubr.bf16.mxu0 0
        %711 = vmatmul.mubr.bf16.gmra.mrb[0].mxu0 %v608
        %v712 = vpop.f32.mrb[0].mxu0
        %v713 = vadd.f32 0.0, %v712
        %v714 = vpop.f32.mrb[0].mxu0
        %v715 = vpop.f32.mrb[0].mxu0
        %v716 = vadd.f32 0.0, %v715
        %v717 = vpop.f32.mrb[0].mxu0
        %718 = vmatprep.mubr.bf16.mxu0 0
        %719 = vmatmul.mubr.bf16.gmra.mrb[0].mxu0 %v609
        %v720 = vpop.f32.mrb[0].mxu0
        %v721 = vadd.f32 0.0, %v720
        %v722 = vpop.f32.mrb[0].mxu0
        %v723 = vpop.f32.mrb[0].mxu0
        %v724 = vadd.f32 0.0, %v723
        %v725 = vpop.f32.mrb[0].mxu0
        %726 = vdwg.mxu0
        %v735 = vunpack.c.l.b16 %v434
        %v736 = vunpack.c.l.b16 %v435
        %v737 = vunpack.c.l.b16 %v436
        %v738 = vunpack.c.l.b16 %v437
        %v739 = vunpack.c.l.b16 %v438
        %v740 = vunpack.c.l.b16 %v439
        %v741 = vunpack.c.l.b16 %v440
        %v742 = vunpack.c.l.b16 %v441
        %v743 = vpack.c.b16 %v736, %v735
        %v744 = vpack.c.b16 %v738, %v737
        %v745 = vpack.c.b16 %v740, %v739
        %v746 = vpack.c.b16 %v742, %v741
        %v767 = vunpack.c.l.b16 %v442
        %v768 = vunpack.c.l.b16 %v443
        %v769 = vunpack.c.l.b16 %v444
        %v770 = vunpack.c.l.b16 %v445
        %v771 = vunpack.c.l.b16 %v446
        %v772 = vunpack.c.l.b16 %v447
        %v773 = vunpack.c.l.b16 %v448
        %v774 = vunpack.c.l.b16 %v449
        %v775 = vunpack.c.l.b16 %v450
        %v776 = vunpack.c.l.b16 %v451
        %v777 = vunpack.c.l.b16 %v452
        %v778 = vunpack.c.l.b16 %v453
        %v779 = vunpack.c.l.b16 %v454
        %v780 = vunpack.c.l.b16 %v455
        %v781 = vunpack.c.l.b16 %v456
        %v782 = vunpack.c.l.b16 %v457
        %v783 = vpack.c.b16 %v768, %v767
        %v784 = vpack.c.b16 %v770, %v769
        %v785 = vpack.c.b16 %v772, %v771
        %v786 = vpack.c.b16 %v774, %v773
        %v787 = vpack.c.b16 %v776, %v775
        %v788 = vpack.c.b16 %v778, %v777
        %v789 = vpack.c.b16 %v780, %v779
        %v790 = vpack.c.b16 %v782, %v781
        %799 = vmatprep.subr.bf16.mxu0 0
        %800 = vmatpush1.bf16.msra.mxu0 %v783
        %801 = vmatprep.subr.bf16.mxu0 0
        %802 = vmatpush1.bf16.msra.mxu0 %v784
        %803 = vmatprep.subr.bf16.mxu0 0
        %804 = vmatpush1.bf16.msra.mxu0 %v785
        %805 = vmatprep.subr.bf16.mxu0 0
        %806 = vmatpush1.bf16.msra.mxu0 %v786
        %807 = vmatprep.subr.bf16.mxu0 0
        %808 = vmatpush1.bf16.msra.mxu0 %v787
        %809 = vmatprep.subr.bf16.mxu0 0
        %810 = vmatpush1.bf16.msra.mxu0 %v788
        %811 = vmatprep.subr.bf16.mxu0 0
        %812 = vmatpush1.bf16.msra.mxu0 %v789
        %813 = vmatprep.subr.bf16.mxu0 0
        %814 = vmatpush1.bf16.msra.mxu0 %v790
        %815 = vmatprep.subr.bf16.mxu0 0
        %816 = vmatpush1.bf16.msra.mxu0 0
        %817 = vmatprep.subr.bf16.mxu0 0
        %818 = vmatpush1.bf16.msra.mxu0 0
        %819 = vmatprep.subr.bf16.mxu0 0
        %820 = vmatpush1.bf16.msra.mxu0 0
        %821 = vmatprep.subr.bf16.mxu0 0
        %822 = vmatpush1.bf16.msra.mxu0 0
        %823 = vmatprep.subr.bf16.mxu0 0
        %824 = vmatpush1.bf16.msra.mxu0 0
        %825 = vmatprep.subr.bf16.mxu0 0
        %826 = vmatpush1.bf16.msra.mxu0 0
        %827 = vmatprep.subr.bf16.mxu0 0
        %828 = vmatpush1.bf16.msra.mxu0 0
        %829 = vmatprep.subr.bf16.mxu0 0
        %830 = vmatpush1.bf16.msra.mxu0 0
        %831 = vmatprep.mubr.bf16.mxu0 0
        %832 = vmatmul.mubr.bf16.gmra.mrb[0].mxu0 %v743
        %v833 = vpop.f32.mrb[0].mxu0
        %v834 = vadd.f32 %v697, %v833
        %v835 = vpop.f32.mrb[0].mxu0
        %v836 = vpop.f32.mrb[0].mxu0
        %v837 = vadd.f32 %v700, %v836
        %v838 = vpop.f32.mrb[0].mxu0
        %839 = vmatprep.mubr.bf16.mxu0 0
        %840 = vmatmul.mubr.bf16.gmra.mrb[0].mxu0 %v744
        %v841 = vpop.f32.mrb[0].mxu0
        %v842 = vadd.f32 %v705, %v841
        %v843 = vpop.f32.mrb[0].mxu0
        %v844 = vpop.f32.mrb[0].mxu0
        %v845 = vadd.f32 %v708, %v844
        %v846 = vpop.f32.mrb[0].mxu0
        %847 = vmatprep.mubr.bf16.mxu0 0
        %848 = vmatmul.mubr.bf16.gmra.mrb[0].mxu0 %v745
        %v849 = vpop.f32.mrb[0].mxu0
        %v850 = vadd.f32 %v713, %v849
        %v851 = vpop.f32.mrb[0].mxu0
        %v852 = vpop.f32.mrb[0].mxu0
        %v853 = vadd.f32 %v716, %v852
        %v854 = vpop.f32.mrb[0].mxu0
        %855 = vmatprep.mubr.bf16.mxu0 0
        %856 = vmatmul.mubr.bf16.gmra.mrb[0].mxu0 %v746
        %v857 = vpop.f32.mrb[0].mxu0
        %v858 = vadd.f32 %v721, %v857
        %v859 = vpop.f32.mrb[0].mxu0
        %v860 = vpop.f32.mrb[0].mxu0
        %v861 = vadd.f32 %v724, %v860
        %v862 = vpop.f32.mrb[0].mxu0
        %863 = vdwg.mxu0
        %v864 = vld [vmem:[#allocation2] sm:$0xe]
        %v865 = vld [vmem:[#allocation2 + $0x8] sm:$0xe]
        %v866 = vld [vmem:[#allocation2 + $0x10] sm:$0xe]
        %v867 = vld [vmem:[#allocation2 + $0x18] sm:$0xe]
        %v868 = vld [vmem:[#allocation2 + $0x20] sm:$0xe]
        %v869 = vld [vmem:[#allocation2 + $0x28] sm:$0xe]
        %v870 = vld [vmem:[#allocation2 + $0x30] sm:$0xe]
        %v871 = vld [vmem:[#allocation2 + $0x38] sm:$0xe]
        %vm888 = vcmask 1042432
        %vm889 = vcmask 1046532
        %vm890 = vmor %vm888, %vm889
        %v891 = vrot.slane %v864, 5
        %v892 = vrot.slane %v891, 4
        %v893 = vrot.slane %v458, 5
        %v894 = vsel %vm890, %v892, %v893
        %v895 = vrot.slane %v865, 5
        %v896 = vrot.slane %v895, 4
        %v897 = vrot.slane %v459, 5
        %v898 = vsel %vm890, %v896, %v897
        %v899 = vrot.slane %v866, 5
        %v900 = vrot.slane %v899, 4
        %v901 = vrot.slane %v460, 5
        %v902 = vsel %vm890, %v900, %v901
        %v903 = vrot.slane %v867, 5
        %v904 = vrot.slane %v903, 4
        %v905 = vrot.slane %v461, 5
        %v906 = vsel %vm890, %v904, %v905
        %v907 = vrot.slane %v868, 5
        %v908 = vrot.slane %v907, 4
        %v909 = vrot.slane %v462, 5
        %v910 = vsel %vm890, %v908, %v909
        %v911 = vrot.slane %v869, 5
        %v912 = vrot.slane %v911, 4
        %v913 = vrot.slane %v463, 5
        %v914 = vsel %vm890, %v912, %v913
        %v915 = vrot.slane %v870, 5
        %v916 = vrot.slane %v915, 4
        %v917 = vrot.slane %v464, 5
        %v918 = vsel %vm890, %v916, %v917
        %v919 = vrot.slane %v871, 5
        %v920 = vrot.slane %v919, 4
        %v921 = vrot.slane %v465, 5
        %v922 = vsel %vm890, %v920, %v921
        %s923 = scalar_lea.vmem %s1, 128
        %v924 = vld [vmem:[%s923] sm:$0xf]
        %v925 = vld [vmem:[%s923 + $0x4] sm:$0xf]
        %v926 = vld [vmem:[%s923 + $0x8] sm:$0xf]
        %v927 = vld [vmem:[%s923 + $0xc] sm:$0xf]
        %v928 = vld [vmem:[%s923 + $0x10] sm:$0xf]
        %v929 = vld [vmem:[%s923 + $0x14] sm:$0xf]
        %v930 = vld [vmem:[%s923 + $0x18] sm:$0xf]
        %v931 = vld [vmem:[%s923 + $0x1c] sm:$0xf]
        %v932 = vld [vmem:[%s923 + $0x20] sm:$0xf]
        %v933 = vld [vmem:[%s923 + $0x24] sm:$0xf]
        %v934 = vld [vmem:[%s923 + $0x28] sm:$0xf]
        %v935 = vld [vmem:[%s923 + $0x2c] sm:$0xf]
        %v936 = vld [vmem:[%s923 + $0x30] sm:$0xf]
        %v937 = vld [vmem:[%s923 + $0x34] sm:$0xf]
        %v938 = vld [vmem:[%s923 + $0x38] sm:$0xf]
        %v939 = vld [vmem:[%s923 + $0x3c] sm:$0xf]
        %v940 = vunpack.c.l.b16 %v894
        %v941 = vunpack.c.l.b16 %v898
        %v942 = vunpack.c.l.b16 %v902
        %v943 = vunpack.c.l.b16 %v906
        %v944 = vunpack.c.l.b16 %v910
        %v945 = vunpack.c.l.b16 %v914
        %v946 = vunpack.c.l.b16 %v918
        %v947 = vunpack.c.l.b16 %v922
        %v948 = vpack.c.b16 %v941, %v940
        %v949 = vpack.c.b16 %v943, %v942
        %v950 = vpack.c.b16 %v945, %v944
        %v951 = vpack.c.b16 %v947, %v946
        %v972 = vunpack.c.l.b16 %v924
        %v973 = vunpack.c.l.b16 %v925
        %v974 = vunpack.c.l.b16 %v926
        %v975 = vunpack.c.l.b16 %v927
        %v976 = vunpack.c.l.b16 %v928
        %v977 = vunpack.c.l.b16 %v929
        %v978 = vunpack.c.l.b16 %v930
        %v979 = vunpack.c.l.b16 %v931
        %v980 = vunpack.c.l.b16 %v932
        %v981 = vunpack.c.l.b16 %v933
        %v982 = vunpack.c.l.b16 %v934
        %v983 = vunpack.c.l.b16 %v935
        %v984 = vunpack.c.l.b16 %v936
        %v985 = vunpack.c.l.b16 %v937
        %v986 = vunpack.c.l.b16 %v938
        %v987 = vunpack.c.l.b16 %v939
        %v988 = vpack.c.b16 %v973, %v972
        %v989 = vpack.c.b16 %v975, %v974
        %v990 = vpack.c.b16 %v977, %v976
        %v991 = vpack.c.b16 %v979, %v978
        %v992 = vpack.c.b16 %v981, %v980
        %v993 = vpack.c.b16 %v983, %v982
        %v994 = vpack.c.b16 %v985, %v984
        %v995 = vpack.c.b16 %v987, %v986
        %1004 = vmatprep.subr.bf16.mxu0 0
        %1005 = vmatpush1.bf16.msra.mxu0 %v988
        %1006 = vmatprep.subr.bf16.mxu0 0
        %1007 = vmatpush1.bf16.msra.mxu0 %v989
        %1008 = vmatprep.subr.bf16.mxu0 0
        %1009 = vmatpush1.bf16.msra.mxu0 %v990
        %1010 = vmatprep.subr.bf16.mxu0 0
        %1011 = vmatpush1.bf16.msra.mxu0 %v991
        %1012 = vmatprep.subr.bf16.mxu0 0
        %1013 = vmatpush1.bf16.msra.mxu0 %v992
        %1014 = vmatprep.subr.bf16.mxu0 0
        %1015 = vmatpush1.bf16.msra.mxu0 %v993
        %1016 = vmatprep.subr.bf16.mxu0 0
        %1017 = vmatpush1.bf16.msra.mxu0 %v994
        %1018 = vmatprep.subr.bf16.mxu0 0
        %1019 = vmatpush1.bf16.msra.mxu0 %v995
        %1020 = vmatprep.subr.bf16.mxu0 0
        %1021 = vmatpush1.bf16.msra.mxu0 0
        %1022 = vmatprep.subr.bf16.mxu0 0
        %1023 = vmatpush1.bf16.msra.mxu0 0
        %1024 = vmatprep.subr.bf16.mxu0 0
        %1025 = vmatpush1.bf16.msra.mxu0 0
        %1026 = vmatprep.subr.bf16.mxu0 0
        %1027 = vmatpush1.bf16.msra.mxu0 0
        %1028 = vmatprep.subr.bf16.mxu0 0
        %1029 = vmatpush1.bf16.msra.mxu0 0
        %1030 = vmatprep.subr.bf16.mxu0 0
        %1031 = vmatpush1.bf16.msra.mxu0 0
        %1032 = vmatprep.subr.bf16.mxu0 0
        %1033 = vmatpush1.bf16.msra.mxu0 0
        %1034 = vmatprep.subr.bf16.mxu0 0
        %1035 = vmatpush1.bf16.msra.mxu0 0
        %1036 = vmatprep.mubr.bf16.mxu0 0
        %1037 = vmatmul.mubr.bf16.gmra.mrb[0].mxu0 %v948
        %v1038 = vpop.f32.mrb[0].mxu0
        %v1039 = vadd.f32 0.0, %v1038
        %v1040 = vpop.f32.mrb[0].mxu0
        %v1041 = vpop.f32.mrb[0].mxu0
        %v1042 = vadd.f32 0.0, %v1041
        %v1043 = vpop.f32.mrb[0].mxu0
        %1044 = vmatprep.mubr.bf16.mxu0 0
        %1045 = vmatmul.mubr.bf16.gmra.mrb[0].mxu0 %v949
        %v1046 = vpop.f32.mrb[0].mxu0
        %v1047 = vadd.f32 0.0, %v1046
        %v1048 = vpop.f32.mrb[0].mxu0
        %v1049 = vpop.f32.mrb[0].mxu0
        %v1050 = vadd.f32 0.0, %v1049
        %v1051 = vpop.f32.mrb[0].mxu0
        %1052 = vmatprep.mubr.bf16.mxu0 0
        %1053 = vmatmul.mubr.bf16.gmra.mrb[0].mxu0 %v950
        %v1054 = vpop.f32.mrb[0].mxu0
        %v1055 = vadd.f32 0.0, %v1054
        %v1056 = vpop.f32.mrb[0].mxu0
        %v1057 = vpop.f32.mrb[0].mxu0
        %v1058 = vadd.f32 0.0, %v1057
        %v1059 = vpop.f32.mrb[0].mxu0
        %1060 = vmatprep.mubr.bf16.mxu0 0
        %1061 = vmatmul.mubr.bf16.gmra.mrb[0].mxu0 %v951
        %v1062 = vpop.f32.mrb[0].mxu0
        %v1063 = vadd.f32 0.0, %v1062
        %v1064 = vpop.f32.mrb[0].mxu0
        %v1065 = vpop.f32.mrb[0].mxu0
        %v1066 = vadd.f32 0.0, %v1065
        %v1067 = vpop.f32.mrb[0].mxu0
        %1068 = vdwg.mxu0
        %v1069 = vadd.f32 %v834, %v1039
        %v1070 = vadd.f32 %v837, %v1042
        %v1071 = vadd.f32 %v842, %v1047
        %v1072 = vadd.f32 %v845, %v1050
        %v1073 = vadd.f32 %v850, %v1055
        %v1074 = vadd.f32 %v853, %v1058
        %v1075 = vadd.f32 %v858, %v1063
        %v1076 = vadd.f32 %v861, %v1066
        %v1077 = vld [vmem:[%s379] sm:$0xf]
        %v1078 = vld [vmem:[%s379 + $0x8] sm:$0xf]
        %v1079 = vld [vmem:[%s379 + $0x10] sm:$0xf]
        %v1080 = vld [vmem:[%s379 + $0x18] sm:$0xf]
        %v1081 = vld [vmem:[%s379 + $0x20] sm:$0xf]
        %v1082 = vld [vmem:[%s379 + $0x28] sm:$0xf]
        %v1083 = vld [vmem:[%s379 + $0x30] sm:$0xf]
        %v1084 = vld [vmem:[%s379 + $0x38] sm:$0xf]
        %s1085 = scalar_lea.vmem %s1, 192
        %v1086 = vld [vmem:[%s1085] sm:$0xf]
        %v1087 = vld [vmem:[%s1085 + $0x4] sm:$0xf]
        %v1088 = vld [vmem:[%s1085 + $0x8] sm:$0xf]
        %v1089 = vld [vmem:[%s1085 + $0xc] sm:$0xf]
        %v1090 = vld [vmem:[%s1085 + $0x10] sm:$0xf]
        %v1091 = vld [vmem:[%s1085 + $0x14] sm:$0xf]
        %v1092 = vld [vmem:[%s1085 + $0x18] sm:$0xf]
        %v1093 = vld [vmem:[%s1085 + $0x1c] sm:$0xf]
        %v1094 = vld [vmem:[%s1085 + $0x20] sm:$0xf]
        %v1095 = vld [vmem:[%s1085 + $0x24] sm:$0xf]
        %v1096 = vld [vmem:[%s1085 + $0x28] sm:$0xf]
        %v1097 = vld [vmem:[%s1085 + $0x2c] sm:$0xf]
        %v1098 = vld [vmem:[%s1085 + $0x30] sm:$0xf]
        %v1099 = vld [vmem:[%s1085 + $0x34] sm:$0xf]
        %v1100 = vld [vmem:[%s1085 + $0x38] sm:$0xf]
        %v1101 = vld [vmem:[%s1085 + $0x3c] sm:$0xf]
        %v1110 = vunpack.c.l.b16 %v1077
        %v1111 = vunpack.c.l.b16 %v1078
        %v1112 = vunpack.c.l.b16 %v1079
        %v1113 = vunpack.c.l.b16 %v1080
        %v1114 = vunpack.c.l.b16 %v1081
        %v1115 = vunpack.c.l.b16 %v1082
        %v1116 = vunpack.c.l.b16 %v1083
        %v1117 = vunpack.c.l.b16 %v1084
        %v1118 = vpack.c.b16 %v1111, %v1110
        %v1119 = vpack.c.b16 %v1113, %v1112
        %v1120 = vpack.c.b16 %v1115, %v1114
        %v1121 = vpack.c.b16 %v1117, %v1116
        %v1142 = vunpack.c.l.b16 %v1086
        %v1143 = vunpack.c.l.b16 %v1087
        %v1144 = vunpack.c.l.b16 %v1088
        %v1145 = vunpack.c.l.b16 %v1089
        %v1146 = vunpack.c.l.b16 %v1090
        %v1147 = vunpack.c.l.b16 %v1091
        %v1148 = vunpack.c.l.b16 %v1092
        %v1149 = vunpack.c.l.b16 %v1093
        %v1150 = vunpack.c.l.b16 %v1094
        %v1151 = vunpack.c.l.b16 %v1095
        %v1152 = vunpack.c.l.b16 %v1096
        %v1153 = vunpack.c.l.b16 %v1097
        %v1154 = vunpack.c.l.b16 %v1098
        %v1155 = vunpack.c.l.b16 %v1099
        %v1156 = vunpack.c.l.b16 %v1100
        %v1157 = vunpack.c.l.b16 %v1101
        %v1158 = vpack.c.b16 %v1143, %v1142
        %v1159 = vpack.c.b16 %v1145, %v1144
        %v1160 = vpack.c.b16 %v1147, %v1146
        %v1161 = vpack.c.b16 %v1149, %v1148
        %v1162 = vpack.c.b16 %v1151, %v1150
        %v1163 = vpack.c.b16 %v1153, %v1152
        %v1164 = vpack.c.b16 %v1155, %v1154
        %v1165 = vpack.c.b16 %v1157, %v1156
        %1174 = vmatprep.subr.bf16.mxu0 0
        %1175 = vmatpush1.bf16.msra.mxu0 %v1158
        %1176 = vmatprep.subr.bf16.mxu0 0
        %1177 = vmatpush1.bf16.msra.mxu0 %v1159
        %1178 = vmatprep.subr.bf16.mxu0 0
        %1179 = vmatpush1.bf16.msra.mxu0 %v1160
        %1180 = vmatprep.subr.bf16.mxu0 0
        %1181 = vmatpush1.bf16.msra.mxu0 %v1161
        %1182 = vmatprep.subr.bf16.mxu0 0
        %1183 = vmatpush1.bf16.msra.mxu0 %v1162
        %1184 = vmatprep.subr.bf16.mxu0 0
        %1185 = vmatpush1.bf16.msra.mxu0 %v1163
        %1186 = vmatprep.subr.bf16.mxu0 0
        %1187 = vmatpush1.bf16.msra.mxu0 %v1164
        %1188 = vmatprep.subr.bf16.mxu0 0
        %1189 = vmatpush1.bf16.msra.mxu0 %v1165
        %1190 = vmatprep.subr.bf16.mxu0 0
        %1191 = vmatpush1.bf16.msra.mxu0 0
        %1192 = vmatprep.subr.bf16.mxu0 0
        %1193 = vmatpush1.bf16.msra.mxu0 0
        %1194 = vmatprep.subr.bf16.mxu0 0
        %1195 = vmatpush1.bf16.msra.mxu0 0
        %1196 = vmatprep.subr.bf16.mxu0 0
        %1197 = vmatpush1.bf16.msra.mxu0 0
        %1198 = vmatprep.subr.bf16.mxu0 0
        %1199 = vmatpush1.bf16.msra.mxu0 0
        %1200 = vmatprep.subr.bf16.mxu0 0
        %1201 = vmatpush1.bf16.msra.mxu0 0
        %1202 = vmatprep.subr.bf16.mxu0 0
        %1203 = vmatpush1.bf16.msra.mxu0 0
        %1204 = vmatprep.subr.bf16.mxu0 0
        %1205 = vmatpush1.bf16.msra.mxu0 0
        %1206 = vmatprep.mubr.bf16.mxu0 0
        %1207 = vmatmul.mubr.bf16.gmra.mrb[0].mxu0 %v1118
        %v1208 = vpop.f32.mrb[0].mxu0
        %v1209 = vadd.f32 0.0, %v1208
        %v1210 = vpop.f32.mrb[0].mxu0
        %v1211 = vpop.f32.mrb[0].mxu0
        %v1212 = vadd.f32 0.0, %v1211
        %v1213 = vpop.f32.mrb[0].mxu0
        %1214 = vmatprep.mubr.bf16.mxu0 0
        %1215 = vmatmul.mubr.bf16.gmra.mrb[0].mxu0 %v1119
        %v1216 = vpop.f32.mrb[0].mxu0
        %v1217 = vadd.f32 0.0, %v1216
        %v1218 = vpop.f32.mrb[0].mxu0
        %v1219 = vpop.f32.mrb[0].mxu0
        %v1220 = vadd.f32 0.0, %v1219
        %v1221 = vpop.f32.mrb[0].mxu0
        %1222 = vmatprep.mubr.bf16.mxu0 0
        %1223 = vmatmul.mubr.bf16.gmra.mrb[0].mxu0 %v1120
        %v1224 = vpop.f32.mrb[0].mxu0
        %v1225 = vadd.f32 0.0, %v1224
        %v1226 = vpop.f32.mrb[0].mxu0
        %v1227 = vpop.f32.mrb[0].mxu0
        %v1228 = vadd.f32 0.0, %v1227
        %v1229 = vpop.f32.mrb[0].mxu0
        %1230 = vmatprep.mubr.bf16.mxu0 0
        %1231 = vmatmul.mubr.bf16.gmra.mrb[0].mxu0 %v1121
        %v1232 = vpop.f32.mrb[0].mxu0
        %v1233 = vadd.f32 0.0, %v1232
        %v1234 = vpop.f32.mrb[0].mxu0
        %v1235 = vpop.f32.mrb[0].mxu0
        %v1236 = vadd.f32 0.0, %v1235
        %v1237 = vpop.f32.mrb[0].mxu0
        %1238 = vdwg.mxu0
        %v1239 = vadd.f32 %v1069, %v1209
        %v1240 = vadd.f32 %v1070, %v1212
        %v1241 = vadd.f32 %v1071, %v1217
        %v1242 = vadd.f32 %v1072, %v1220
        %v1243 = vadd.f32 %v1073, %v1225
        %v1244 = vadd.f32 %v1074, %v1228
        %v1245 = vadd.f32 %v1075, %v1233
        %v1246 = vadd.f32 %v1076, %v1236
        %v1247 = vld [vmem:[%s379] sm:$0xf]
        %v1248 = vld [vmem:[%s379 + $0x4] sm:$0x1]
        %v1249 = vld [vmem:[%s379 + $0x8] sm:$0xf]
        %v1250 = vld [vmem:[%s379 + $0xc] sm:$0x1]
        %v1251 = vld [vmem:[%s379 + $0x10] sm:$0xf]
        %v1252 = vld [vmem:[%s379 + $0x14] sm:$0x1]
        %v1253 = vld [vmem:[%s379 + $0x18] sm:$0xf]
        %v1254 = vld [vmem:[%s379 + $0x1c] sm:$0x1]
        %v1255 = vld [vmem:[%s379 + $0x20] sm:$0xf]
        %v1256 = vld [vmem:[%s379 + $0x24] sm:$0x1]
        %v1257 = vld [vmem:[%s379 + $0x28] sm:$0xf]
        %v1258 = vld [vmem:[%s379 + $0x2c] sm:$0x1]
        %v1259 = vld [vmem:[%s379 + $0x30] sm:$0xf]
        %v1260 = vld [vmem:[%s379 + $0x34] sm:$0x1]
        %v1261 = vld [vmem:[%s379 + $0x38] sm:$0xf]
        %v1262 = vld [vmem:[%s379 + $0x3c] sm:$0x1]
        %v1264 = vshrl.u32 %v1247, 16
        %v1266 = vrot.slane %v1264, 4
        %v1267 = vshll.u32 %v1247, 16
        %v1269 = vrot.slane %v1267, 5
        %v1270 = vor.u32 %v1266, %v1269
        %v1271 = vrot.slane %v1270, 4
        %v1273 = vshll.u32 %v1248, 16
        %v1275 = vrot.slane %v1273, 5
        %v1276 = vsel %vm468, %v1271, %v1275
        %v1278 = vshrl.u32 %v1249, 16
        %v1280 = vrot.slane %v1278, 4
        %v1281 = vshll.u32 %v1249, 16
        %v1283 = vrot.slane %v1281, 5
        %v1284 = vor.u32 %v1280, %v1283
        %v1285 = vrot.slane %v1284, 4
        %v1287 = vshll.u32 %v1250, 16
        %v1289 = vrot.slane %v1287, 5
        %v1290 = vsel %vm468, %v1285, %v1289
        %v1292 = vshrl.u32 %v1251, 16
        %v1294 = vrot.slane %v1292, 4
        %v1295 = vshll.u32 %v1251, 16
        %v1297 = vrot.slane %v1295, 5
        %v1298 = vor.u32 %v1294, %v1297
        %v1299 = vrot.slane %v1298, 4
        %v1301 = vshll.u32 %v1252, 16
        %v1303 = vrot.slane %v1301, 5
        %v1304 = vsel %vm468, %v1299, %v1303
        %v1306 = vshrl.u32 %v1253, 16
        %v1308 = vrot.slane %v1306, 4
        %v1309 = vshll.u32 %v1253, 16
        %v1311 = vrot.slane %v1309, 5
        %v1312 = vor.u32 %v1308, %v1311
        %v1313 = vrot.slane %v1312, 4
        %v1315 = vshll.u32 %v1254, 16
        %v1317 = vrot.slane %v1315, 5
        %v1318 = vsel %vm468, %v1313, %v1317
        %v1320 = vshrl.u32 %v1255, 16
        %v1322 = vrot.slane %v1320, 4
        %v1323 = vshll.u32 %v1255, 16
        %v1325 = vrot.slane %v1323, 5
        %v1326 = vor.u32 %v1322, %v1325
        %v1327 = vrot.slane %v1326, 4
        %v1329 = vshll.u32 %v1256, 16
        %v1331 = vrot.slane %v1329, 5
        %v1332 = vsel %vm468, %v1327, %v1331
        %v1334 = vshrl.u32 %v1257, 16
        %v1336 = vrot.slane %v1334, 4
        %v1337 = vshll.u32 %v1257, 16
        %v1339 = vrot.slane %v1337, 5
        %v1340 = vor.u32 %v1336, %v1339
        %v1341 = vrot.slane %v1340, 4
        %v1343 = vshll.u32 %v1258, 16
        %v1345 = vrot.slane %v1343, 5
        %v1346 = vsel %vm468, %v1341, %v1345
        %v1348 = vshrl.u32 %v1259, 16
        %v1350 = vrot.slane %v1348, 4
        %v1351 = vshll.u32 %v1259, 16
        %v1353 = vrot.slane %v1351, 5
        %v1354 = vor.u32 %v1350, %v1353
        %v1355 = vrot.slane %v1354, 4
        %v1357 = vshll.u32 %v1260, 16
        %v1359 = vrot.slane %v1357, 5
        %v1360 = vsel %vm468, %v1355, %v1359
        %v1362 = vshrl.u32 %v1261, 16
        %v1364 = vrot.slane %v1362, 4
        %v1365 = vshll.u32 %v1261, 16
        %v1367 = vrot.slane %v1365, 5
        %v1368 = vor.u32 %v1364, %v1367
        %v1369 = vrot.slane %v1368, 4
        %v1371 = vshll.u32 %v1262, 16
        %v1373 = vrot.slane %v1371, 5
        %v1374 = vsel %vm468, %v1369, %v1373
        %s1375 = scalar_lea.vmem %s1, 256
        %v1376 = vld [vmem:[%s1375] sm:$0xf]
        %v1377 = vld [vmem:[%s1375 + $0x4] sm:$0xf]
        %v1378 = vld [vmem:[%s1375 + $0x8] sm:$0xf]
        %v1379 = vld [vmem:[%s1375 + $0xc] sm:$0xf]
        %v1380 = vld [vmem:[%s1375 + $0x10] sm:$0xf]
        %v1381 = vld [vmem:[%s1375 + $0x14] sm:$0xf]
        %v1382 = vld [vmem:[%s1375 + $0x18] sm:$0xf]
        %v1383 = vld [vmem:[%s1375 + $0x1c] sm:$0xf]
        %v1384 = vld [vmem:[%s1375 + $0x20] sm:$0xf]
        %v1385 = vld [vmem:[%s1375 + $0x24] sm:$0xf]
        %v1386 = vld [vmem:[%s1375 + $0x28] sm:$0xf]
        %v1387 = vld [vmem:[%s1375 + $0x2c] sm:$0xf]
        %v1388 = vld [vmem:[%s1375 + $0x30] sm:$0xf]
        %v1389 = vld [vmem:[%s1375 + $0x34] sm:$0xf]
        %v1390 = vld [vmem:[%s1375 + $0x38] sm:$0xf]
        %v1391 = vld [vmem:[%s1375 + $0x3c] sm:$0xf]
        %v1392 = vunpack.c.l.b16 %v1276
        %v1393 = vunpack.c.l.b16 %v1290
        %v1394 = vunpack.c.l.b16 %v1304
        %v1395 = vunpack.c.l.b16 %v1318
        %v1396 = vunpack.c.l.b16 %v1332
        %v1397 = vunpack.c.l.b16 %v1346
        %v1398 = vunpack.c.l.b16 %v1360
        %v1399 = vunpack.c.l.b16 %v1374
        %v1400 = vpack.c.b16 %v1393, %v1392
        %v1401 = vpack.c.b16 %v1395, %v1394
        %v1402 = vpack.c.b16 %v1397, %v1396
        %v1403 = vpack.c.b16 %v1399, %v1398
        %v1424 = vunpack.c.l.b16 %v1376
        %v1425 = vunpack.c.l.b16 %v1377
        %v1426 = vunpack.c.l.b16 %v1378
        %v1427 = vunpack.c.l.b16 %v1379
        %v1428 = vunpack.c.l.b16 %v1380
        %v1429 = vunpack.c.l.b16 %v1381
        %v1430 = vunpack.c.l.b16 %v1382
        %v1431 = vunpack.c.l.b16 %v1383
        %v1432 = vunpack.c.l.b16 %v1384
        %v1433 = vunpack.c.l.b16 %v1385
        %v1434 = vunpack.c.l.b16 %v1386
        %v1435 = vunpack.c.l.b16 %v1387
        %v1436 = vunpack.c.l.b16 %v1388
        %v1437 = vunpack.c.l.b16 %v1389
        %v1438 = vunpack.c.l.b16 %v1390
        %v1439 = vunpack.c.l.b16 %v1391
        %v1440 = vpack.c.b16 %v1425, %v1424
        %v1441 = vpack.c.b16 %v1427, %v1426
        %v1442 = vpack.c.b16 %v1429, %v1428
        %v1443 = vpack.c.b16 %v1431, %v1430
        %v1444 = vpack.c.b16 %v1433, %v1432
        %v1445 = vpack.c.b16 %v1435, %v1434
        %v1446 = vpack.c.b16 %v1437, %v1436
        %v1447 = vpack.c.b16 %v1439, %v1438
        %1456 = vmatprep.subr.bf16.mxu0 0
        %1457 = vmatpush1.bf16.msra.mxu0 %v1440
        %1458 = vmatprep.subr.bf16.mxu0 0
        %1459 = vmatpush1.bf16.msra.mxu0 %v1441
        %1460 = vmatprep.subr.bf16.mxu0 0
        %1461 = vmatpush1.bf16.msra.mxu0 %v1442
        %1462 = vmatprep.subr.bf16.mxu0 0
        %1463 = vmatpush1.bf16.msra.mxu0 %v1443
        %1464 = vmatprep.subr.bf16.mxu0 0
        %1465 = vmatpush1.bf16.msra.mxu0 %v1444
        %1466 = vmatprep.subr.bf16.mxu0 0
        %1467 = vmatpush1.bf16.msra.mxu0 %v1445
        %1468 = vmatprep.subr.bf16.mxu0 0
        %1469 = vmatpush1.bf16.msra.mxu0 %v1446
        %1470 = vmatprep.subr.bf16.mxu0 0
        %1471 = vmatpush1.bf16.msra.mxu0 %v1447
        %1472 = vmatprep.subr.bf16.mxu0 0
        %1473 = vmatpush1.bf16.msra.mxu0 0
        %1474 = vmatprep.subr.bf16.mxu0 0
        %1475 = vmatpush1.bf16.msra.mxu0 0
        %1476 = vmatprep.subr.bf16.mxu0 0
        %1477 = vmatpush1.bf16.msra.mxu0 0
        %1478 = vmatprep.subr.bf16.mxu0 0
        %1479 = vmatpush1.bf16.msra.mxu0 0
        %1480 = vmatprep.subr.bf16.mxu0 0
        %1481 = vmatpush1.bf16.msra.mxu0 0
        %1482 = vmatprep.subr.bf16.mxu0 0
        %1483 = vmatpush1.bf16.msra.mxu0 0
        %1484 = vmatprep.subr.bf16.mxu0 0
        %1485 = vmatpush1.bf16.msra.mxu0 0
        %1486 = vmatprep.subr.bf16.mxu0 0
        %1487 = vmatpush1.bf16.msra.mxu0 0
        %1488 = vmatprep.mubr.bf16.mxu0 0
        %1489 = vmatmul.mubr.bf16.gmra.mrb[0].mxu0 %v1400
        %v1490 = vpop.f32.mrb[0].mxu0
        %v1491 = vadd.f32 0.0, %v1490
        %v1492 = vpop.f32.mrb[0].mxu0
        %v1493 = vpop.f32.mrb[0].mxu0
        %v1494 = vadd.f32 0.0, %v1493
        %v1495 = vpop.f32.mrb[0].mxu0
        %1496 = vmatprep.mubr.bf16.mxu0 0
        %1497 = vmatmul.mubr.bf16.gmra.mrb[0].mxu0 %v1401
        %v1498 = vpop.f32.mrb[0].mxu0
        %v1499 = vadd.f32 0.0, %v1498
        %v1500 = vpop.f32.mrb[0].mxu0
        %v1501 = vpop.f32.mrb[0].mxu0
        %v1502 = vadd.f32 0.0, %v1501
        %v1503 = vpop.f32.mrb[0].mxu0
        %1504 = vmatprep.mubr.bf16.mxu0 0
        %1505 = vmatmul.mubr.bf16.gmra.mrb[0].mxu0 %v1402
        %v1506 = vpop.f32.mrb[0].mxu0
        %v1507 = vadd.f32 0.0, %v1506
        %v1508 = vpop.f32.mrb[0].mxu0
        %v1509 = vpop.f32.mrb[0].mxu0
        %v1510 = vadd.f32 0.0, %v1509
        %v1511 = vpop.f32.mrb[0].mxu0
        %1512 = vmatprep.mubr.bf16.mxu0 0
        %1513 = vmatmul.mubr.bf16.gmra.mrb[0].mxu0 %v1403
        %v1514 = vpop.f32.mrb[0].mxu0
        %v1515 = vadd.f32 0.0, %v1514
        %v1516 = vpop.f32.mrb[0].mxu0
        %v1517 = vpop.f32.mrb[0].mxu0
        %v1518 = vadd.f32 0.0, %v1517
        %v1519 = vpop.f32.mrb[0].mxu0
        %1520 = vdwg.mxu0
        %v1521 = vadd.f32 %v1239, %v1491
        %v1522 = vadd.f32 %v1240, %v1494
        %v1523 = vadd.f32 %v1241, %v1499
        %v1524 = vadd.f32 %v1242, %v1502
        %v1525 = vadd.f32 %v1243, %v1507
        %v1526 = vadd.f32 %v1244, %v1510
        %v1527 = vadd.f32 %v1245, %v1515
        %v1528 = vadd.f32 %v1246, %v1518
        %v1529 = vld [vmem:[%s379] sm:$0xe]
        %v1530 = vld [vmem:[%s379 + $0x8] sm:$0xe]
        %v1531 = vld [vmem:[%s379 + $0x10] sm:$0xe]
        %v1532 = vld [vmem:[%s379 + $0x18] sm:$0xe]
        %v1533 = vld [vmem:[%s379 + $0x20] sm:$0xe]
        %v1534 = vld [vmem:[%s379 + $0x28] sm:$0xe]
        %v1535 = vld [vmem:[%s379 + $0x30] sm:$0xe]
        %v1536 = vld [vmem:[%s379 + $0x38] sm:$0xe]
        %v1553 = vrot.slane %v1529, 5
        %v1554 = vrot.slane %v1553, 4
        %v1555 = vrot.slane %v1248, 5
        %v1556 = vsel %vm890, %v1554, %v1555
        %v1557 = vrot.slane %v1530, 5
        %v1558 = vrot.slane %v1557, 4
        %v1559 = vrot.slane %v1250, 5
        %v1560 = vsel %vm890, %v1558, %v1559
        %v1561 = vrot.slane %v1531, 5
        %v1562 = vrot.slane %v1561, 4
        %v1563 = vrot.slane %v1252, 5
        %v1564 = vsel %vm890, %v1562, %v1563
        %v1565 = vrot.slane %v1532, 5
        %v1566 = vrot.slane %v1565, 4
        %v1567 = vrot.slane %v1254, 5
        %v1568 = vsel %vm890, %v1566, %v1567
        %v1569 = vrot.slane %v1533, 5
        %v1570 = vrot.slane %v1569, 4
        %v1571 = vrot.slane %v1256, 5
        %v1572 = vsel %vm890, %v1570, %v1571
        %v1573 = vrot.slane %v1534, 5
        %v1574 = vrot.slane %v1573, 4
        %v1575 = vrot.slane %v1258, 5
        %v1576 = vsel %vm890, %v1574, %v1575
        %v1577 = vrot.slane %v1535, 5
        %v1578 = vrot.slane %v1577, 4
        %v1579 = vrot.slane %v1260, 5
        %v1580 = vsel %vm890, %v1578, %v1579
        %v1581 = vrot.slane %v1536, 5
        %v1582 = vrot.slane %v1581, 4
        %v1583 = vrot.slane %v1262, 5
        %v1584 = vsel %vm890, %v1582, %v1583
        %s1585 = scalar_lea.vmem %s1, 320
        %v1586 = vld [vmem:[%s1585] sm:$0xf]
        %v1587 = vld [vmem:[%s1585 + $0x4] sm:$0xf]
        %v1588 = vld [vmem:[%s1585 + $0x8] sm:$0xf]
        %v1589 = vld [vmem:[%s1585 + $0xc] sm:$0xf]
        %v1590 = vld [vmem:[%s1585 + $0x10] sm:$0xf]
        %v1591 = vld [vmem:[%s1585 + $0x14] sm:$0xf]
        %v1592 = vld [vmem:[%s1585 + $0x18] sm:$0xf]
        %v1593 = vld [vmem:[%s1585 + $0x1c] sm:$0xf]
        %v1594 = vld [vmem:[%s1585 + $0x20] sm:$0xf]
        %v1595 = vld [vmem:[%s1585 + $0x24] sm:$0xf]
        %v1596 = vld [vmem:[%s1585 + $0x28] sm:$0xf]
        %v1597 = vld [vmem:[%s1585 + $0x2c] sm:$0xf]
        %v1598 = vld [vmem:[%s1585 + $0x30] sm:$0xf]
        %v1599 = vld [vmem:[%s1585 + $0x34] sm:$0xf]
        %v1600 = vld [vmem:[%s1585 + $0x38] sm:$0xf]
        %v1601 = vld [vmem:[%s1585 + $0x3c] sm:$0xf]
        %v1602 = vunpack.c.l.b16 %v1556
        %v1603 = vunpack.c.l.b16 %v1560
        %v1604 = vunpack.c.l.b16 %v1564
        %v1605 = vunpack.c.l.b16 %v1568
        %v1606 = vunpack.c.l.b16 %v1572
        %v1607 = vunpack.c.l.b16 %v1576
        %v1608 = vunpack.c.l.b16 %v1580
        %v1609 = vunpack.c.l.b16 %v1584
        %v1610 = vpack.c.b16 %v1603, %v1602
        %v1611 = vpack.c.b16 %v1605, %v1604
        %v1612 = vpack.c.b16 %v1607, %v1606
        %v1613 = vpack.c.b16 %v1609, %v1608
        %v1634 = vunpack.c.l.b16 %v1586
        %v1635 = vunpack.c.l.b16 %v1587
        %v1636 = vunpack.c.l.b16 %v1588
        %v1637 = vunpack.c.l.b16 %v1589
        %v1638 = vunpack.c.l.b16 %v1590
        %v1639 = vunpack.c.l.b16 %v1591
        %v1640 = vunpack.c.l.b16 %v1592
        %v1641 = vunpack.c.l.b16 %v1593
        %v1642 = vunpack.c.l.b16 %v1594
        %v1643 = vunpack.c.l.b16 %v1595
        %v1644 = vunpack.c.l.b16 %v1596
        %v1645 = vunpack.c.l.b16 %v1597
        %v1646 = vunpack.c.l.b16 %v1598
        %v1647 = vunpack.c.l.b16 %v1599
        %v1648 = vunpack.c.l.b16 %v1600
        %v1649 = vunpack.c.l.b16 %v1601
        %v1650 = vpack.c.b16 %v1635, %v1634
        %v1651 = vpack.c.b16 %v1637, %v1636
        %v1652 = vpack.c.b16 %v1639, %v1638
        %v1653 = vpack.c.b16 %v1641, %v1640
        %v1654 = vpack.c.b16 %v1643, %v1642
        %v1655 = vpack.c.b16 %v1645, %v1644
        %v1656 = vpack.c.b16 %v1647, %v1646
        %v1657 = vpack.c.b16 %v1649, %v1648
        %1666 = vmatprep.subr.bf16.mxu0 0
        %1667 = vmatpush1.bf16.msra.mxu0 %v1650
        %1668 = vmatprep.subr.bf16.mxu0 0
        %1669 = vmatpush1.bf16.msra.mxu0 %v1651
        %1670 = vmatprep.subr.bf16.mxu0 0
        %1671 = vmatpush1.bf16.msra.mxu0 %v1652
        %1672 = vmatprep.subr.bf16.mxu0 0
        %1673 = vmatpush1.bf16.msra.mxu0 %v1653
        %1674 = vmatprep.subr.bf16.mxu0 0
        %1675 = vmatpush1.bf16.msra.mxu0 %v1654
        %1676 = vmatprep.subr.bf16.mxu0 0
        %1677 = vmatpush1.bf16.msra.mxu0 %v1655
        %1678 = vmatprep.subr.bf16.mxu0 0
        %1679 = vmatpush1.bf16.msra.mxu0 %v1656
        %1680 = vmatprep.subr.bf16.mxu0 0
        %1681 = vmatpush1.bf16.msra.mxu0 %v1657
        %1682 = vmatprep.subr.bf16.mxu0 0
        %1683 = vmatpush1.bf16.msra.mxu0 0
        %1684 = vmatprep.subr.bf16.mxu0 0
        %1685 = vmatpush1.bf16.msra.mxu0 0
        %1686 = vmatprep.subr.bf16.mxu0 0
        %1687 = vmatpush1.bf16.msra.mxu0 0
        %1688 = vmatprep.subr.bf16.mxu0 0
        %1689 = vmatpush1.bf16.msra.mxu0 0
        %1690 = vmatprep.subr.bf16.mxu0 0
        %1691 = vmatpush1.bf16.msra.mxu0 0
        %1692 = vmatprep.subr.bf16.mxu0 0
        %1693 = vmatpush1.bf16.msra.mxu0 0
        %1694 = vmatprep.subr.bf16.mxu0 0
        %1695 = vmatpush1.bf16.msra.mxu0 0
        %1696 = vmatprep.subr.bf16.mxu0 0
        %1697 = vmatpush1.bf16.msra.mxu0 0
        %1698 = vmatprep.mubr.bf16.mxu0 0
        %1699 = vmatmul.mubr.bf16.gmra.mrb[0].mxu0 %v1610
        %v1700 = vpop.f32.mrb[0].mxu0
        %v1701 = vadd.f32 0.0, %v1700
        %v1702 = vpop.f32.mrb[0].mxu0
        %v1703 = vpop.f32.mrb[0].mxu0
        %v1704 = vadd.f32 0.0, %v1703
        %v1705 = vpop.f32.mrb[0].mxu0
        %1706 = vmatprep.mubr.bf16.mxu0 0
        %1707 = vmatmul.mubr.bf16.gmra.mrb[0].mxu0 %v1611
        %v1708 = vpop.f32.mrb[0].mxu0
        %v1709 = vadd.f32 0.0, %v1708
        %v1710 = vpop.f32.mrb[0].mxu0
        %v1711 = vpop.f32.mrb[0].mxu0
        %v1712 = vadd.f32 0.0, %v1711
        %v1713 = vpop.f32.mrb[0].mxu0
        %1714 = vmatprep.mubr.bf16.mxu0 0
        %1715 = vmatmul.mubr.bf16.gmra.mrb[0].mxu0 %v1612
        %v1716 = vpop.f32.mrb[0].mxu0
        %v1717 = vadd.f32 0.0, %v1716
        %v1718 = vpop.f32.mrb[0].mxu0
        %v1719 = vpop.f32.mrb[0].mxu0
        %v1720 = vadd.f32 0.0, %v1719
        %v1721 = vpop.f32.mrb[0].mxu0
        %1722 = vmatprep.mubr.bf16.mxu0 0
        %1723 = vmatmul.mubr.bf16.gmra.mrb[0].mxu0 %v1613
        %v1724 = vpop.f32.mrb[0].mxu0
        %v1725 = vadd.f32 0.0, %v1724
        %v1726 = vpop.f32.mrb[0].mxu0
        %v1727 = vpop.f32.mrb[0].mxu0
        %v1728 = vadd.f32 0.0, %v1727
        %v1729 = vpop.f32.mrb[0].mxu0
        %1730 = vdwg.mxu0
        %v1731 = vadd.f32 %v1521, %v1701
        %v1732 = vadd.f32 %v1522, %v1704
        %v1733 = vadd.f32 %v1523, %v1709
        %v1734 = vadd.f32 %v1524, %v1712
        %v1735 = vadd.f32 %v1525, %v1717
        %v1736 = vadd.f32 %v1526, %v1720
        %v1737 = vadd.f32 %v1527, %v1725
        %v1738 = vadd.f32 %v1528, %v1728
        %s1739 = scalar_lea.vmem [#allocation2], 16
        %v1740 = vld [vmem:[%s1739] sm:$0xf]
        %v1741 = vld [vmem:[%s1739 + $0x8] sm:$0xf]
        %v1742 = vld [vmem:[%s1739 + $0x10] sm:$0xf]
        %v1743 = vld [vmem:[%s1739 + $0x18] sm:$0xf]
        %v1744 = vld [vmem:[%s1739 + $0x20] sm:$0xf]
        %v1745 = vld [vmem:[%s1739 + $0x28] sm:$0xf]
        %v1746 = vld [vmem:[%s1739 + $0x30] sm:$0xf]
        %v1747 = vld [vmem:[%s1739 + $0x38] sm:$0xf]
        %s1748 = scalar_lea.vmem %s1, 384
        %v1749 = vld [vmem:[%s1748] sm:$0xf]
        %v1750 = vld [vmem:[%s1748 + $0x4] sm:$0xf]
        %v1751 = vld [vmem:[%s1748 + $0x8] sm:$0xf]
        %v1752 = vld [vmem:[%s1748 + $0xc] sm:$0xf]
        %v1753 = vld [vmem:[%s1748 + $0x10] sm:$0xf]
        %v1754 = vld [vmem:[%s1748 + $0x14] sm:$0xf]
        %v1755 = vld [vmem:[%s1748 + $0x18] sm:$0xf]
        %v1756 = vld [vmem:[%s1748 + $0x1c] sm:$0xf]
        %v1757 = vld [vmem:[%s1748 + $0x20] sm:$0xf]
        %v1758 = vld [vmem:[%s1748 + $0x24] sm:$0xf]
        %v1759 = vld [vmem:[%s1748 + $0x28] sm:$0xf]
        %v1760 = vld [vmem:[%s1748 + $0x2c] sm:$0xf]
        %v1761 = vld [vmem:[%s1748 + $0x30] sm:$0xf]
        %v1762 = vld [vmem:[%s1748 + $0x34] sm:$0xf]
        %v1763 = vld [vmem:[%s1748 + $0x38] sm:$0xf]
        %v1764 = vld [vmem:[%s1748 + $0x3c] sm:$0xf]
        %v1773 = vunpack.c.l.b16 %v1740
        %v1774 = vunpack.c.l.b16 %v1741
        %v1775 = vunpack.c.l.b16 %v1742
        %v1776 = vunpack.c.l.b16 %v1743
        %v1777 = vunpack.c.l.b16 %v1744
        %v1778 = vunpack.c.l.b16 %v1745
        %v1779 = vunpack.c.l.b16 %v1746
        %v1780 = vunpack.c.l.b16 %v1747
        %v1781 = vpack.c.b16 %v1774, %v1773
        %v1782 = vpack.c.b16 %v1776, %v1775
        %v1783 = vpack.c.b16 %v1778, %v1777
        %v1784 = vpack.c.b16 %v1780, %v1779
        %v1805 = vunpack.c.l.b16 %v1749
        %v1806 = vunpack.c.l.b16 %v1750
        %v1807 = vunpack.c.l.b16 %v1751
        %v1808 = vunpack.c.l.b16 %v1752
        %v1809 = vunpack.c.l.b16 %v1753
        %v1810 = vunpack.c.l.b16 %v1754
        %v1811 = vunpack.c.l.b16 %v1755
        %v1812 = vunpack.c.l.b16 %v1756
        %v1813 = vunpack.c.l.b16 %v1757
        %v1814 = vunpack.c.l.b16 %v1758
        %v1815 = vunpack.c.l.b16 %v1759
        %v1816 = vunpack.c.l.b16 %v1760
        %v1817 = vunpack.c.l.b16 %v1761
        %v1818 = vunpack.c.l.b16 %v1762
        %v1819 = vunpack.c.l.b16 %v1763
        %v1820 = vunpack.c.l.b16 %v1764
        %v1821 = vpack.c.b16 %v1806, %v1805
        %v1822 = vpack.c.b16 %v1808, %v1807
        %v1823 = vpack.c.b16 %v1810, %v1809
        %v1824 = vpack.c.b16 %v1812, %v1811
        %v1825 = vpack.c.b16 %v1814, %v1813
        %v1826 = vpack.c.b16 %v1816, %v1815
        %v1827 = vpack.c.b16 %v1818, %v1817
        %v1828 = vpack.c.b16 %v1820, %v1819
        %1837 = vmatprep.subr.bf16.mxu0 0
        %1838 = vmatpush1.bf16.msra.mxu0 %v1821
        %1839 = vmatprep.subr.bf16.mxu0 0
        %1840 = vmatpush1.bf16.msra.mxu0 %v1822
        %1841 = vmatprep.subr.bf16.mxu0 0
        %1842 = vmatpush1.bf16.msra.mxu0 %v1823
        %1843 = vmatprep.subr.bf16.mxu0 0
        %1844 = vmatpush1.bf16.msra.mxu0 %v1824
        %1845 = vmatprep.subr.bf16.mxu0 0
        %1846 = vmatpush1.bf16.msra.mxu0 %v1825
        %1847 = vmatprep.subr.bf16.mxu0 0
        %1848 = vmatpush1.bf16.msra.mxu0 %v1826
        %1849 = vmatprep.subr.bf16.mxu0 0
        %1850 = vmatpush1.bf16.msra.mxu0 %v1827
        %1851 = vmatprep.subr.bf16.mxu0 0
        %1852 = vmatpush1.bf16.msra.mxu0 %v1828
        %1853 = vmatprep.subr.bf16.mxu0 0
        %1854 = vmatpush1.bf16.msra.mxu0 0
        %1855 = vmatprep.subr.bf16.mxu0 0
        %1856 = vmatpush1.bf16.msra.mxu0 0
        %1857 = vmatprep.subr.bf16.mxu0 0
        %1858 = vmatpush1.bf16.msra.mxu0 0
        %1859 = vmatprep.subr.bf16.mxu0 0
        %1860 = vmatpush1.bf16.msra.mxu0 0
        %1861 = vmatprep.subr.bf16.mxu0 0
        %1862 = vmatpush1.bf16.msra.mxu0 0
        %1863 = vmatprep.subr.bf16.mxu0 0
        %1864 = vmatpush1.bf16.msra.mxu0 0
        %1865 = vmatprep.subr.bf16.mxu0 0
        %1866 = vmatpush1.bf16.msra.mxu0 0
        %1867 = vmatprep.subr.bf16.mxu0 0
        %1868 = vmatpush1.bf16.msra.mxu0 0
        %1869 = vmatprep.mubr.bf16.mxu0 0
        %1870 = vmatmul.mubr.bf16.gmra.mrb[0].mxu0 %v1781
        %v1871 = vpop.f32.mrb[0].mxu0
        %v1872 = vadd.f32 0.0, %v1871
        %v1873 = vpop.f32.mrb[0].mxu0
        %v1874 = vpop.f32.mrb[0].mxu0
        %v1875 = vadd.f32 0.0, %v1874
        %v1876 = vpop.f32.mrb[0].mxu0
        %1877 = vmatprep.mubr.bf16.mxu0 0
        %1878 = vmatmul.mubr.bf16.gmra.mrb[0].mxu0 %v1782
        %v1879 = vpop.f32.mrb[0].mxu0
        %v1880 = vadd.f32 0.0, %v1879
        %v1881 = vpop.f32.mrb[0].mxu0
        %v1882 = vpop.f32.mrb[0].mxu0
        %v1883 = vadd.f32 0.0, %v1882
        %v1884 = vpop.f32.mrb[0].mxu0
        %1885 = vmatprep.mubr.bf16.mxu0 0
        %1886 = vmatmul.mubr.bf16.gmra.mrb[0].mxu0 %v1783
        %v1887 = vpop.f32.mrb[0].mxu0
        %v1888 = vadd.f32 0.0, %v1887
        %v1889 = vpop.f32.mrb[0].mxu0
        %v1890 = vpop.f32.mrb[0].mxu0
        %v1891 = vadd.f32 0.0, %v1890
        %v1892 = vpop.f32.mrb[0].mxu0
        %1893 = vmatprep.mubr.bf16.mxu0 0
        %1894 = vmatmul.mubr.bf16.gmra.mrb[0].mxu0 %v1784
        %v1895 = vpop.f32.mrb[0].mxu0
        %v1896 = vadd.f32 0.0, %v1895
        %v1897 = vpop.f32.mrb[0].mxu0
        %v1898 = vpop.f32.mrb[0].mxu0
        %v1899 = vadd.f32 0.0, %v1898
        %v1900 = vpop.f32.mrb[0].mxu0
        %1901 = vdwg.mxu0
        %v1902 = vadd.f32 %v1731, %v1872
        %v1903 = vadd.f32 %v1732, %v1875
        %v1904 = vadd.f32 %v1733, %v1880
        %v1905 = vadd.f32 %v1734, %v1883
        %v1906 = vadd.f32 %v1735, %v1888
        %v1907 = vadd.f32 %v1736, %v1891
        %v1908 = vadd.f32 %v1737, %v1896
        %v1909 = vadd.f32 %v1738, %v1899
        %v1910 = vld [vmem:[%s1739] sm:$0xf]
        %v1911 = vld [vmem:[%s1739 + $0x4] sm:$0x1]
        %v1912 = vld [vmem:[%s1739 + $0x8] sm:$0xf]
        %v1913 = vld [vmem:[%s1739 + $0xc] sm:$0x1]
        %v1914 = vld [vmem:[%s1739 + $0x10] sm:$0xf]
        %v1915 = vld [vmem:[%s1739 + $0x14] sm:$0x1]
        %v1916 = vld [vmem:[%s1739 + $0x18] sm:$0xf]
        %v1917 = vld [vmem:[%s1739 + $0x1c] sm:$0x1]
        %v1918 = vld [vmem:[%s1739 + $0x20] sm:$0xf]
        %v1919 = vld [vmem:[%s1739 + $0x24] sm:$0x1]
        %v1920 = vld [vmem:[%s1739 + $0x28] sm:$0xf]
        %v1921 = vld [vmem:[%s1739 + $0x2c] sm:$0x1]
        %v1922 = vld [vmem:[%s1739 + $0x30] sm:$0xf]
        %v1923 = vld [vmem:[%s1739 + $0x34] sm:$0x1]
        %v1924 = vld [vmem:[%s1739 + $0x38] sm:$0xf]
        %v1925 = vld [vmem:[%s1739 + $0x3c] sm:$0x1]
        %v1927 = vshrl.u32 %v1910, 16
        %v1929 = vrot.slane %v1927, 4
        %v1930 = vshll.u32 %v1910, 16
        %v1932 = vrot.slane %v1930, 5
        %v1933 = vor.u32 %v1929, %v1932
        %v1934 = vrot.slane %v1933, 4
        %v1936 = vshll.u32 %v1911, 16
        %v1938 = vrot.slane %v1936, 5
        %v1939 = vsel %vm468, %v1934, %v1938
        %v1941 = vshrl.u32 %v1912, 16
        %v1943 = vrot.slane %v1941, 4
        %v1944 = vshll.u32 %v1912, 16
        %v1946 = vrot.slane %v1944, 5
        %v1947 = vor.u32 %v1943, %v1946
        %v1948 = vrot.slane %v1947, 4
        %v1950 = vshll.u32 %v1913, 16
        %v1952 = vrot.slane %v1950, 5
        %v1953 = vsel %vm468, %v1948, %v1952
        %v1955 = vshrl.u32 %v1914, 16
        %v1957 = vrot.slane %v1955, 4
        %v1958 = vshll.u32 %v1914, 16
        %v1960 = vrot.slane %v1958, 5
        %v1961 = vor.u32 %v1957, %v1960
        %v1962 = vrot.slane %v1961, 4
        %v1964 = vshll.u32 %v1915, 16
        %v1966 = vrot.slane %v1964, 5
        %v1967 = vsel %vm468, %v1962, %v1966
        %v1969 = vshrl.u32 %v1916, 16
        %v1971 = vrot.slane %v1969, 4
        %v1972 = vshll.u32 %v1916, 16
        %v1974 = vrot.slane %v1972, 5
        %v1975 = vor.u32 %v1971, %v1974
        %v1976 = vrot.slane %v1975, 4
        %v1978 = vshll.u32 %v1917, 16
        %v1980 = vrot.slane %v1978, 5
        %v1981 = vsel %vm468, %v1976, %v1980
        %v1983 = vshrl.u32 %v1918, 16
        %v1985 = vrot.slane %v1983, 4
        %v1986 = vshll.u32 %v1918, 16
        %v1988 = vrot.slane %v1986, 5
        %v1989 = vor.u32 %v1985, %v1988
        %v1990 = vrot.slane %v1989, 4
        %v1992 = vshll.u32 %v1919, 16
        %v1994 = vrot.slane %v1992, 5
        %v1995 = vsel %vm468, %v1990, %v1994
        %v1997 = vshrl.u32 %v1920, 16
        %v1999 = vrot.slane %v1997, 4
        %v2000 = vshll.u32 %v1920, 16
        %v2002 = vrot.slane %v2000, 5
        %v2003 = vor.u32 %v1999, %v2002
        %v2004 = vrot.slane %v2003, 4
        %v2006 = vshll.u32 %v1921, 16
        %v2008 = vrot.slane %v2006, 5
        %v2009 = vsel %vm468, %v2004, %v2008
        %v2011 = vshrl.u32 %v1922, 16
        %v2013 = vrot.slane %v2011, 4
        %v2014 = vshll.u32 %v1922, 16
        %v2016 = vrot.slane %v2014, 5
        %v2017 = vor.u32 %v2013, %v2016
        %v2018 = vrot.slane %v2017, 4
        %v2020 = vshll.u32 %v1923, 16
        %v2022 = vrot.slane %v2020, 5
        %v2023 = vsel %vm468, %v2018, %v2022
        %v2025 = vshrl.u32 %v1924, 16
        %v2027 = vrot.slane %v2025, 4
        %v2028 = vshll.u32 %v1924, 16
        %v2030 = vrot.slane %v2028, 5
        %v2031 = vor.u32 %v2027, %v2030
        %v2032 = vrot.slane %v2031, 4
        %v2034 = vshll.u32 %v1925, 16
        %v2036 = vrot.slane %v2034, 5
        %v2037 = vsel %vm468, %v2032, %v2036
        %s2038 = scalar_lea.vmem %s1, 448
        %v2039 = vld [vmem:[%s2038] sm:$0xf]
        %v2040 = vld [vmem:[%s2038 + $0x4] sm:$0xf]
        %v2041 = vld [vmem:[%s2038 + $0x8] sm:$0xf]
        %v2042 = vld [vmem:[%s2038 + $0xc] sm:$0xf]
        %v2043 = vld [vmem:[%s2038 + $0x10] sm:$0xf]
        %v2044 = vld [vmem:[%s2038 + $0x14] sm:$0xf]
        %v2045 = vld [vmem:[%s2038 + $0x18] sm:$0xf]
        %v2046 = vld [vmem:[%s2038 + $0x1c] sm:$0xf]
        %v2047 = vld [vmem:[%s2038 + $0x20] sm:$0xf]
        %v2048 = vld [vmem:[%s2038 + $0x24] sm:$0xf]
        %v2049 = vld [vmem:[%s2038 + $0x28] sm:$0xf]
        %v2050 = vld [vmem:[%s2038 + $0x2c] sm:$0xf]
        %v2051 = vld [vmem:[%s2038 + $0x30] sm:$0xf]
        %v2052 = vld [vmem:[%s2038 + $0x34] sm:$0xf]
        %v2053 = vld [vmem:[%s2038 + $0x38] sm:$0xf]
        %v2054 = vld [vmem:[%s2038 + $0x3c] sm:$0xf]
        %v2055 = vunpack.c.l.b16 %v1939
        %v2056 = vunpack.c.l.b16 %v1953
        %v2057 = vunpack.c.l.b16 %v1967
        %v2058 = vunpack.c.l.b16 %v1981
        %v2059 = vunpack.c.l.b16 %v1995
        %v2060 = vunpack.c.l.b16 %v2009
        %v2061 = vunpack.c.l.b16 %v2023
        %v2062 = vunpack.c.l.b16 %v2037
        %v2063 = vpack.c.b16 %v2056, %v2055
        %v2064 = vpack.c.b16 %v2058, %v2057
        %v2065 = vpack.c.b16 %v2060, %v2059
        %v2066 = vpack.c.b16 %v2062, %v2061
        %v2087 = vunpack.c.l.b16 %v2039
        %v2088 = vunpack.c.l.b16 %v2040
        %v2089 = vunpack.c.l.b16 %v2041
        %v2090 = vunpack.c.l.b16 %v2042
        %v2091 = vunpack.c.l.b16 %v2043
        %v2092 = vunpack.c.l.b16 %v2044
        %v2093 = vunpack.c.l.b16 %v2045
        %v2094 = vunpack.c.l.b16 %v2046
        %v2095 = vunpack.c.l.b16 %v2047
        %v2096 = vunpack.c.l.b16 %v2048
        %v2097 = vunpack.c.l.b16 %v2049
        %v2098 = vunpack.c.l.b16 %v2050
        %v2099 = vunpack.c.l.b16 %v2051
        %v2100 = vunpack.c.l.b16 %v2052
        %v2101 = vunpack.c.l.b16 %v2053
        %v2102 = vunpack.c.l.b16 %v2054
        %v2103 = vpack.c.b16 %v2088, %v2087
        %v2104 = vpack.c.b16 %v2090, %v2089
        %v2105 = vpack.c.b16 %v2092, %v2091
        %v2106 = vpack.c.b16 %v2094, %v2093
        %v2107 = vpack.c.b16 %v2096, %v2095
        %v2108 = vpack.c.b16 %v2098, %v2097
        %v2109 = vpack.c.b16 %v2100, %v2099
        %v2110 = vpack.c.b16 %v2102, %v2101
        %2119 = vmatprep.subr.bf16.mxu0 0
        %2120 = vmatpush1.bf16.msra.mxu0 %v2103
        %2121 = vmatprep.subr.bf16.mxu0 0
        %2122 = vmatpush1.bf16.msra.mxu0 %v2104
        %2123 = vmatprep.subr.bf16.mxu0 0
        %2124 = vmatpush1.bf16.msra.mxu0 %v2105
        %2125 = vmatprep.subr.bf16.mxu0 0
        %2126 = vmatpush1.bf16.msra.mxu0 %v2106
        %2127 = vmatprep.subr.bf16.mxu0 0
        %2128 = vmatpush1.bf16.msra.mxu0 %v2107
        %2129 = vmatprep.subr.bf16.mxu0 0
        %2130 = vmatpush1.bf16.msra.mxu0 %v2108
        %2131 = vmatprep.subr.bf16.mxu0 0
        %2132 = vmatpush1.bf16.msra.mxu0 %v2109
        %2133 = vmatprep.subr.bf16.mxu0 0
        %2134 = vmatpush1.bf16.msra.mxu0 %v2110
        %2135 = vmatprep.subr.bf16.mxu0 0
        %2136 = vmatpush1.bf16.msra.mxu0 0
        %2137 = vmatprep.subr.bf16.mxu0 0
        %2138 = vmatpush1.bf16.msra.mxu0 0
        %2139 = vmatprep.subr.bf16.mxu0 0
        %2140 = vmatpush1.bf16.msra.mxu0 0
        %2141 = vmatprep.subr.bf16.mxu0 0
        %2142 = vmatpush1.bf16.msra.mxu0 0
        %2143 = vmatprep.subr.bf16.mxu0 0
        %2144 = vmatpush1.bf16.msra.mxu0 0
        %2145 = vmatprep.subr.bf16.mxu0 0
        %2146 = vmatpush1.bf16.msra.mxu0 0
        %2147 = vmatprep.subr.bf16.mxu0 0
        %2148 = vmatpush1.bf16.msra.mxu0 0
        %2149 = vmatprep.subr.bf16.mxu0 0
        %2150 = vmatpush1.bf16.msra.mxu0 0
        %2151 = vmatprep.mubr.bf16.mxu0 0
        %2152 = vmatmul.mubr.bf16.gmra.mrb[0].mxu0 %v2063
        %v2153 = vpop.f32.mrb[0].mxu0
        %v2154 = vadd.f32 0.0, %v2153
        %v2155 = vpop.f32.mrb[0].mxu0
        %v2156 = vpop.f32.mrb[0].mxu0
        %v2157 = vadd.f32 0.0, %v2156
        %v2158 = vpop.f32.mrb[0].mxu0
        %2159 = vmatprep.mubr.bf16.mxu0 0
        %2160 = vmatmul.mubr.bf16.gmra.mrb[0].mxu0 %v2064
        %v2161 = vpop.f32.mrb[0].mxu0
        %v2162 = vadd.f32 0.0, %v2161
        %v2163 = vpop.f32.mrb[0].mxu0
        %v2164 = vpop.f32.mrb[0].mxu0
        %v2165 = vadd.f32 0.0, %v2164
        %v2166 = vpop.f32.mrb[0].mxu0
        %2167 = vmatprep.mubr.bf16.mxu0 0
        %2168 = vmatmul.mubr.bf16.gmra.mrb[0].mxu0 %v2065
        %v2169 = vpop.f32.mrb[0].mxu0
        %v2170 = vadd.f32 0.0, %v2169
        %v2171 = vpop.f32.mrb[0].mxu0
        %v2172 = vpop.f32.mrb[0].mxu0
        %v2173 = vadd.f32 0.0, %v2172
        %v2174 = vpop.f32.mrb[0].mxu0
        %2175 = vmatprep.mubr.bf16.mxu0 0
        %2176 = vmatmul.mubr.bf16.gmra.mrb[0].mxu0 %v2066
        %v2177 = vpop.f32.mrb[0].mxu0
        %v2178 = vadd.f32 0.0, %v2177
        %v2179 = vpop.f32.mrb[0].mxu0
        %v2180 = vpop.f32.mrb[0].mxu0
        %v2181 = vadd.f32 0.0, %v2180
        %v2182 = vpop.f32.mrb[0].mxu0
        %2183 = vdwg.mxu0
        %v2184 = vadd.f32 %v1902, %v2154
        %v2185 = vadd.f32 %v1903, %v2157
        %v2186 = vadd.f32 %v1904, %v2162
        %v2187 = vadd.f32 %v1905, %v2165
        %v2188 = vadd.f32 %v1906, %v2170
        %v2189 = vadd.f32 %v1907, %v2173
        %v2190 = vadd.f32 %v1908, %v2178
        %v2191 = vadd.f32 %v1909, %v2181
        %v2192 = vld [vmem:[%s1739] sm:$0xe]
        %v2193 = vld [vmem:[%s1739 + $0x8] sm:$0xe]
        %v2194 = vld [vmem:[%s1739 + $0x10] sm:$0xe]
        %v2195 = vld [vmem:[%s1739 + $0x18] sm:$0xe]
        %v2196 = vld [vmem:[%s1739 + $0x20] sm:$0xe]
        %v2197 = vld [vmem:[%s1739 + $0x28] sm:$0xe]
        %v2198 = vld [vmem:[%s1739 + $0x30] sm:$0xe]
        %v2199 = vld [vmem:[%s1739 + $0x38] sm:$0xe]
        %v2216 = vrot.slane %v2192, 5
        %v2217 = vrot.slane %v2216, 4
        %v2218 = vrot.slane %v1911, 5
        %v2219 = vsel %vm890, %v2217, %v2218
        %v2220 = vrot.slane %v2193, 5
        %v2221 = vrot.slane %v2220, 4
        %v2222 = vrot.slane %v1913, 5
        %v2223 = vsel %vm890, %v2221, %v2222
        %v2224 = vrot.slane %v2194, 5
        %v2225 = vrot.slane %v2224, 4
        %v2226 = vrot.slane %v1915, 5
        %v2227 = vsel %vm890, %v2225, %v2226
        %v2228 = vrot.slane %v2195, 5
        %v2229 = vrot.slane %v2228, 4
        %v2230 = vrot.slane %v1917, 5
        %v2231 = vsel %vm890, %v2229, %v2230
        %v2232 = vrot.slane %v2196, 5
        %v2233 = vrot.slane %v2232, 4
        %v2234 = vrot.slane %v1919, 5
        %v2235 = vsel %vm890, %v2233, %v2234
        %v2236 = vrot.slane %v2197, 5
        %v2237 = vrot.slane %v2236, 4
        %v2238 = vrot.slane %v1921, 5
        %v2239 = vsel %vm890, %v2237, %v2238
        %v2240 = vrot.slane %v2198, 5
        %v2241 = vrot.slane %v2240, 4
        %v2242 = vrot.slane %v1923, 5
        %v2243 = vsel %vm890, %v2241, %v2242
        %v2244 = vrot.slane %v2199, 5
        %v2245 = vrot.slane %v2244, 4
        %v2246 = vrot.slane %v1925, 5
        %v2247 = vsel %vm890, %v2245, %v2246
        %s2248 = scalar_lea.vmem %s1, 512
        %v2249 = vld [vmem:[%s2248] sm:$0xf]
        %v2250 = vld [vmem:[%s2248 + $0x4] sm:$0xf]
        %v2251 = vld [vmem:[%s2248 + $0x8] sm:$0xf]
        %v2252 = vld [vmem:[%s2248 + $0xc] sm:$0xf]
        %v2253 = vld [vmem:[%s2248 + $0x10] sm:$0xf]
        %v2254 = vld [vmem:[%s2248 + $0x14] sm:$0xf]
        %v2255 = vld [vmem:[%s2248 + $0x18] sm:$0xf]
        %v2256 = vld [vmem:[%s2248 + $0x1c] sm:$0xf]
        %v2257 = vld [vmem:[%s2248 + $0x20] sm:$0xf]
        %v2258 = vld [vmem:[%s2248 + $0x24] sm:$0xf]
        %v2259 = vld [vmem:[%s2248 + $0x28] sm:$0xf]
        %v2260 = vld [vmem:[%s2248 + $0x2c] sm:$0xf]
        %v2261 = vld [vmem:[%s2248 + $0x30] sm:$0xf]
        %v2262 = vld [vmem:[%s2248 + $0x34] sm:$0xf]
        %v2263 = vld [vmem:[%s2248 + $0x38] sm:$0xf]
        %v2264 = vld [vmem:[%s2248 + $0x3c] sm:$0xf]
        %v2265 = vunpack.c.l.b16 %v2219
        %v2266 = vunpack.c.l.b16 %v2223
        %v2267 = vunpack.c.l.b16 %v2227
        %v2268 = vunpack.c.l.b16 %v2231
        %v2269 = vunpack.c.l.b16 %v2235
        %v2270 = vunpack.c.l.b16 %v2239
        %v2271 = vunpack.c.l.b16 %v2243
        %v2272 = vunpack.c.l.b16 %v2247
        %v2273 = vpack.c.b16 %v2266, %v2265
        %v2274 = vpack.c.b16 %v2268, %v2267
        %v2275 = vpack.c.b16 %v2270, %v2269
        %v2276 = vpack.c.b16 %v2272, %v2271
        %v2297 = vunpack.c.l.b16 %v2249
        %v2298 = vunpack.c.l.b16 %v2250
        %v2299 = vunpack.c.l.b16 %v2251
        %v2300 = vunpack.c.l.b16 %v2252
        %v2301 = vunpack.c.l.b16 %v2253
        %v2302 = vunpack.c.l.b16 %v2254
        %v2303 = vunpack.c.l.b16 %v2255
        %v2304 = vunpack.c.l.b16 %v2256
        %v2305 = vunpack.c.l.b16 %v2257
        %v2306 = vunpack.c.l.b16 %v2258
        %v2307 = vunpack.c.l.b16 %v2259
        %v2308 = vunpack.c.l.b16 %v2260
        %v2309 = vunpack.c.l.b16 %v2261
        %v2310 = vunpack.c.l.b16 %v2262
        %v2311 = vunpack.c.l.b16 %v2263
        %v2312 = vunpack.c.l.b16 %v2264
        %v2313 = vpack.c.b16 %v2298, %v2297
        %v2314 = vpack.c.b16 %v2300, %v2299
        %v2315 = vpack.c.b16 %v2302, %v2301
        %v2316 = vpack.c.b16 %v2304, %v2303
        %v2317 = vpack.c.b16 %v2306, %v2305
        %v2318 = vpack.c.b16 %v2308, %v2307
        %v2319 = vpack.c.b16 %v2310, %v2309
        %v2320 = vpack.c.b16 %v2312, %v2311
        %2329 = vmatprep.subr.bf16.mxu0 0
        %2330 = vmatpush1.bf16.msra.mxu0 %v2313
        %2331 = vmatprep.subr.bf16.mxu0 0
        %2332 = vmatpush1.bf16.msra.mxu0 %v2314
        %2333 = vmatprep.subr.bf16.mxu0 0
        %2334 = vmatpush1.bf16.msra.mxu0 %v2315
        %2335 = vmatprep.subr.bf16.mxu0 0
        %2336 = vmatpush1.bf16.msra.mxu0 %v2316
        %2337 = vmatprep.subr.bf16.mxu0 0
        %2338 = vmatpush1.bf16.msra.mxu0 %v2317
        %2339 = vmatprep.subr.bf16.mxu0 0
        %2340 = vmatpush1.bf16.msra.mxu0 %v2318
        %2341 = vmatprep.subr.bf16.mxu0 0
        %2342 = vmatpush1.bf16.msra.mxu0 %v2319
        %2343 = vmatprep.subr.bf16.mxu0 0
        %2344 = vmatpush1.bf16.msra.mxu0 %v2320
        %2345 = vmatprep.subr.bf16.mxu0 0
        %2346 = vmatpush1.bf16.msra.mxu0 0
        %2347 = vmatprep.subr.bf16.mxu0 0
        %2348 = vmatpush1.bf16.msra.mxu0 0
        %2349 = vmatprep.subr.bf16.mxu0 0
        %2350 = vmatpush1.bf16.msra.mxu0 0
        %2351 = vmatprep.subr.bf16.mxu0 0
        %2352 = vmatpush1.bf16.msra.mxu0 0
        %2353 = vmatprep.subr.bf16.mxu0 0
        %2354 = vmatpush1.bf16.msra.mxu0 0
        %2355 = vmatprep.subr.bf16.mxu0 0
        %2356 = vmatpush1.bf16.msra.mxu0 0
        %2357 = vmatprep.subr.bf16.mxu0 0
        %2358 = vmatpush1.bf16.msra.mxu0 0
        %2359 = vmatprep.subr.bf16.mxu0 0
        %2360 = vmatpush1.bf16.msra.mxu0 0
        %2361 = vmatprep.mubr.bf16.mxu0 0
        %2362 = vmatmul.mubr.bf16.gmra.mrb[0].mxu0 %v2273
        %v2363 = vpop.f32.mrb[0].mxu0
        %v2364 = vadd.f32 0.0, %v2363
        %v2365 = vpop.f32.mrb[0].mxu0
        %v2366 = vpop.f32.mrb[0].mxu0
        %v2367 = vadd.f32 0.0, %v2366
        %v2368 = vpop.f32.mrb[0].mxu0
        %2369 = vmatprep.mubr.bf16.mxu0 0
        %2370 = vmatmul.mubr.bf16.gmra.mrb[0].mxu0 %v2274
        %v2371 = vpop.f32.mrb[0].mxu0
        %v2372 = vadd.f32 0.0, %v2371
        %v2373 = vpop.f32.mrb[0].mxu0
        %v2374 = vpop.f32.mrb[0].mxu0
        %v2375 = vadd.f32 0.0, %v2374
        %v2376 = vpop.f32.mrb[0].mxu0
        %2377 = vmatprep.mubr.bf16.mxu0 0
        %2378 = vmatmul.mubr.bf16.gmra.mrb[0].mxu0 %v2275
        %v2379 = vpop.f32.mrb[0].mxu0
        %v2380 = vadd.f32 0.0, %v2379
        %v2381 = vpop.f32.mrb[0].mxu0
        %v2382 = vpop.f32.mrb[0].mxu0
        %v2383 = vadd.f32 0.0, %v2382
        %v2384 = vpop.f32.mrb[0].mxu0
        %2385 = vmatprep.mubr.bf16.mxu0 0
        %2386 = vmatmul.mubr.bf16.gmra.mrb[0].mxu0 %v2276
        %v2387 = vpop.f32.mrb[0].mxu0
        %v2388 = vadd.f32 0.0, %v2387
        %v2389 = vpop.f32.mrb[0].mxu0
        %v2390 = vpop.f32.mrb[0].mxu0
        %v2391 = vadd.f32 0.0, %v2390
        %v2392 = vpop.f32.mrb[0].mxu0
        %2393 = vdwg.mxu0
        %v2394 = vadd.f32 %v2184, %v2364
        %v2395 = vadd.f32 %v2185, %v2367
        %v2396 = vadd.f32 %v2186, %v2372
        %v2397 = vadd.f32 %v2187, %v2375
        %v2398 = vadd.f32 %v2188, %v2380
        %v2399 = vadd.f32 %v2189, %v2383
        %v2400 = vadd.f32 %v2190, %v2388
        %v2401 = vadd.f32 %v2191, %v2391
        %v2402 = vld [vmem:[%s269] sm:$0xff]
        %v2403 = vld [vmem:[%s269 + $0x8] sm:$0xff]
        %v2404 = vld [vmem:[%s269 + $0x10] sm:$0xff]
        %v2405 = vld [vmem:[%s269 + $0x18] sm:$0xff]
        %v2406 = vld [vmem:[%s269 + $0x20] sm:$0xff]
        %v2407 = vld [vmem:[%s269 + $0x28] sm:$0xff]
        %v2408 = vld [vmem:[%s269 + $0x30] sm:$0xff]
        %v2409 = vld [vmem:[%s269 + $0x38] sm:$0xff]
        %v2410 = vld [vmem:[%s3] sm:$0x1]
        %v2412 = vlaneseq
        %v2413 = vshrl.u32 %v2412, 7
        %v2414 = vsub.s32 0, %v2413
        %v2415 = vrot.slane %v2410, %v2414
        %v2417 = vmul.f32 %v2402, %v2415
        %v2418 = vmul.f32 %v2403, %v2415
        %v2419 = vmul.f32 %v2404, %v2415
        %v2420 = vmul.f32 %v2405, %v2415
        %v2421 = vmul.f32 %v2406, %v2415
        %v2422 = vmul.f32 %v2407, %v2415
        %v2423 = vmul.f32 %v2408, %v2415
        %v2424 = vmul.f32 %v2409, %v2415
        %v2425 = vld [vmem:[%s4] sm:$0x1]
        %v2427 = vlaneseq
        %v2428 = vshrl.u32 %v2427, 7
        %v2429 = vsub.s32 0, %v2428
        %v2430 = vrot.slane %v2425, %v2429
        %v2432 = vadd.f32 %v2417, %v2430
        %v2433 = vadd.f32 %v2418, %v2430
        %v2434 = vadd.f32 %v2419, %v2430
        %v2435 = vadd.f32 %v2420, %v2430
        %v2436 = vadd.f32 %v2421, %v2430
        %v2437 = vadd.f32 %v2422, %v2430
        %v2438 = vadd.f32 %v2423, %v2430
        %v2439 = vadd.f32 %v2424, %v2430
        %v2440 = vmax.f32 %v2432, 0.0
        %v2441 = vmax.f32 %v2433, 0.0
        %v2442 = vmax.f32 %v2434, 0.0
        %v2443 = vmax.f32 %v2435, 0.0
        %v2444 = vmax.f32 %v2436, 0.0
        %v2445 = vmax.f32 %v2437, 0.0
        %v2446 = vmax.f32 %v2438, 0.0
        %v2447 = vmax.f32 %v2439, 0.0
        %v2448 = vpack.c.bf16 %v2441, %v2440
        %v2449 = vpack.c.bf16 %v2443, %v2442
        %v2450 = vpack.c.bf16 %v2445, %v2444
        %v2451 = vpack.c.bf16 %v2447, %v2446
        %v2452 = vld [vmem:[%s5] sm:$0x3]
        %vm2453 = vcmask 31744
        %v2455 = vsel %vm2453, %v2448, 0
        %v2458 = vsel %vm2453, %v2449, 0
        %v2461 = vsel %vm2453, %v2450, 0
        %v2464 = vsel %vm2453, %v2451, 0
        %vm2466 = vcmask 1041408
        %v2468 = vsel %vm2466, %v2452, 0
        %2470 = vmatprep.subr.bf16.mxu0 0
        %2471 = vmatpush1.bf16.msra.mxu0 %v2468
        %2472 = vmatprep.subr.bf16.mxu0 0
        %2473 = vmatpush1.bf16.msra.mxu0 0
        %2474 = vmatprep.subr.bf16.mxu0 0
        %2475 = vmatpush1.bf16.msra.mxu0 0
        %2476 = vmatprep.subr.bf16.mxu0 0
        %2477 = vmatpush1.bf16.msra.mxu0 0
        %2478 = vmatprep.subr.bf16.mxu0 0
        %2479 = vmatpush1.bf16.msra.mxu0 0
        %2480 = vmatprep.subr.bf16.mxu0 0
        %2481 = vmatpush1.bf16.msra.mxu0 0
        %2482 = vmatprep.subr.bf16.mxu0 0
        %2483 = vmatpush1.bf16.msra.mxu0 0
        %2484 = vmatprep.subr.bf16.mxu0 0
        %2485 = vmatpush1.bf16.msra.mxu0 0
        %2486 = vmatprep.subr.bf16.mxu0 0
        %2487 = vmatpush1.bf16.msra.mxu0 0
        %2488 = vmatprep.subr.bf16.mxu0 0
        %2489 = vmatpush1.bf16.msra.mxu0 0
        %2490 = vmatprep.subr.bf16.mxu0 0
        %2491 = vmatpush1.bf16.msra.mxu0 0
        %2492 = vmatprep.subr.bf16.mxu0 0
        %2493 = vmatpush1.bf16.msra.mxu0 0
        %2494 = vmatprep.subr.bf16.mxu0 0
        %2495 = vmatpush1.bf16.msra.mxu0 0
        %2496 = vmatprep.subr.bf16.mxu0 0
        %2497 = vmatpush1.bf16.msra.mxu0 0
        %2498 = vmatprep.subr.bf16.mxu0 0
        %2499 = vmatpush1.bf16.msra.mxu0 0
        %2500 = vmatprep.subr.bf16.mxu0 0
        %2501 = vmatpush1.bf16.msra.mxu0 0
        %2502 = vmatprep.mubr.bf16.mxu0 0
        %2503 = vmatmul.mubr.bf16.gmra.mrb[0].mxu0 %v2455
        %v2504 = vpop.f32.mrb[0].mxu0
        %v2505 = vadd.f32 0.0, %v2504
        %v2506 = vpop.f32.mrb[0].mxu0
        %v2507 = vpop.f32.mrb[0].mxu0
        %v2508 = vadd.f32 0.0, %v2507
        %v2509 = vpop.f32.mrb[0].mxu0
        %2510 = vmatprep.mubr.bf16.mxu0 0
        %2511 = vmatmul.mubr.bf16.gmra.mrb[0].mxu0 %v2458
        %v2512 = vpop.f32.mrb[0].mxu0
        %v2513 = vadd.f32 0.0, %v2512
        %v2514 = vpop.f32.mrb[0].mxu0
        %v2515 = vpop.f32.mrb[0].mxu0
        %v2516 = vadd.f32 0.0, %v2515
        %v2517 = vpop.f32.mrb[0].mxu0
        %2518 = vmatprep.mubr.bf16.mxu0 0
        %2519 = vmatmul.mubr.bf16.gmra.mrb[0].mxu0 %v2461
        %v2520 = vpop.f32.mrb[0].mxu0
        %v2521 = vadd.f32 0.0, %v2520
        %v2522 = vpop.f32.mrb[0].mxu0
        %v2523 = vpop.f32.mrb[0].mxu0
        %v2524 = vadd.f32 0.0, %v2523
        %v2525 = vpop.f32.mrb[0].mxu0
        %2526 = vmatprep.mubr.bf16.mxu0 0
        %2527 = vmatmul.mubr.bf16.gmra.mrb[0].mxu0 %v2464
        %v2528 = vpop.f32.mrb[0].mxu0
        %v2529 = vadd.f32 0.0, %v2528
        %v2530 = vpop.f32.mrb[0].mxu0
        %v2531 = vpop.f32.mrb[0].mxu0
        %v2532 = vadd.f32 0.0, %v2531
        %v2533 = vpop.f32.mrb[0].mxu0
        %2534 = vdwg.mxu0
        %v2535 = vadd.f32 %v2394, %v2505
        %v2536 = vadd.f32 %v2395, %v2508
        %v2537 = vadd.f32 %v2396, %v2513
        %v2538 = vadd.f32 %v2397, %v2516
        %v2539 = vadd.f32 %v2398, %v2521
        %v2540 = vadd.f32 %v2399, %v2524
        %v2541 = vadd.f32 %v2400, %v2529
        %v2542 = vadd.f32 %v2401, %v2532
        %2543 = vst [vmem:[%s259] sm:$0xff] %v2535
        %2544 = vst [vmem:[%s259 + $0x8] sm:$0xff] %v2536
        %2545 = vst [vmem:[%s259 + $0x10] sm:$0xff] %v2537
        %2546 = vst [vmem:[%s259 + $0x18] sm:$0xff] %v2538
        %2547 = vst [vmem:[%s259 + $0x20] sm:$0xff] %v2539
        %2548 = vst [vmem:[%s259 + $0x28] sm:$0xff] %v2540
        %2549 = vst [vmem:[%s259 + $0x30] sm:$0xff] %v2541
        %2550 = vst [vmem:[%s259 + $0x38] sm:$0xff] %v2542
        %s2551 = sand.u32 %s164, 1
        %s2552 = scalar_lea.sflag [#allocation4], %s2551
        %s2553 = sand.u32 %s164, 1
        %s2554 = smul.addr %s2553, 64
        %s2555 = scalar_lea.vmem [#allocation3], %s2554
        // Predicated region
        $region45: #{basic_block_forward.3} parent=43 // pred_check
          %p2556 = pneg %p174
        $region46: #{basic_block_forward.3} parent=43 // pred_check_branch
          %2558 = sbr.rel (%p2556) target = $region48
        $region47: #{basic_block_forward.3} parent=43 // pred_region
          %s2560 = ssub.s32 1024, 1024
          %2561 = vsyncadd %s2552, %s2560
          %s2562 = smul.addr %s20, 8
          %s2563 = smul.addr %s2562, 128
          %s2564 = scalar_lea.hbm %s6, %s2563
          %s2565 = sshll.u32 %s2555, 4
          %s2566 = int_to_ptr.vmem [resolvable:$true] %s2565
          %2571 = dma.vmem_to_hbm [thread:$0]  %s2566, 1024, %s2564, %s2552, 128, 128, 8
        $region48: #{basic_block_forward.3} parent=43 // pred_fallthru
          _
      $region44: #{basic_block_forward.3} parent=5 // pred_fallthru
        _
      %p2572 = scmp.le.s32.totalorder 2, %s15
      // Predicated region
      $region49: #{basic_block_forward.3} parent=5 // pred_check
        %p2573 = pneg %p2572
      $region50: #{basic_block_forward.3} parent=5 // pred_check_branch
        %2575 = sbr.rel (%p2573) target = $region52
      $region51: #{basic_block_forward.3} parent=5 // pred_region
        %s2576 = ssub.s32 %s15, 2
        // Predicated region
        $region53: #{basic_block_forward.3} parent=51 // pred_check
          %p2577 = pneg %p180
        $region54: #{basic_block_forward.3} parent=51 // pred_check_branch
          %2579 = sbr.rel (%p2577) target = $region56
        $region55: #{basic_block_forward.3} parent=51 // pred_region
          %s2580 = sand.u32 %s165, 1
          %s2581 = scalar_lea.sflag [#allocation4], %s2580
          %s2582 = sand.u32 %s165, 1
          %s2583 = smul.addr %s2582, 64
          %s2584 = scalar_lea.vmem [#allocation3], %s2583
          %2585 = dma.done %s2581, 1024
        $region56: #{basic_block_forward.3} parent=51 // pred_fallthru
          _
      $region52: #{basic_block_forward.3} parent=5 // pred_fallthru
        _
    $region6: #{basic_block_forward.3} parent=1 // loop_footer
      %s19 = sadd.s32 1, %s15
    $region7: #{basic_block_forward.3} parent=1 // loop_footer_branch
      %14 = sbr.rel target = $region3
    $region8: #{basic_block_forward.3} parent=1 // loop_exit
      _
    %2586 = vsyncpa [#allocation4], 1
    %s2587 = scalar_lea.sflag [#allocation4], 1
    %2588 = vsyncpa %s2587, 1

</llo_original>
